<compile_context>
chip_gen: v7x
topology: tpu7x:2x2x1
jax: 0.10.0
libtpu: 0.0.40
codegen_flags: <defaults>
</compile_context>

<pallas_src>
import jax
import jax.numpy as jnp
from jax import lax
from jax.experimental import pallas as pl
from jax.experimental.pallas import tpu as pltpu

IN_DIM = 39
IN_PAD = 128      # zero-padded input feature dim (lane aligned)
HID = 256
OUT_DIM = 1
OUT_PAD = 128     # zero-padded fc8 output dim (lane-dense output block)
LN_EPS = 1e-5
LOG_EPS = 1e-7
N_LAYERS = 8


def dnn_kernel(x_ref,
               w1_ref, w2_ref, w3_ref, w4_ref, w5_ref, w6_ref, w7_ref, w8_ref,
               b_ref, o_ref):
    """One batch tile through the full 8-layer MLP (weights VMEM-resident)."""

    def dense(a, w_ref, b):
        # bf16 operands into the MXU, f32 accumulation, f32 bias add.
        return jnp.dot(a.astype(jnp.bfloat16), w_ref[...],
                       preferred_element_type=jnp.float32) + b

    def ln_bf16(v):
        # LayerNorm without affine (gamma/beta folded into the next Linear).
        # Reductions in f32; the final scale is done in bf16 so the result
        # feeds the MXU directly (packed VALU on v6e/v7x, correct on v5e).
        mu = jnp.mean(v, axis=-1, keepdims=True)
        d = v - mu
        var = jnp.mean(d * d, axis=-1, keepdims=True)
        inv = lax.rsqrt(var + LN_EPS)
        return d.astype(jnp.bfloat16) * inv.astype(jnp.bfloat16)

    def elu(v):
        # F.elu(alpha=1.0); the discarded exp branch may be large but is
        # dropped by the select (forward-safe).
        return jnp.where(v > 0.0, v, jnp.exp(v) - 1.0)

    # 0.1 * log(x + eps): the 0.1 is folded into W1 in the wrapper.
    x = jnp.log(x_ref[...].astype(jnp.float32) + LOG_EPS)

    # fc1 + tanh
    h = jnp.tanh(dense(x, w1_ref, b_ref[0:1, :]))

    # fc2..fc7: h = elu(fc_i(ln(h)))   (LN affine folded into the weights)
    hidden = ((w2_ref, 1), (w3_ref, 2), (w4_ref, 3),
              (w5_ref, 4), (w6_ref, 5), (w7_ref, 6))
    for w_ref, bi in hidden:
        h = elu(dense(ln_bf16(h), w_ref, b_ref[bi:bi + 1, :]))

    # fc8(ln(h)), no activation; output padded to 128 lanes (col 0 is real).
    out = dense(ln_bf16(h), w8_ref, b_ref[7:8, :OUT_PAD])
    o_ref[...] = out.astype(o_ref.dtype)


def _prepare_arrays(params, gamma, beta):
    """Fold LN affine + the 0.1 log-scale, pad, and cast for the kernel.

    Returns (weights_bf16 list of 8, biases_f32 of shape (8, 256)).
      ln(h) @ W + b == norm(h) @ (gamma[:, None] * W) + (beta @ W + b)
    """
    gcol = gamma.reshape(-1, 1).astype(jnp.float32)
    brow = beta.reshape(1, -1).astype(jnp.float32)

    (w1, b1) = params[0]
    w1 = 0.1 * w1.astype(jnp.float32)                      # fold 0.1*log scale
    w1 = jnp.pad(w1, ((0, IN_PAD - IN_DIM), (0, 0)))       # (128, 256)
    ws = [w1]
    bs = [b1.reshape(1, HID).astype(jnp.float32)]

    for (w, b) in params[1:7]:                             # fc2..fc7
        w = w.astype(jnp.float32)
        ws.append(gcol * w)
        bs.append(brow @ w + b.reshape(1, -1).astype(jnp.float32))

    (w8, b8) = params[7]                                   # fc8
    w8 = w8.astype(jnp.float32)
    w8f = gcol * w8                                        # (256, 1)
    b8f = brow @ w8 + b8.reshape(1, -1).astype(jnp.float32)
    ws.append(jnp.pad(w8f, ((0, 0), (0, OUT_PAD - OUT_DIM))))   # (256, 128)
    bs.append(jnp.pad(b8f, ((0, 0), (0, HID - OUT_DIM))))       # (1, 256)

    weights = [w.astype(jnp.bfloat16) for w in ws]
    biases = jnp.concatenate(bs, axis=0).astype(jnp.float32)    # (8, 256)
    return weights, biases


def _pick_tm(n):
    """Largest batch tile that still gives >= 2 grid steps (v7x megacore)."""
    for tm in (1024, 512, 256, 128, 64, 32, 16):
        if n >= 2 * tm:
            return tm
    return 8


@jax.jit
def dnn_forward(x, params, gamma, beta):
    # Flatten all non-batch dims (mirrors x.view(-1, num_flat_features(x))).
    n = x.shape[0]
    x2 = x.reshape(n, -1).astype(jnp.float32)
    assert x2.shape[1] == IN_DIM

    tm = _pick_tm(n)
    n_pad = -(-n // tm) * tm
    # Pad batch to a multiple of TM and features 39 -> 128 (zeros).
    x2 = jnp.pad(x2, ((0, n_pad - n), (0, IN_PAD - IN_DIM)))

    weights, biases = _prepare_arrays(params, gamma, beta)

    flat_args = [x2]
    in_specs = [pl.BlockSpec((tm, IN_PAD), lambda i: (i, 0))]
    for w in weights:
        flat_args.append(w)
        in_specs.append(pl.BlockSpec(w.shape, lambda i: (0, 0)))
    flat_args.append(biases)
    in_specs.append(pl.BlockSpec(biases.shape, lambda i: (0, 0)))

    flops = 2 * n_pad * (IN_PAD * HID + 6 * HID * HID + HID * OUT_PAD)
    transcendentals = n_pad * (IN_PAD + 7 * HID)          # log + tanh + 6*elu
    bytes_accessed = (x2.size * 4 + sum(w.size * 2 for w in weights)
                      + biases.size * 4 + n_pad * OUT_PAD * 4)

    out = pl.pallas_call(
        dnn_kernel,
        out_shape=jax.ShapeDtypeStruct((n_pad, OUT_PAD), jnp.float32),
        grid_spec=pltpu.PrefetchScalarGridSpec(
            num_scalar_prefetch=0,
            grid=(n_pad // tm,),
            in_specs=in_specs,
            out_specs=pl.BlockSpec((tm, OUT_PAD), lambda i: (i, 0)),
        ),
        compiler_params=pltpu.CompilerParams(
            dimension_semantics=("parallel",),
            vmem_limit_bytes=32 * 1024 * 1024),
        cost_estimate=pl.CostEstimate(flops=flops,
                                      transcendentals=transcendentals,
                                      bytes_accessed=bytes_accessed),
    )(*flat_args)
    return out[:n, :OUT_DIM]


def make_params(key):
    """Deterministic parameter init (shapes from the PyTorch __init__)."""
    dims = [(IN_DIM, HID)] + [(HID, HID)] * 6 + [(HID, OUT_DIM)]
    keys = jax.random.split(key, len(dims) * 2 + 2)
    params = []
    ki = 0
    for (d_in, d_out) in dims:
        bound = 1.0 / jnp.sqrt(d_in)
        w = jax.random.uniform(keys[ki], (d_in, d_out), jnp.float32, -bound, bound)
        ki += 1
        b = jax.random.uniform(keys[ki], (1, d_out), jnp.float32, -bound, bound)
        ki += 1
        params.append((w, b))
    # Non-trivial LN affine to exercise the gamma/beta folding path.
    gamma = 1.0 + 0.1 * jax.random.normal(keys[-2], (1, HID), jnp.float32)
    beta = 0.05 * jax.random.normal(keys[-1], (1, HID), jnp.float32)
    return params, gamma, beta


def dnn_reference_matched(x, params, gamma, beta):
    """Plain-JAX mirror of the kernel numerics (same folded/padded arrays)."""
    weights, biases = _prepare_arrays(params, gamma, beta)
    xf = x.reshape(x.shape[0], -1).astype(jnp.float32)
    xf = jnp.pad(xf, ((0, 0), (0, IN_PAD - IN_DIM)))
    xl = jnp.log(xf + LOG_EPS)

    def dense(a, w, b):
        return jnp.dot(a.astype(jnp.bfloat16), w,
                       preferred_element_type=jnp.float32) + b

    def ln_bf16(v):
        mu = jnp.mean(v, axis=-1, keepdims=True)
        d = v - mu
        var = jnp.mean(d * d, axis=-1, keepdims=True)
        inv = lax.rsqrt(var + LN_EPS)
        return d.astype(jnp.bfloat16) * inv.astype(jnp.bfloat16)

    def elu(v):
        return jnp.where(v > 0.0, v, jnp.exp(v) - 1.0)

    h = jnp.tanh(dense(xl, weights[0], biases[0:1, :]))
    for i in range(1, 7):
        h = elu(dense(ln_bf16(h), weights[i], biases[i:i + 1, :]))
    out = dense(ln_bf16(h), weights[7], biases[7:8, :OUT_PAD])
    return out[:, :OUT_DIM]


def dnn_reference_f32(x, params, gamma, beta):
    """Plain-JAX f32 reference with the original (unfolded) semantics."""
    x = x.reshape(x.shape[0], -1).astype(jnp.float32)
    x = 0.1 * jnp.log(x + LOG_EPS)

    def ln(v):
        mu = jnp.mean(v, axis=-1, keepdims=True)
        var = jnp.mean((v - mu) ** 2, axis=-1, keepdims=True)
        return (v - mu) / jnp.sqrt(var + LN_EPS) * gamma + beta

    (w1, b1), *mid, (w8, b8) = params
    h = jnp.tanh(x @ w1 + b1)
    for (w, b) in mid:
        z = ln(h) @ w + b
        h = jnp.where(z > 0.0, z, jnp.exp(z) - 1.0)
    return ln(h) @ w8 + b8


if __name__ == "__main__":
    key = jax.random.PRNGKey(0)
    k_x, k_p = jax.random.split(key)

    # Small mGGA-XC-style inputs: (batch, 39) positive densities/gradients.
    # batch deliberately not a multiple of the tile (200 -> 256 padded,
    # 4 grid steps of 64 rows) to exercise the padding path.
    batch = 200
    x = jax.random.uniform(k_x, (batch, IN_DIM), jnp.float32, 0.01, 1.0)
    params, gamma, beta = make_params(k_p)

    out = jax.block_until_ready(dnn_forward(x, params, gamma, beta))
    assert out.shape == (batch, OUT_DIM)
    assert bool(jnp.all(jnp.isfinite(out)))

    ref_m = dnn_reference_matched(x, params, gamma, beta)
    ref_f = dnn_reference_f32(x, params, gamma, beta)
    err_m = float(jnp.max(jnp.abs(out - ref_m)))
    err_f = float(jnp.max(jnp.abs(out - ref_f)))
    assert jnp.allclose(out, ref_m, atol=1e-2, rtol=1e-2), (
        f"bf16-matched max abs err = {err_m}")
    assert jnp.allclose(out, ref_f, atol=1.5e-1, rtol=1.5e-1), (
        f"f32 max abs err = {err_f}")

    print("KERNEL_OK")
</pallas_src>

<mosaic_0001>
module attributes {stable_mosaic.version = 11 : i64} {
  func.func @dnn_kernel(%arg0: i32, %arg1: memref<64x128xf32, #tpu.memory_space<vmem>>, %arg2: memref<128x256xbf16, #tpu.memory_space<vmem>>, %arg3: memref<256x256xbf16, #tpu.memory_space<vmem>>, %arg4: memref<256x256xbf16, #tpu.memory_space<vmem>>, %arg5: memref<256x256xbf16, #tpu.memory_space<vmem>>, %arg6: memref<256x256xbf16, #tpu.memory_space<vmem>>, %arg7: memref<256x256xbf16, #tpu.memory_space<vmem>>, %arg8: memref<256x256xbf16, #tpu.memory_space<vmem>>, %arg9: memref<256x128xbf16, #tpu.memory_space<vmem>>, %arg10: memref<8x256xf32, #tpu.memory_space<vmem>>, %arg11: memref<64x128xf32, #tpu.memory_space<vmem>>) attributes {dimension_semantics = [#tpu.dimension_semantics<parallel>], iteration_bounds = array<i64: 4>, scalar_prefetch = 0 : i64, scratch_operands = 0 : i64, tpu.core_type = #tpu.core_type<tc>, window_params = [{transform_indices = @transform_0, window_bounds = array<i64: 64, 128>}, {pipeline_mode = #tpu.pipeline_mode<synchronous>, transform_indices = @transform_1, window_bounds = array<i64: 128, 256>}, {pipeline_mode = #tpu.pipeline_mode<synchronous>, transform_indices = @transform_2, window_bounds = array<i64: 256, 256>}, {pipeline_mode = #tpu.pipeline_mode<synchronous>, transform_indices = @transform_3, window_bounds = array<i64: 256, 256>}, {pipeline_mode = #tpu.pipeline_mode<synchronous>, transform_indices = @transform_4, window_bounds = array<i64: 256, 256>}, {pipeline_mode = #tpu.pipeline_mode<synchronous>, transform_indices = @transform_5, window_bounds = array<i64: 256, 256>}, {pipeline_mode = #tpu.pipeline_mode<synchronous>, transform_indices = @transform_6, window_bounds = array<i64: 256, 256>}, {pipeline_mode = #tpu.pipeline_mode<synchronous>, transform_indices = @transform_7, window_bounds = array<i64: 256, 256>}, {pipeline_mode = #tpu.pipeline_mode<synchronous>, transform_indices = @transform_8, window_bounds = array<i64: 256, 128>}, {pipeline_mode = #tpu.pipeline_mode<synchronous>, transform_indices = @transform_9, window_bounds = array<i64: 8, 256>}, {transform_indices = @transform_10, window_bounds = array<i64: 64, 128>}]} {
    %c0 = arith.constant 0 : index
    %c0_0 = arith.constant 0 : index
    %0 = vector.load %arg1[%c0, %c0_0] : memref<64x128xf32, #tpu.memory_space<vmem>>, vector<64x128xf32>
    %cst = arith.constant 1.000000e-07 : f32
    %1 = vector.broadcast %cst : f32 to vector<64x128xf32>
    %2 = arith.addf %0, %1 : vector<64x128xf32>
    %3 = math.log %2 : vector<64x128xf32>
    %c0_1 = arith.constant 0 : index
    %c0_2 = arith.constant 0 : index
    %4 = vector.load %arg10[%c0_1, %c0_2] : memref<8x256xf32, #tpu.memory_space<vmem>>, vector<1x256xf32>
    %5 = arith.truncf %3 : vector<64x128xf32> to vector<64x128xbf16>
    %c0_3 = arith.constant 0 : index
    %c0_4 = arith.constant 0 : index
    %6 = vector.load %arg2[%c0_3, %c0_4] : memref<128x256xbf16, #tpu.memory_space<vmem>>, vector<128x256xbf16>
    %cst_5 = arith.constant dense<0.000000e+00> : vector<64x256xf32>
    %7 = tpu.matmul %5, %6, %cst_5 {dimension_numbers = #tpu.dot_dimension_numbers<[1], [0], [0], [1], [0, 0, 1, 1], [], []>} : vector<64x128xbf16>, vector<128x256xbf16>, vector<64x256xf32> -> vector<64x256xf32>
    %8 = vector.broadcast %4 : vector<1x256xf32> to vector<64x256xf32>
    %9 = arith.addf %7, %8 : vector<64x256xf32>
    %10 = math.tanh %9 : vector<64x256xf32>
    %cst_6 = arith.constant dense<0.000000e+00> : vector<64xf32>
    %11 = vector.multi_reduction <add>, %10, %cst_6 [1] : vector<64x256xf32> to vector<64xf32>
    %12 = vector.shape_cast %11 : vector<64xf32> to vector<64x1xf32>
    %cst_7 = arith.constant 2.560000e+02 : f32
    %13 = vector.broadcast %cst_7 : f32 to vector<64x1xf32>
    %14 = arith.divf %12, %13 : vector<64x1xf32>
    %15 = vector.broadcast %14 : vector<64x1xf32> to vector<64x256xf32>
    %16 = arith.subf %10, %15 : vector<64x256xf32>
    %17 = arith.mulf %16, %16 : vector<64x256xf32>
    %cst_8 = arith.constant dense<0.000000e+00> : vector<64xf32>
    %18 = vector.multi_reduction <add>, %17, %cst_8 [1] : vector<64x256xf32> to vector<64xf32>
    %19 = vector.shape_cast %18 : vector<64xf32> to vector<64x1xf32>
    %cst_9 = arith.constant 2.560000e+02 : f32
    %20 = vector.broadcast %cst_9 : f32 to vector<64x1xf32>
    %21 = arith.divf %19, %20 : vector<64x1xf32>
    %cst_10 = arith.constant 9.99999974E-6 : f32
    %22 = vector.broadcast %cst_10 : f32 to vector<64x1xf32>
    %23 = arith.addf %21, %22 : vector<64x1xf32>
    %24 = math.rsqrt %23 : vector<64x1xf32>
    %25 = arith.truncf %16 : vector<64x256xf32> to vector<64x256xbf16>
    %26 = arith.truncf %24 : vector<64x1xf32> to vector<64x1xbf16>
    %27 = vector.broadcast %26 : vector<64x1xbf16> to vector<64x256xbf16>
    %28 = arith.mulf %25, %27 : vector<64x256xbf16>
    %c1 = arith.constant 1 : index
    %c0_11 = arith.constant 0 : index
    %29 = vector.load %arg10[%c1, %c0_11] : memref<8x256xf32, #tpu.memory_space<vmem>>, vector<1x256xf32>
    %c0_12 = arith.constant 0 : index
    %c0_13 = arith.constant 0 : index
    %30 = vector.load %arg3[%c0_12, %c0_13] : memref<256x256xbf16, #tpu.memory_space<vmem>>, vector<256x256xbf16>
    %cst_14 = arith.constant dense<0.000000e+00> : vector<64x256xf32>
    %31 = tpu.matmul %28, %30, %cst_14 {dimension_numbers = #tpu.dot_dimension_numbers<[1], [0], [0], [1], [0, 0, 1, 1], [], []>} : vector<64x256xbf16>, vector<256x256xbf16>, vector<64x256xf32> -> vector<64x256xf32>
    %32 = vector.broadcast %29 : vector<1x256xf32> to vector<64x256xf32>
    %33 = arith.addf %31, %32 : vector<64x256xf32>
    %cst_15 = arith.constant 0.000000e+00 : f32
    %34 = vector.broadcast %cst_15 : f32 to vector<64x256xf32>
    %35 = arith.cmpf ogt, %33, %34 : vector<64x256xf32>
    %36 = math.exp %33 : vector<64x256xf32>
    %cst_16 = arith.constant 1.000000e+00 : f32
    %37 = vector.broadcast %cst_16 : f32 to vector<64x256xf32>
    %38 = arith.subf %36, %37 : vector<64x256xf32>
    %39 = arith.select %35, %33, %38 : vector<64x256xi1>, vector<64x256xf32>
    %cst_17 = arith.constant dense<0.000000e+00> : vector<64xf32>
    %40 = vector.multi_reduction <add>, %39, %cst_17 [1] : vector<64x256xf32> to vector<64xf32>
    %41 = vector.shape_cast %40 : vector<64xf32> to vector<64x1xf32>
    %cst_18 = arith.constant 2.560000e+02 : f32
    %42 = vector.broadcast %cst_18 : f32 to vector<64x1xf32>
    %43 = arith.divf %41, %42 : vector<64x1xf32>
    %44 = vector.broadcast %43 : vector<64x1xf32> to vector<64x256xf32>
    %45 = arith.subf %39, %44 : vector<64x256xf32>
    %46 = arith.mulf %45, %45 : vector<64x256xf32>
    %cst_19 = arith.constant dense<0.000000e+00> : vector<64xf32>
    %47 = vector.multi_reduction <add>, %46, %cst_19 [1] : vector<64x256xf32> to vector<64xf32>
    %48 = vector.shape_cast %47 : vector<64xf32> to vector<64x1xf32>
    %cst_20 = arith.constant 2.560000e+02 : f32
    %49 = vector.broadcast %cst_20 : f32 to vector<64x1xf32>
    %50 = arith.divf %48, %49 : vector<64x1xf32>
    %cst_21 = arith.constant 9.99999974E-6 : f32
    %51 = vector.broadcast %cst_21 : f32 to vector<64x1xf32>
    %52 = arith.addf %50, %51 : vector<64x1xf32>
    %53 = math.rsqrt %52 : vector<64x1xf32>
    %54 = arith.truncf %45 : vector<64x256xf32> to vector<64x256xbf16>
    %55 = arith.truncf %53 : vector<64x1xf32> to vector<64x1xbf16>
    %56 = vector.broadcast %55 : vector<64x1xbf16> to vector<64x256xbf16>
    %57 = arith.mulf %54, %56 : vector<64x256xbf16>
    %c2 = arith.constant 2 : index
    %c0_22 = arith.constant 0 : index
    %58 = vector.load %arg10[%c2, %c0_22] : memref<8x256xf32, #tpu.memory_space<vmem>>, vector<1x256xf32>
    %c0_23 = arith.constant 0 : index
    %c0_24 = arith.constant 0 : index
    %59 = vector.load %arg4[%c0_23, %c0_24] : memref<256x256xbf16, #tpu.memory_space<vmem>>, vector<256x256xbf16>
    %cst_25 = arith.constant dense<0.000000e+00> : vector<64x256xf32>
    %60 = tpu.matmul %57, %59, %cst_25 {dimension_numbers = #tpu.dot_dimension_numbers<[1], [0], [0], [1], [0, 0, 1, 1], [], []>} : vector<64x256xbf16>, vector<256x256xbf16>, vector<64x256xf32> -> vector<64x256xf32>
    %61 = vector.broadcast %58 : vector<1x256xf32> to vector<64x256xf32>
    %62 = arith.addf %60, %61 : vector<64x256xf32>
    %cst_26 = arith.constant 0.000000e+00 : f32
    %63 = vector.broadcast %cst_26 : f32 to vector<64x256xf32>
    %64 = arith.cmpf ogt, %62, %63 : vector<64x256xf32>
    %65 = math.exp %62 : vector<64x256xf32>
    %cst_27 = arith.constant 1.000000e+00 : f32
    %66 = vector.broadcast %cst_27 : f32 to vector<64x256xf32>
    %67 = arith.subf %65, %66 : vector<64x256xf32>
    %68 = arith.select %64, %62, %67 : vector<64x256xi1>, vector<64x256xf32>
    %cst_28 = arith.constant dense<0.000000e+00> : vector<64xf32>
    %69 = vector.multi_reduction <add>, %68, %cst_28 [1] : vector<64x256xf32> to vector<64xf32>
    %70 = vector.shape_cast %69 : vector<64xf32> to vector<64x1xf32>
    %cst_29 = arith.constant 2.560000e+02 : f32
    %71 = vector.broadcast %cst_29 : f32 to vector<64x1xf32>
    %72 = arith.divf %70, %71 : vector<64x1xf32>
    %73 = vector.broadcast %72 : vector<64x1xf32> to vector<64x256xf32>
    %74 = arith.subf %68, %73 : vector<64x256xf32>
    %75 = arith.mulf %74, %74 : vector<64x256xf32>
    %cst_30 = arith.constant dense<0.000000e+00> : vector<64xf32>
    %76 = vector.multi_reduction <add>, %75, %cst_30 [1] : vector<64x256xf32> to vector<64xf32>
    %77 = vector.shape_cast %76 : vector<64xf32> to vector<64x1xf32>
    %cst_31 = arith.constant 2.560000e+02 : f32
    %78 = vector.broadcast %cst_31 : f32 to vector<64x1xf32>
    %79 = arith.divf %77, %78 : vector<64x1xf32>
    %cst_32 = arith.constant 9.99999974E-6 : f32
    %80 = vector.broadcast %cst_32 : f32 to vector<64x1xf32>
    %81 = arith.addf %79, %80 : vector<64x1xf32>
    %82 = math.rsqrt %81 : vector<64x1xf32>
    %83 = arith.truncf %74 : vector<64x256xf32> to vector<64x256xbf16>
    %84 = arith.truncf %82 : vector<64x1xf32> to vector<64x1xbf16>
    %85 = vector.broadcast %84 : vector<64x1xbf16> to vector<64x256xbf16>
    %86 = arith.mulf %83, %85 : vector<64x256xbf16>
    %c3 = arith.constant 3 : index
    %c0_33 = arith.constant 0 : index
    %87 = vector.load %arg10[%c3, %c0_33] : memref<8x256xf32, #tpu.memory_space<vmem>>, vector<1x256xf32>
    %c0_34 = arith.constant 0 : index
    %c0_35 = arith.constant 0 : index
    %88 = vector.load %arg5[%c0_34, %c0_35] : memref<256x256xbf16, #tpu.memory_space<vmem>>, vector<256x256xbf16>
    %cst_36 = arith.constant dense<0.000000e+00> : vector<64x256xf32>
    %89 = tpu.matmul %86, %88, %cst_36 {dimension_numbers = #tpu.dot_dimension_numbers<[1], [0], [0], [1], [0, 0, 1, 1], [], []>} : vector<64x256xbf16>, vector<256x256xbf16>, vector<64x256xf32> -> vector<64x256xf32>
    %90 = vector.broadcast %87 : vector<1x256xf32> to vector<64x256xf32>
    %91 = arith.addf %89, %90 : vector<64x256xf32>
    %cst_37 = arith.constant 0.000000e+00 : f32
    %92 = vector.broadcast %cst_37 : f32 to vector<64x256xf32>
    %93 = arith.cmpf ogt, %91, %92 : vector<64x256xf32>
    %94 = math.exp %91 : vector<64x256xf32>
    %cst_38 = arith.constant 1.000000e+00 : f32
    %95 = vector.broadcast %cst_38 : f32 to vector<64x256xf32>
    %96 = arith.subf %94, %95 : vector<64x256xf32>
    %97 = arith.select %93, %91, %96 : vector<64x256xi1>, vector<64x256xf32>
    %cst_39 = arith.constant dense<0.000000e+00> : vector<64xf32>
    %98 = vector.multi_reduction <add>, %97, %cst_39 [1] : vector<64x256xf32> to vector<64xf32>
    %99 = vector.shape_cast %98 : vector<64xf32> to vector<64x1xf32>
    %cst_40 = arith.constant 2.560000e+02 : f32
    %100 = vector.broadcast %cst_40 : f32 to vector<64x1xf32>
    %101 = arith.divf %99, %100 : vector<64x1xf32>
    %102 = vector.broadcast %101 : vector<64x1xf32> to vector<64x256xf32>
    %103 = arith.subf %97, %102 : vector<64x256xf32>
    %104 = arith.mulf %103, %103 : vector<64x256xf32>
    %cst_41 = arith.constant dense<0.000000e+00> : vector<64xf32>
    %105 = vector.multi_reduction <add>, %104, %cst_41 [1] : vector<64x256xf32> to vector<64xf32>
    %106 = vector.shape_cast %105 : vector<64xf32> to vector<64x1xf32>
    %cst_42 = arith.constant 2.560000e+02 : f32
    %107 = vector.broadcast %cst_42 : f32 to vector<64x1xf32>
    %108 = arith.divf %106, %107 : vector<64x1xf32>
    %cst_43 = arith.constant 9.99999974E-6 : f32
    %109 = vector.broadcast %cst_43 : f32 to vector<64x1xf32>
    %110 = arith.addf %108, %109 : vector<64x1xf32>
    %111 = math.rsqrt %110 : vector<64x1xf32>
    %112 = arith.truncf %103 : vector<64x256xf32> to vector<64x256xbf16>
    %113 = arith.truncf %111 : vector<64x1xf32> to vector<64x1xbf16>
    %114 = vector.broadcast %113 : vector<64x1xbf16> to vector<64x256xbf16>
    %115 = arith.mulf %112, %114 : vector<64x256xbf16>
    %c4 = arith.constant 4 : index
    %c0_44 = arith.constant 0 : index
    %116 = vector.load %arg10[%c4, %c0_44] : memref<8x256xf32, #tpu.memory_space<vmem>>, vector<1x256xf32>
    %c0_45 = arith.constant 0 : index
    %c0_46 = arith.constant 0 : index
    %117 = vector.load %arg6[%c0_45, %c0_46] : memref<256x256xbf16, #tpu.memory_space<vmem>>, vector<256x256xbf16>
    %cst_47 = arith.constant dense<0.000000e+00> : vector<64x256xf32>
    %118 = tpu.matmul %115, %117, %cst_47 {dimension_numbers = #tpu.dot_dimension_numbers<[1], [0], [0], [1], [0, 0, 1, 1], [], []>} : vector<64x256xbf16>, vector<256x256xbf16>, vector<64x256xf32> -> vector<64x256xf32>
    %119 = vector.broadcast %116 : vector<1x256xf32> to vector<64x256xf32>
    %120 = arith.addf %118, %119 : vector<64x256xf32>
    %cst_48 = arith.constant 0.000000e+00 : f32
    %121 = vector.broadcast %cst_48 : f32 to vector<64x256xf32>
    %122 = arith.cmpf ogt, %120, %121 : vector<64x256xf32>
    %123 = math.exp %120 : vector<64x256xf32>
    %cst_49 = arith.constant 1.000000e+00 : f32
    %124 = vector.broadcast %cst_49 : f32 to vector<64x256xf32>
    %125 = arith.subf %123, %124 : vector<64x256xf32>
    %126 = arith.select %122, %120, %125 : vector<64x256xi1>, vector<64x256xf32>
    %cst_50 = arith.constant dense<0.000000e+00> : vector<64xf32>
    %127 = vector.multi_reduction <add>, %126, %cst_50 [1] : vector<64x256xf32> to vector<64xf32>
    %128 = vector.shape_cast %127 : vector<64xf32> to vector<64x1xf32>
    %cst_51 = arith.constant 2.560000e+02 : f32
    %129 = vector.broadcast %cst_51 : f32 to vector<64x1xf32>
    %130 = arith.divf %128, %129 : vector<64x1xf32>
    %131 = vector.broadcast %130 : vector<64x1xf32> to vector<64x256xf32>
    %132 = arith.subf %126, %131 : vector<64x256xf32>
    %133 = arith.mulf %132, %132 : vector<64x256xf32>
    %cst_52 = arith.constant dense<0.000000e+00> : vector<64xf32>
    %134 = vector.multi_reduction <add>, %133, %cst_52 [1] : vector<64x256xf32> to vector<64xf32>
    %135 = vector.shape_cast %134 : vector<64xf32> to vector<64x1xf32>
    %cst_53 = arith.constant 2.560000e+02 : f32
    %136 = vector.broadcast %cst_53 : f32 to vector<64x1xf32>
    %137 = arith.divf %135, %136 : vector<64x1xf32>
    %cst_54 = arith.constant 9.99999974E-6 : f32
    %138 = vector.broadcast %cst_54 : f32 to vector<64x1xf32>
    %139 = arith.addf %137, %138 : vector<64x1xf32>
    %140 = math.rsqrt %139 : vector<64x1xf32>
    %141 = arith.truncf %132 : vector<64x256xf32> to vector<64x256xbf16>
    %142 = arith.truncf %140 : vector<64x1xf32> to vector<64x1xbf16>
    %143 = vector.broadcast %142 : vector<64x1xbf16> to vector<64x256xbf16>
    %144 = arith.mulf %141, %143 : vector<64x256xbf16>
    %c5 = arith.constant 5 : index
    %c0_55 = arith.constant 0 : index
    %145 = vector.load %arg10[%c5, %c0_55] : memref<8x256xf32, #tpu.memory_space<vmem>>, vector<1x256xf32>
    %c0_56 = arith.constant 0 : index
    %c0_57 = arith.constant 0 : index
    %146 = vector.load %arg7[%c0_56, %c0_57] : memref<256x256xbf16, #tpu.memory_space<vmem>>, vector<256x256xbf16>
    %cst_58 = arith.constant dense<0.000000e+00> : vector<64x256xf32>
    %147 = tpu.matmul %144, %146, %cst_58 {dimension_numbers = #tpu.dot_dimension_numbers<[1], [0], [0], [1], [0, 0, 1, 1], [], []>} : vector<64x256xbf16>, vector<256x256xbf16>, vector<64x256xf32> -> vector<64x256xf32>
    %148 = vector.broadcast %145 : vector<1x256xf32> to vector<64x256xf32>
    %149 = arith.addf %147, %148 : vector<64x256xf32>
    %cst_59 = arith.constant 0.000000e+00 : f32
    %150 = vector.broadcast %cst_59 : f32 to vector<64x256xf32>
    %151 = arith.cmpf ogt, %149, %150 : vector<64x256xf32>
    %152 = math.exp %149 : vector<64x256xf32>
    %cst_60 = arith.constant 1.000000e+00 : f32
    %153 = vector.broadcast %cst_60 : f32 to vector<64x256xf32>
    %154 = arith.subf %152, %153 : vector<64x256xf32>
    %155 = arith.select %151, %149, %154 : vector<64x256xi1>, vector<64x256xf32>
    %cst_61 = arith.constant dense<0.000000e+00> : vector<64xf32>
    %156 = vector.multi_reduction <add>, %155, %cst_61 [1] : vector<64x256xf32> to vector<64xf32>
    %157 = vector.shape_cast %156 : vector<64xf32> to vector<64x1xf32>
    %cst_62 = arith.constant 2.560000e+02 : f32
    %158 = vector.broadcast %cst_62 : f32 to vector<64x1xf32>
    %159 = arith.divf %157, %158 : vector<64x1xf32>
    %160 = vector.broadcast %159 : vector<64x1xf32> to vector<64x256xf32>
    %161 = arith.subf %155, %160 : vector<64x256xf32>
    %162 = arith.mulf %161, %161 : vector<64x256xf32>
    %cst_63 = arith.constant dense<0.000000e+00> : vector<64xf32>
    %163 = vector.multi_reduction <add>, %162, %cst_63 [1] : vector<64x256xf32> to vector<64xf32>
    %164 = vector.shape_cast %163 : vector<64xf32> to vector<64x1xf32>
    %cst_64 = arith.constant 2.560000e+02 : f32
    %165 = vector.broadcast %cst_64 : f32 to vector<64x1xf32>
    %166 = arith.divf %164, %165 : vector<64x1xf32>
    %cst_65 = arith.constant 9.99999974E-6 : f32
    %167 = vector.broadcast %cst_65 : f32 to vector<64x1xf32>
    %168 = arith.addf %166, %167 : vector<64x1xf32>
    %169 = math.rsqrt %168 : vector<64x1xf32>
    %170 = arith.truncf %161 : vector<64x256xf32> to vector<64x256xbf16>
    %171 = arith.truncf %169 : vector<64x1xf32> to vector<64x1xbf16>
    %172 = vector.broadcast %171 : vector<64x1xbf16> to vector<64x256xbf16>
    %173 = arith.mulf %170, %172 : vector<64x256xbf16>
    %c6 = arith.constant 6 : index
    %c0_66 = arith.constant 0 : index
    %174 = vector.load %arg10[%c6, %c0_66] : memref<8x256xf32, #tpu.memory_space<vmem>>, vector<1x256xf32>
    %c0_67 = arith.constant 0 : index
    %c0_68 = arith.constant 0 : index
    %175 = vector.load %arg8[%c0_67, %c0_68] : memref<256x256xbf16, #tpu.memory_space<vmem>>, vector<256x256xbf16>
    %cst_69 = arith.constant dense<0.000000e+00> : vector<64x256xf32>
    %176 = tpu.matmul %173, %175, %cst_69 {dimension_numbers = #tpu.dot_dimension_numbers<[1], [0], [0], [1], [0, 0, 1, 1], [], []>} : vector<64x256xbf16>, vector<256x256xbf16>, vector<64x256xf32> -> vector<64x256xf32>
    %177 = vector.broadcast %174 : vector<1x256xf32> to vector<64x256xf32>
    %178 = arith.addf %176, %177 : vector<64x256xf32>
    %cst_70 = arith.constant 0.000000e+00 : f32
    %179 = vector.broadcast %cst_70 : f32 to vector<64x256xf32>
    %180 = arith.cmpf ogt, %178, %179 : vector<64x256xf32>
    %181 = math.exp %178 : vector<64x256xf32>
    %cst_71 = arith.constant 1.000000e+00 : f32
    %182 = vector.broadcast %cst_71 : f32 to vector<64x256xf32>
    %183 = arith.subf %181, %182 : vector<64x256xf32>
    %184 = arith.select %180, %178, %183 : vector<64x256xi1>, vector<64x256xf32>
    %cst_72 = arith.constant dense<0.000000e+00> : vector<64xf32>
    %185 = vector.multi_reduction <add>, %184, %cst_72 [1] : vector<64x256xf32> to vector<64xf32>
    %186 = vector.shape_cast %185 : vector<64xf32> to vector<64x1xf32>
    %cst_73 = arith.constant 2.560000e+02 : f32
    %187 = vector.broadcast %cst_73 : f32 to vector<64x1xf32>
    %188 = arith.divf %186, %187 : vector<64x1xf32>
    %189 = vector.broadcast %188 : vector<64x1xf32> to vector<64x256xf32>
    %190 = arith.subf %184, %189 : vector<64x256xf32>
    %191 = arith.mulf %190, %190 : vector<64x256xf32>
    %cst_74 = arith.constant dense<0.000000e+00> : vector<64xf32>
    %192 = vector.multi_reduction <add>, %191, %cst_74 [1] : vector<64x256xf32> to vector<64xf32>
    %193 = vector.shape_cast %192 : vector<64xf32> to vector<64x1xf32>
    %cst_75 = arith.constant 2.560000e+02 : f32
    %194 = vector.broadcast %cst_75 : f32 to vector<64x1xf32>
    %195 = arith.divf %193, %194 : vector<64x1xf32>
    %cst_76 = arith.constant 9.99999974E-6 : f32
    %196 = vector.broadcast %cst_76 : f32 to vector<64x1xf32>
    %197 = arith.addf %195, %196 : vector<64x1xf32>
    %198 = math.rsqrt %197 : vector<64x1xf32>
    %199 = arith.truncf %190 : vector<64x256xf32> to vector<64x256xbf16>
    %200 = arith.truncf %198 : vector<64x1xf32> to vector<64x1xbf16>
    %201 = vector.broadcast %200 : vector<64x1xbf16> to vector<64x256xbf16>
    %202 = arith.mulf %199, %201 : vector<64x256xbf16>
    %c7 = arith.constant 7 : index
    %c0_77 = arith.constant 0 : index
    %203 = vector.load %arg10[%c7, %c0_77] : memref<8x256xf32, #tpu.memory_space<vmem>>, vector<1x128xf32>
    %c0_78 = arith.constant 0 : index
    %c0_79 = arith.constant 0 : index
    %204 = vector.load %arg9[%c0_78, %c0_79] : memref<256x128xbf16, #tpu.memory_space<vmem>>, vector<256x128xbf16>
    %cst_80 = arith.constant dense<0.000000e+00> : vector<64x128xf32>
    %205 = tpu.matmul %202, %204, %cst_80 {dimension_numbers = #tpu.dot_dimension_numbers<[1], [0], [0], [1], [0, 0, 1, 1], [], []>} : vector<64x256xbf16>, vector<256x128xbf16>, vector<64x128xf32> -> vector<64x128xf32>
    %206 = vector.broadcast %203 : vector<1x128xf32> to vector<64x128xf32>
    %207 = arith.addf %205, %206 : vector<64x128xf32>
    %c0_81 = arith.constant 0 : index
    %c0_82 = arith.constant 0 : index
    %208 = vector.load %arg11[%c0_81, %c0_82] : memref<64x128xf32, #tpu.memory_space<vmem>>, vector<64x128xf32>
    tpu.vector_store %arg11[%c0_81, %c0_82], %207 {strides = array<i32>} : memref<64x128xf32, #tpu.memory_space<vmem>>, vector<64x128xf32>,
    return
  }
  func.func @transform_0(%arg0: i32) -> (i32, i32) {
    %c0_i32 = arith.constant 0 : i32
    %c0_i32_0 = arith.constant 0 : i32
    return %arg0, %c0_i32 : i32, i32
  }
  func.func @transform_1(%arg0: i32) -> (i32, i32) {
    %c0_i32 = arith.constant 0 : i32
    %c0_i32_0 = arith.constant 0 : i32
    %c0_i32_1 = arith.constant 0 : i32
    return %c0_i32, %c0_i32_0 : i32, i32
  }
  func.func @transform_2(%arg0: i32) -> (i32, i32) {
    %c0_i32 = arith.constant 0 : i32
    %c0_i32_0 = arith.constant 0 : i32
    %c0_i32_1 = arith.constant 0 : i32
    return %c0_i32, %c0_i32_0 : i32, i32
  }
  func.func @transform_3(%arg0: i32) -> (i32, i32) {
    %c0_i32 = arith.constant 0 : i32
    %c0_i32_0 = arith.constant 0 : i32
    %c0_i32_1 = arith.constant 0 : i32
    return %c0_i32, %c0_i32_0 : i32, i32
  }
  func.func @transform_4(%arg0: i32) -> (i32, i32) {
    %c0_i32 = arith.constant 0 : i32
    %c0_i32_0 = arith.constant 0 : i32
    %c0_i32_1 = arith.constant 0 : i32
    return %c0_i32, %c0_i32_0 : i32, i32
  }
  func.func @transform_5(%arg0: i32) -> (i32, i32) {
    %c0_i32 = arith.constant 0 : i32
    %c0_i32_0 = arith.constant 0 : i32
    %c0_i32_1 = arith.constant 0 : i32
    return %c0_i32, %c0_i32_0 : i32, i32
  }
  func.func @transform_6(%arg0: i32) -> (i32, i32) {
    %c0_i32 = arith.constant 0 : i32
    %c0_i32_0 = arith.constant 0 : i32
    %c0_i32_1 = arith.constant 0 : i32
    return %c0_i32, %c0_i32_0 : i32, i32
  }
  func.func @transform_7(%arg0: i32) -> (i32, i32) {
    %c0_i32 = arith.constant 0 : i32
    %c0_i32_0 = arith.constant 0 : i32
    %c0_i32_1 = arith.constant 0 : i32
    return %c0_i32, %c0_i32_0 : i32, i32
  }
  func.func @transform_8(%arg0: i32) -> (i32, i32) {
    %c0_i32 = arith.constant 0 : i32
    %c0_i32_0 = arith.constant 0 : i32
    %c0_i32_1 = arith.constant 0 : i32
    return %c0_i32, %c0_i32_0 : i32, i32
  }
  func.func @transform_9(%arg0: i32) -> (i32, i32) {
    %c0_i32 = arith.constant 0 : i32
    %c0_i32_0 = arith.constant 0 : i32
    %c0_i32_1 = arith.constant 0 : i32
    return %c0_i32, %c0_i32_0 : i32, i32
  }
  func.func @transform_10(%arg0: i32) -> (i32, i32) {
    %c0_i32 = arith.constant 0 : i32
    %c0_i32_0 = arith.constant 0 : i32
    return %arg0, %c0_i32 : i32, i32
  }
}

</mosaic_0001>

<llo_original>
// kernel: dnn_forward.1
$region0: #{dnn_forward.1}
  #allocation0 [shape = 'u32[]', space=smem, size = 0x4, offset = 0x4, fixed_abs, tag = 'smem constant byte address 0x4 - core index']
  #allocation1 [shape = 'u32[144,128]{1,0:T(1,128)}', space=vmem, size = 0x12000, scoped, tag = 'internal scratch']
  %s0 = inlined_call_operand.vmem [shape: f32[256,128], index: 0, kind: input, shape index: {}]
  %s1 = inlined_call_operand.vmem [shape: bf16[128,256], index: 1, kind: input, shape index: {}]
  %s2 = inlined_call_operand.vmem [shape: bf16[256,256], index: 2, kind: input, shape index: {}]
  %s3 = inlined_call_operand.vmem [shape: bf16[256,256], index: 3, kind: input, shape index: {}]
  %s4 = inlined_call_operand.vmem [shape: bf16[256,256], index: 4, kind: input, shape index: {}]
  %s5 = inlined_call_operand.vmem [shape: bf16[256,256], index: 5, kind: input, shape index: {}]
  %s6 = inlined_call_operand.vmem [shape: bf16[256,256], index: 6, kind: input, shape index: {}]
  %s7 = inlined_call_operand.vmem [shape: bf16[256,256], index: 7, kind: input, shape index: {}]
  %s8 = inlined_call_operand.vmem [shape: bf16[256,128], index: 8, kind: input, shape index: {}]
  %s9 = inlined_call_operand.vmem [shape: f32[8,256], index: 9, kind: input, shape index: {}]
  %s10 = inlined_call_operand.vmem [shape: f32[256,128], index: 10, kind: output, shape index: {}]
  %s11 = sld [smem:[#allocation0]]
  $region73: #{dnn_forward.1} parent=0
    _
  %s13 = ssub.s32 1, %s11
  %s14 = scalar_select 0, %s13, %s11
  loop: start=0, step=1, limit=6
  $region2: #{dnn_forward.1} parent=0 // loop_pre_header
    _
  $region3: #{dnn_forward.1} parent=0 // loop_header
    %s16 = sphi 0, %s20
    %p17 = scmp.ge.s32.totalorder %s16, 6
    %s26 = sphi 0, %s28
    %s29 = sphi 0, %s26
    %s30 = sphi 0, %s29
    %s46 = sphi 0, %s30
    %s50 = sphi 0, %s50
    %s52 = sphi 0, %s50
    %s53 = sphi 0, %s52
    %s67 = sphi 0, %s53
    %s71 = sphi 0, %s71
    %s73 = sphi 0, %s71
    %s74 = sphi 0, %s73
    %s88 = sphi 0, %s74
    %s92 = sphi 0, %s92
    %s94 = sphi 0, %s92
    %s95 = sphi 0, %s94
    %s109 = sphi 0, %s95
    %s113 = sphi 0, %s113
    %s115 = sphi 0, %s113
    %s116 = sphi 0, %s115
    %s130 = sphi 0, %s116
    %s134 = sphi 0, %s134
    %s136 = sphi 0, %s134
    %s137 = sphi 0, %s136
    %s151 = sphi 0, %s137
    %s155 = sphi 0, %s155
    %s157 = sphi 0, %s155
    %s158 = sphi 0, %s157
    %s172 = sphi 0, %s158
    %s176 = sphi 0, %s176
    %s178 = sphi 0, %s176
    %s179 = sphi 0, %s178
    %s193 = sphi 0, %s179
    %s197 = sphi 0, %s197
    %s199 = sphi 0, %s197
    %s200 = sphi 0, %s199
    %s214 = sphi 0, %s200
    %s218 = sphi 0, %s218
    %s220 = sphi 0, %s218
    %s221 = sphi 0, %s220
    %s235 = sphi 0, %s221
    %s241 = sphi 0, %s243
    %s244 = sphi 0, %s241
    %s245 = sphi 0, %s244
    %s261 = sphi 0, %s245
  $region4: #{dnn_forward.1} parent=0 // loop_header_branch
    %19 = sbr.rel (%p17) target = $region8
  $region5: #{dnn_forward.1} parent=0 // loop_body
    %s21 = ssub.s32 %s16, 1
    %s22 = ssub.s32 %s16, 2
    %s23 = sadd.s32 %s16, 1
    %s24 = ssub.s32 %s16, %s23
    %p25 = scmp.eq.s32.totalorder %s24, 0
    %s27 = sadd.s32 %s26, 1
    %s28 = scalar_select %p25, %s26, %s27
    %p31 = pneg %p25
    %p32 = scmp.eq.s32.totalorder %s16, 3
    %p33 = por %p31, %p32
    %p34 = scmp.ne.s32.totalorder %s26, %s29
    %p35 = scmp.eq.s32.totalorder %s16, 0
    %p36 = por %p34, %p35
    %p37 = scmp.ne.s32.totalorder %s26, %s29
    %p38 = scmp.eq.s32.totalorder %s21, 3
    %p39 = por %p37, %p38
    %p40 = scmp.ne.s32.totalorder %s29, %s30
    %p41 = scmp.eq.s32.totalorder %s21, 0
    %p42 = por %p40, %p41
    %p43 = scmp.ne.s32.totalorder %s29, %s30
    %p44 = scmp.eq.s32.totalorder %s22, 3
    %p45 = por %p43, %p44
    %p47 = scmp.ne.s32.totalorder %s30, %s46
    %p48 = scmp.eq.s32.totalorder %s22, 0
    %p49 = por %p47, %p48
    %s51 = sadd.s32 %s50, 1
    %p54 = scmp.eq.s32.totalorder %s16, 3
    %p55 = scmp.ne.s32.totalorder %s50, %s52
    %p56 = scmp.eq.s32.totalorder %s16, 0
    %p57 = por %p55, %p56
    %p58 = scmp.ne.s32.totalorder %s50, %s52
    %p59 = scmp.eq.s32.totalorder %s21, 3
    %p60 = por %p58, %p59
    %p61 = scmp.ne.s32.totalorder %s52, %s53
    %p62 = scmp.eq.s32.totalorder %s21, 0
    %p63 = por %p61, %p62
    %p64 = scmp.ne.s32.totalorder %s52, %s53
    %p65 = scmp.eq.s32.totalorder %s22, 3
    %p66 = por %p64, %p65
    %p68 = scmp.ne.s32.totalorder %s53, %s67
    %p69 = scmp.eq.s32.totalorder %s22, 0
    %p70 = por %p68, %p69
    %s72 = sadd.s32 %s71, 1
    %p75 = scmp.eq.s32.totalorder %s16, 3
    %p76 = scmp.ne.s32.totalorder %s71, %s73
    %p77 = scmp.eq.s32.totalorder %s16, 0
    %p78 = por %p76, %p77
    %p79 = scmp.ne.s32.totalorder %s71, %s73
    %p80 = scmp.eq.s32.totalorder %s21, 3
    %p81 = por %p79, %p80
    %p82 = scmp.ne.s32.totalorder %s73, %s74
    %p83 = scmp.eq.s32.totalorder %s21, 0
    %p84 = por %p82, %p83
    %p85 = scmp.ne.s32.totalorder %s73, %s74
    %p86 = scmp.eq.s32.totalorder %s22, 3
    %p87 = por %p85, %p86
    %p89 = scmp.ne.s32.totalorder %s74, %s88
    %p90 = scmp.eq.s32.totalorder %s22, 0
    %p91 = por %p89, %p90
    %s93 = sadd.s32 %s92, 1
    %p96 = scmp.eq.s32.totalorder %s16, 3
    %p97 = scmp.ne.s32.totalorder %s92, %s94
    %p98 = scmp.eq.s32.totalorder %s16, 0
    %p99 = por %p97, %p98
    %p100 = scmp.ne.s32.totalorder %s92, %s94
    %p101 = scmp.eq.s32.totalorder %s21, 3
    %p102 = por %p100, %p101
    %p103 = scmp.ne.s32.totalorder %s94, %s95
    %p104 = scmp.eq.s32.totalorder %s21, 0
    %p105 = por %p103, %p104
    %p106 = scmp.ne.s32.totalorder %s94, %s95
    %p107 = scmp.eq.s32.totalorder %s22, 3
    %p108 = por %p106, %p107
    %p110 = scmp.ne.s32.totalorder %s95, %s109
    %p111 = scmp.eq.s32.totalorder %s22, 0
    %p112 = por %p110, %p111
    %s114 = sadd.s32 %s113, 1
    %p117 = scmp.eq.s32.totalorder %s16, 3
    %p118 = scmp.ne.s32.totalorder %s113, %s115
    %p119 = scmp.eq.s32.totalorder %s16, 0
    %p120 = por %p118, %p119
    %p121 = scmp.ne.s32.totalorder %s113, %s115
    %p122 = scmp.eq.s32.totalorder %s21, 3
    %p123 = por %p121, %p122
    %p124 = scmp.ne.s32.totalorder %s115, %s116
    %p125 = scmp.eq.s32.totalorder %s21, 0
    %p126 = por %p124, %p125
    %p127 = scmp.ne.s32.totalorder %s115, %s116
    %p128 = scmp.eq.s32.totalorder %s22, 3
    %p129 = por %p127, %p128
    %p131 = scmp.ne.s32.totalorder %s116, %s130
    %p132 = scmp.eq.s32.totalorder %s22, 0
    %p133 = por %p131, %p132
    %s135 = sadd.s32 %s134, 1
    %p138 = scmp.eq.s32.totalorder %s16, 3
    %p139 = scmp.ne.s32.totalorder %s134, %s136
    %p140 = scmp.eq.s32.totalorder %s16, 0
    %p141 = por %p139, %p140
    %p142 = scmp.ne.s32.totalorder %s134, %s136
    %p143 = scmp.eq.s32.totalorder %s21, 3
    %p144 = por %p142, %p143
    %p145 = scmp.ne.s32.totalorder %s136, %s137
    %p146 = scmp.eq.s32.totalorder %s21, 0
    %p147 = por %p145, %p146
    %p148 = scmp.ne.s32.totalorder %s136, %s137
    %p149 = scmp.eq.s32.totalorder %s22, 3
    %p150 = por %p148, %p149
    %p152 = scmp.ne.s32.totalorder %s137, %s151
    %p153 = scmp.eq.s32.totalorder %s22, 0
    %p154 = por %p152, %p153
    %s156 = sadd.s32 %s155, 1
    %p159 = scmp.eq.s32.totalorder %s16, 3
    %p160 = scmp.ne.s32.totalorder %s155, %s157
    %p161 = scmp.eq.s32.totalorder %s16, 0
    %p162 = por %p160, %p161
    %p163 = scmp.ne.s32.totalorder %s155, %s157
    %p164 = scmp.eq.s32.totalorder %s21, 3
    %p165 = por %p163, %p164
    %p166 = scmp.ne.s32.totalorder %s157, %s158
    %p167 = scmp.eq.s32.totalorder %s21, 0
    %p168 = por %p166, %p167
    %p169 = scmp.ne.s32.totalorder %s157, %s158
    %p170 = scmp.eq.s32.totalorder %s22, 3
    %p171 = por %p169, %p170
    %p173 = scmp.ne.s32.totalorder %s158, %s172
    %p174 = scmp.eq.s32.totalorder %s22, 0
    %p175 = por %p173, %p174
    %s177 = sadd.s32 %s176, 1
    %p180 = scmp.eq.s32.totalorder %s16, 3
    %p181 = scmp.ne.s32.totalorder %s176, %s178
    %p182 = scmp.eq.s32.totalorder %s16, 0
    %p183 = por %p181, %p182
    %p184 = scmp.ne.s32.totalorder %s176, %s178
    %p185 = scmp.eq.s32.totalorder %s21, 3
    %p186 = por %p184, %p185
    %p187 = scmp.ne.s32.totalorder %s178, %s179
    %p188 = scmp.eq.s32.totalorder %s21, 0
    %p189 = por %p187, %p188
    %p190 = scmp.ne.s32.totalorder %s178, %s179
    %p191 = scmp.eq.s32.totalorder %s22, 3
    %p192 = por %p190, %p191
    %p194 = scmp.ne.s32.totalorder %s179, %s193
    %p195 = scmp.eq.s32.totalorder %s22, 0
    %p196 = por %p194, %p195
    %s198 = sadd.s32 %s197, 1
    %p201 = scmp.eq.s32.totalorder %s16, 3
    %p202 = scmp.ne.s32.totalorder %s197, %s199
    %p203 = scmp.eq.s32.totalorder %s16, 0
    %p204 = por %p202, %p203
    %p205 = scmp.ne.s32.totalorder %s197, %s199
    %p206 = scmp.eq.s32.totalorder %s21, 3
    %p207 = por %p205, %p206
    %p208 = scmp.ne.s32.totalorder %s199, %s200
    %p209 = scmp.eq.s32.totalorder %s21, 0
    %p210 = por %p208, %p209
    %p211 = scmp.ne.s32.totalorder %s199, %s200
    %p212 = scmp.eq.s32.totalorder %s22, 3
    %p213 = por %p211, %p212
    %p215 = scmp.ne.s32.totalorder %s200, %s214
    %p216 = scmp.eq.s32.totalorder %s22, 0
    %p217 = por %p215, %p216
    %s219 = sadd.s32 %s218, 1
    %p222 = scmp.eq.s32.totalorder %s16, 3
    %p223 = scmp.ne.s32.totalorder %s218, %s220
    %p224 = scmp.eq.s32.totalorder %s16, 0
    %p225 = por %p223, %p224
    %p226 = scmp.ne.s32.totalorder %s218, %s220
    %p227 = scmp.eq.s32.totalorder %s21, 3
    %p228 = por %p226, %p227
    %p229 = scmp.ne.s32.totalorder %s220, %s221
    %p230 = scmp.eq.s32.totalorder %s21, 0
    %p231 = por %p229, %p230
    %p232 = scmp.ne.s32.totalorder %s220, %s221
    %p233 = scmp.eq.s32.totalorder %s22, 3
    %p234 = por %p232, %p233
    %p236 = scmp.ne.s32.totalorder %s221, %s235
    %p237 = scmp.eq.s32.totalorder %s22, 0
    %p238 = por %p236, %p237
    %s239 = ssub.s32 %s16, %s23
    %p240 = scmp.eq.s32.totalorder %s239, 0
    %s242 = sadd.s32 %s241, 1
    %s243 = scalar_select %p240, %s241, %s242
    %p246 = pneg %p240
    %p247 = scmp.eq.s32.totalorder %s16, 3
    %p248 = por %p246, %p247
    %p249 = scmp.ne.s32.totalorder %s241, %s244
    %p250 = scmp.eq.s32.totalorder %s16, 0
    %p251 = por %p249, %p250
    %p252 = scmp.ne.s32.totalorder %s241, %s244
    %p253 = scmp.eq.s32.totalorder %s21, 3
    %p254 = por %p252, %p253
    %p255 = scmp.ne.s32.totalorder %s244, %s245
    %p256 = scmp.eq.s32.totalorder %s21, 0
    %p257 = por %p255, %p256
    %p258 = scmp.ne.s32.totalorder %s244, %s245
    %p259 = scmp.eq.s32.totalorder %s22, 3
    %p260 = por %p258, %p259
    %p262 = scmp.ne.s32.totalorder %s245, %s261
    %p263 = scmp.eq.s32.totalorder %s22, 0
    %p264 = por %p262, %p263
    %p265 = scmp.le.s32.totalorder 1, %s16
    %p266 = scmp.lt.s32.totalorder %s16, 5
    %p267 = pnand %p265, %p266
    %p268 = pneg %p267
    // Predicated region
    $region9: #{dnn_forward.1} parent=5 // pred_check
      _
    $region10: #{dnn_forward.1} parent=5 // pred_check_branch
      %270 = sbr.rel (%p267) target = $region12
    $region11: #{dnn_forward.1} parent=5 // pred_region
      %s271 = ssub.s32 %s16, 1
      // Predicated region
      $region13: #{dnn_forward.1} parent=11 // pred_check
        %p272 = pneg %p63
      $region14: #{dnn_forward.1} parent=11 // pred_check_branch
        %274 = sbr.rel (%p272) target = $region16
      $region15: #{dnn_forward.1} parent=11 // pred_region
        _
      $region16: #{dnn_forward.1} parent=11 // pred_fallthru
        _
      // Predicated region
      $region17: #{dnn_forward.1} parent=11 // pred_check
        %p275 = pneg %p84
      $region18: #{dnn_forward.1} parent=11 // pred_check_branch
        %277 = sbr.rel (%p275) target = $region20
      $region19: #{dnn_forward.1} parent=11 // pred_region
        _
      $region20: #{dnn_forward.1} parent=11 // pred_fallthru
        _
      // Predicated region
      $region21: #{dnn_forward.1} parent=11 // pred_check
        %p278 = pneg %p105
      $region22: #{dnn_forward.1} parent=11 // pred_check_branch
        %280 = sbr.rel (%p278) target = $region24
      $region23: #{dnn_forward.1} parent=11 // pred_region
        _
      $region24: #{dnn_forward.1} parent=11 // pred_fallthru
        _
      // Predicated region
      $region25: #{dnn_forward.1} parent=11 // pred_check
        %p281 = pneg %p126
      $region26: #{dnn_forward.1} parent=11 // pred_check_branch
        %283 = sbr.rel (%p281) target = $region28
      $region27: #{dnn_forward.1} parent=11 // pred_region
        _
      $region28: #{dnn_forward.1} parent=11 // pred_fallthru
        _
      // Predicated region
      $region29: #{dnn_forward.1} parent=11 // pred_check
        %p284 = pneg %p147
      $region30: #{dnn_forward.1} parent=11 // pred_check_branch
        %286 = sbr.rel (%p284) target = $region32
      $region31: #{dnn_forward.1} parent=11 // pred_region
        _
      $region32: #{dnn_forward.1} parent=11 // pred_fallthru
        _
      // Predicated region
      $region33: #{dnn_forward.1} parent=11 // pred_check
        %p287 = pneg %p168
      $region34: #{dnn_forward.1} parent=11 // pred_check_branch
        %289 = sbr.rel (%p287) target = $region36
      $region35: #{dnn_forward.1} parent=11 // pred_region
        _
      $region36: #{dnn_forward.1} parent=11 // pred_fallthru
        _
      // Predicated region
      $region37: #{dnn_forward.1} parent=11 // pred_check
        %p290 = pneg %p189
      $region38: #{dnn_forward.1} parent=11 // pred_check_branch
        %292 = sbr.rel (%p290) target = $region40
      $region39: #{dnn_forward.1} parent=11 // pred_region
        _
      $region40: #{dnn_forward.1} parent=11 // pred_fallthru
        _
      // Predicated region
      $region41: #{dnn_forward.1} parent=11 // pred_check
        %p293 = pneg %p210
      $region42: #{dnn_forward.1} parent=11 // pred_check_branch
        %295 = sbr.rel (%p293) target = $region44
      $region43: #{dnn_forward.1} parent=11 // pred_region
        _
      $region44: #{dnn_forward.1} parent=11 // pred_fallthru
        _
      // Predicated region
      $region45: #{dnn_forward.1} parent=11 // pred_check
        %p296 = pneg %p231
      $region46: #{dnn_forward.1} parent=11 // pred_check_branch
        %298 = sbr.rel (%p296) target = $region48
      $region47: #{dnn_forward.1} parent=11 // pred_region
        _
      $region48: #{dnn_forward.1} parent=11 // pred_fallthru
        _
    $region12: #{dnn_forward.1} parent=5 // pred_fallthru
      _
    %p299 = scmp.lt.s32.totalorder %s16, 4
    // Predicated region
    $region49: #{dnn_forward.1} parent=5 // pred_check
      %p300 = pneg %p299
    $region50: #{dnn_forward.1} parent=5 // pred_check_branch
      %302 = sbr.rel (%p300) target = $region52
    $region51: #{dnn_forward.1} parent=5 // pred_region
      // Predicated region
      $region53: #{dnn_forward.1} parent=51 // pred_check
        %p303 = pneg %p36
      $region54: #{dnn_forward.1} parent=51 // pred_check_branch
        %305 = sbr.rel (%p303) target = $region56
      $region55: #{dnn_forward.1} parent=51 // pred_region
        %s306 = smul.u32 8, %s16
        %p307 = scmp.lt.s32.totalorder %s306, 31
        %s308 = scalar_select %p307, %s306, 31
        %s309 = smul.addr %s308, 8
        %s310 = scalar_lea.vmem %s0, %s309
        %s311 = smul.u32 8, %s16
      $region56: #{dnn_forward.1} parent=51 // pred_fallthru
        _
    $region52: #{dnn_forward.1} parent=5 // pred_fallthru
      _
    %p312 = scmp.le.s32.totalorder 1, %s16
    %p313 = scmp.lt.s32.totalorder %s16, 5
    %p314 = pnand %p312, %p313
    %p315 = pneg %p314
    // Predicated region
    $region57: #{dnn_forward.1} parent=5 // pred_check
      _
    $region58: #{dnn_forward.1} parent=5 // pred_check_branch
      %317 = sbr.rel (%p314) target = $region60
    $region59: #{dnn_forward.1} parent=5 // pred_region
      %s318 = ssub.s32 %s16, 1
      %s319 = smul.u32 8, %s21
      %p320 = scmp.lt.s32.totalorder %s319, 31
      %s321 = scalar_select %p320, %s319, 31
      %s322 = smul.addr %s321, 8
      %s323 = scalar_lea.vmem %s0, %s322
      %p324 = pneg %p42
      %p325 = pneg %p39
      %p326 = pneg %p63
      %p327 = pneg %p60
      %p328 = pneg %p84
      %p329 = pneg %p81
      %p330 = pneg %p105
      %p331 = pneg %p102
      %p332 = pneg %p126
      %p333 = pneg %p123
      %p334 = pneg %p147
      %p335 = pneg %p144
      %p336 = pneg %p168
      %p337 = pneg %p165
      %p338 = pneg %p189
      %p339 = pneg %p186
      %p340 = pneg %p210
      %p341 = pneg %p207
      %p342 = pneg %p231
      %p343 = pneg %p228
      %p344 = pneg %p257
      %p345 = pneg %p254
      %s346 = smul.u32 8, %s21
      %p347 = scmp.lt.s32.totalorder %s346, 31
      %s348 = scalar_select %p347, %s346, 31
      %s349 = smul.addr %s348, 8
      %s350 = scalar_lea.vmem %s10, %s349
      %s351 = smul.u32 8, %s21
      %p352 = scmp.lt.s32.totalorder %s351, 31
      %s353 = scalar_select %p352, %s351, 31
      %s354 = smul.addr %s353, 8
      %s355 = scalar_lea.vmem %s0, %s354
      %s356 = smul.u32 8, %s21
      %s357 = smul.u32 8, %s21
      %p358 = scmp.lt.s32.totalorder %s357, 31
      %s359 = scalar_select %p358, %s357, 31
      %s360 = smul.addr %s359, 8
      %s361 = scalar_lea.vmem %s10, %s360
      %s362 = smul.u32 8, %s21
      %v364 = vld [vmem:[%s355] sm:$0xff]
      %v365 = vld [vmem:[%s355 + $0x8] sm:$0xff]
      %v366 = vld [vmem:[%s355 + $0x10] sm:$0xff]
      %v367 = vld [vmem:[%s355 + $0x18] sm:$0xff]
      %v368 = vld [vmem:[%s355 + $0x20] sm:$0xff]
      %v369 = vld [vmem:[%s355 + $0x28] sm:$0xff]
      %v370 = vld [vmem:[%s355 + $0x30] sm:$0xff]
      %v371 = vld [vmem:[%s355 + $0x38] sm:$0xff]
      %v372 = vadd.f32 %v364, 1e-07
      %v373 = vadd.f32 %v365, 1e-07
      %v374 = vadd.f32 %v366, 1e-07
      %v375 = vadd.f32 %v367, 1e-07
      %v376 = vadd.f32 %v368, 1e-07
      %v377 = vadd.f32 %v369, 1e-07
      %v378 = vadd.f32 %v370, 1e-07
      %v379 = vadd.f32 %v371, 1e-07
      %v380 = vlog2.pop %v372
      %v381 = vmul.f32 %v380, 0.6931472
      %v382 = vlog2.pop %v373
      %v383 = vmul.f32 %v382, 0.6931472
      %v384 = vlog2.pop %v374
      %v385 = vmul.f32 %v384, 0.6931472
      %v386 = vlog2.pop %v375
      %v387 = vmul.f32 %v386, 0.6931472
      %v388 = vlog2.pop %v376
      %v389 = vmul.f32 %v388, 0.6931472
      %v390 = vlog2.pop %v377
      %v391 = vmul.f32 %v390, 0.6931472
      %v392 = vlog2.pop %v378
      %v393 = vmul.f32 %v392, 0.6931472
      %v394 = vlog2.pop %v379
      %v395 = vmul.f32 %v394, 0.6931472
      %v396 = vld [vmem:[%s9] ss:$8 sm:$0x3]
      %v397 = vpack.c.bf16 %v383, %v381
      %v398 = vpack.c.bf16 %v387, %v385
      %v399 = vpack.c.bf16 %v391, %v389
      %v400 = vpack.c.bf16 %v395, %v393
      %v401 = vld [vmem:[%s1] sm:$0xff]
      %v402 = vld [vmem:[%s1 + $0x8] sm:$0xff]
      %v403 = vld [vmem:[%s1 + $0x10] sm:$0xff]
      %v404 = vld [vmem:[%s1 + $0x18] sm:$0xff]
      %v405 = vld [vmem:[%s1 + $0x20] sm:$0xff]
      %v406 = vld [vmem:[%s1 + $0x28] sm:$0xff]
      %v407 = vld [vmem:[%s1 + $0x30] sm:$0xff]
      %v408 = vld [vmem:[%s1 + $0x38] sm:$0xff]
      %v409 = vld [vmem:[%s1 + $0x40] sm:$0xff]
      %v410 = vld [vmem:[%s1 + $0x48] sm:$0xff]
      %v411 = vld [vmem:[%s1 + $0x50] sm:$0xff]
      %v412 = vld [vmem:[%s1 + $0x58] sm:$0xff]
      %v413 = vld [vmem:[%s1 + $0x60] sm:$0xff]
      %v414 = vld [vmem:[%s1 + $0x68] sm:$0xff]
      %v415 = vld [vmem:[%s1 + $0x70] sm:$0xff]
      %v416 = vld [vmem:[%s1 + $0x78] sm:$0xff]
      %v418 = vlaneseq
      %v419 = vshrl.u32 %v418, 7
      %v420 = vsub.s32 0, %v419
      %v421 = vrot.slane %v396, %v420
      %v422 = vlaneseq
      %v423 = vshrl.u32 %v422, 7
      %v424 = vsub.s32 1, %v423
      %v425 = vrot.slane %v396, %v424
      %v444 = vunpack.c.l.b16 %v401
      %v445 = vunpack.c.h.b16 %v401
      %v446 = vunpack.c.l.b16 %v402
      %v447 = vunpack.c.h.b16 %v402
      %v448 = vunpack.c.l.b16 %v403
      %v449 = vunpack.c.h.b16 %v403
      %v450 = vunpack.c.l.b16 %v404
      %v451 = vunpack.c.h.b16 %v404
      %v452 = vunpack.c.l.b16 %v405
      %v453 = vunpack.c.h.b16 %v405
      %v454 = vunpack.c.l.b16 %v406
      %v455 = vunpack.c.h.b16 %v406
      %v456 = vunpack.c.l.b16 %v407
      %v457 = vunpack.c.h.b16 %v407
      %v458 = vunpack.c.l.b16 %v408
      %v459 = vunpack.c.h.b16 %v408
      %v460 = vunpack.c.l.b16 %v409
      %v461 = vunpack.c.h.b16 %v409
      %v462 = vunpack.c.l.b16 %v410
      %v463 = vunpack.c.h.b16 %v410
      %v464 = vunpack.c.l.b16 %v411
      %v465 = vunpack.c.h.b16 %v411
      %v466 = vunpack.c.l.b16 %v412
      %v467 = vunpack.c.h.b16 %v412
      %v468 = vunpack.c.l.b16 %v413
      %v469 = vunpack.c.h.b16 %v413
      %v470 = vunpack.c.l.b16 %v414
      %v471 = vunpack.c.h.b16 %v414
      %v472 = vunpack.c.l.b16 %v415
      %v473 = vunpack.c.h.b16 %v415
      %v474 = vunpack.c.l.b16 %v416
      %v475 = vunpack.c.h.b16 %v416
      %v476 = vpack.c.b16 %v446, %v444
      %v477 = vpack.c.b16 %v447, %v445
      %v478 = vpack.c.b16 %v450, %v448
      %v479 = vpack.c.b16 %v451, %v449
      %v480 = vpack.c.b16 %v454, %v452
      %v481 = vpack.c.b16 %v455, %v453
      %v482 = vpack.c.b16 %v458, %v456
      %v483 = vpack.c.b16 %v459, %v457
      %v484 = vpack.c.b16 %v462, %v460
      %v485 = vpack.c.b16 %v463, %v461
      %v486 = vpack.c.b16 %v466, %v464
      %v487 = vpack.c.b16 %v467, %v465
      %v488 = vpack.c.b16 %v470, %v468
      %v489 = vpack.c.b16 %v471, %v469
      %v490 = vpack.c.b16 %v474, %v472
      %v491 = vpack.c.b16 %v475, %v473
      %508 = vmatprep.subr.bf16.mxu0 %v477
      %509 = vmatpush1.bf16.msra.mxu0 %v476
      %510 = vmatprep.subr.bf16.mxu0 %v479
      %511 = vmatpush1.bf16.msra.mxu0 %v478
      %512 = vmatprep.subr.bf16.mxu0 %v481
      %513 = vmatpush1.bf16.msra.mxu0 %v480
      %514 = vmatprep.subr.bf16.mxu0 %v483
      %515 = vmatpush1.bf16.msra.mxu0 %v482
      %516 = vmatprep.subr.bf16.mxu0 %v485
      %517 = vmatpush1.bf16.msra.mxu0 %v484
      %518 = vmatprep.subr.bf16.mxu0 %v487
      %519 = vmatpush1.bf16.msra.mxu0 %v486
      %520 = vmatprep.subr.bf16.mxu0 %v489
      %521 = vmatpush1.bf16.msra.mxu0 %v488
      %522 = vmatprep.subr.bf16.mxu0 %v491
      %523 = vmatpush1.bf16.msra.mxu0 %v490
      %524 = vmatprep.subr.bf16.mxu0 0
      %525 = vmatpush1.bf16.msra.mxu0 0
      %526 = vmatprep.subr.bf16.mxu0 0
      %527 = vmatpush1.bf16.msra.mxu0 0
      %528 = vmatprep.subr.bf16.mxu0 0
      %529 = vmatpush1.bf16.msra.mxu0 0
      %530 = vmatprep.subr.bf16.mxu0 0
      %531 = vmatpush1.bf16.msra.mxu0 0
      %532 = vmatprep.subr.bf16.mxu0 0
      %533 = vmatpush1.bf16.msra.mxu0 0
      %534 = vmatprep.subr.bf16.mxu0 0
      %535 = vmatpush1.bf16.msra.mxu0 0
      %536 = vmatprep.subr.bf16.mxu0 0
      %537 = vmatpush1.bf16.msra.mxu0 0
      %538 = vmatprep.subr.bf16.mxu0 0
      %539 = vmatpush1.bf16.msra.mxu0 0
      %540 = vmatprep.mubr.bf16.mxu0 0
      %541 = vmatmul.mubr.bf16.gmra.mrb[0].mxu0 %v397
      %v542 = vpop.f32.mrb[0].mxu0
      %v543 = vadd.f32 %v421, %v542
      %v544 = vpop.f32.mrb[0].mxu0
      %v545 = vadd.f32 %v425, %v544
      %v546 = vpop.f32.mrb[0].mxu0
      %v547 = vadd.f32 %v421, %v546
      %v548 = vpop.f32.mrb[0].mxu0
      %v549 = vadd.f32 %v425, %v548
      %550 = vmatprep.mubr.bf16.mxu0 0
      %551 = vmatmul.mubr.bf16.gmra.mrb[0].mxu0 %v398
      %v552 = vpop.f32.mrb[0].mxu0
      %v553 = vadd.f32 %v421, %v552
      %v554 = vpop.f32.mrb[0].mxu0
      %v555 = vadd.f32 %v425, %v554
      %v556 = vpop.f32.mrb[0].mxu0
      %v557 = vadd.f32 %v421, %v556
      %v558 = vpop.f32.mrb[0].mxu0
      %v559 = vadd.f32 %v425, %v558
      %560 = vmatprep.mubr.bf16.mxu0 0
      %561 = vmatmul.mubr.bf16.gmra.mrb[0].mxu0 %v399
      %v562 = vpop.f32.mrb[0].mxu0
      %v563 = vadd.f32 %v421, %v562
      %v564 = vpop.f32.mrb[0].mxu0
      %v565 = vadd.f32 %v425, %v564
      %v566 = vpop.f32.mrb[0].mxu0
      %v567 = vadd.f32 %v421, %v566
      %v568 = vpop.f32.mrb[0].mxu0
      %v569 = vadd.f32 %v425, %v568
      %570 = vmatprep.mubr.bf16.mxu0 0
      %571 = vmatmul.mubr.bf16.gmra.mrb[0].mxu0 %v400
      %v572 = vpop.f32.mrb[0].mxu0
      %v573 = vadd.f32 %v421, %v572
      %v574 = vpop.f32.mrb[0].mxu0
      %v575 = vadd.f32 %v425, %v574
      %v576 = vpop.f32.mrb[0].mxu0
      %v577 = vadd.f32 %v421, %v576
      %v578 = vpop.f32.mrb[0].mxu0
      %v579 = vadd.f32 %v425, %v578
      %580 = vdwg.mxu0
      %v581 = vtanh.pop %v543
      %v582 = vtanh.pop %v545
      %v583 = vtanh.pop %v547
      %v584 = vtanh.pop %v549
      %v585 = vtanh.pop %v553
      %v586 = vtanh.pop %v555
      %v587 = vtanh.pop %v557
      %v588 = vtanh.pop %v559
      %v589 = vtanh.pop %v563
      %v590 = vtanh.pop %v565
      %v591 = vtanh.pop %v567
      %v592 = vtanh.pop %v569
      %v593 = vtanh.pop %v573
      %v594 = vtanh.pop %v575
      %v595 = vtanh.pop %v577
      %v596 = vtanh.pop %v579
      %v597 = vadd.f32 %v581, %v582
      %598 = vadd.xlane.f32.xlu0 %v597
      %v599 = vpop.xlane.xlu0 %598
      %v600 = vadd.f32 %v583, %v584
      %601 = vadd.xlane.f32.xlu0 %v600
      %v602 = vpop.xlane.xlu0 %601
      %v603 = vadd.f32 %v585, %v586
      %604 = vadd.xlane.f32.xlu0 %v603
      %v605 = vpop.xlane.xlu0 %604
      %v606 = vadd.f32 %v587, %v588
      %607 = vadd.xlane.f32.xlu0 %v606
      %v608 = vpop.xlane.xlu0 %607
      %v609 = vadd.f32 %v589, %v590
      %610 = vadd.xlane.f32.xlu0 %v609
      %v611 = vpop.xlane.xlu0 %610
      %v612 = vadd.f32 %v591, %v592
      %613 = vadd.xlane.f32.xlu0 %v612
      %v614 = vpop.xlane.xlu0 %613
      %v615 = vadd.f32 %v593, %v594
      %616 = vadd.xlane.f32.xlu0 %v615
      %v617 = vpop.xlane.xlu0 %616
      %v618 = vadd.f32 %v595, %v596
      %619 = vadd.xlane.f32.xlu0 %v618
      %v620 = vpop.xlane.xlu0 %619
      %v621 = vrcp.pop 256.0
      %v622 = vmul.f32 %v599, %v621
      %v623 = vmul.f32 %v602, %v621
      %v624 = vmul.f32 %v605, %v621
      %v625 = vmul.f32 %v608, %v621
      %v626 = vmul.f32 %v611, %v621
      %v627 = vmul.f32 %v614, %v621
      %v628 = vmul.f32 %v617, %v621
      %v629 = vmul.f32 %v620, %v621
      %v630 = vsub.f32 %v581, %v622
      %v631 = vsub.f32 %v582, %v622
      %v632 = vsub.f32 %v583, %v623
      %v633 = vsub.f32 %v584, %v623
      %v634 = vsub.f32 %v585, %v624
      %v635 = vsub.f32 %v586, %v624
      %v636 = vsub.f32 %v587, %v625
      %v637 = vsub.f32 %v588, %v625
      %v638 = vsub.f32 %v589, %v626
      %v639 = vsub.f32 %v590, %v626
      %v640 = vsub.f32 %v591, %v627
      %v641 = vsub.f32 %v592, %v627
      %v642 = vsub.f32 %v593, %v628
      %v643 = vsub.f32 %v594, %v628
      %v644 = vsub.f32 %v595, %v629
      %v645 = vsub.f32 %v596, %v629
      %v646 = vmul.f32 %v630, %v630
      %v647 = vmul.f32 %v631, %v631
      %v648 = vmul.f32 %v632, %v632
      %v649 = vmul.f32 %v633, %v633
      %v650 = vmul.f32 %v634, %v634
      %v651 = vmul.f32 %v635, %v635
      %v652 = vmul.f32 %v636, %v636
      %v653 = vmul.f32 %v637, %v637
      %v654 = vmul.f32 %v638, %v638
      %v655 = vmul.f32 %v639, %v639
      %v656 = vmul.f32 %v640, %v640
      %v657 = vmul.f32 %v641, %v641
      %v658 = vmul.f32 %v642, %v642
      %v659 = vmul.f32 %v643, %v643
      %v660 = vmul.f32 %v644, %v644
      %v661 = vmul.f32 %v645, %v645
      %v662 = vadd.f32 %v646, %v647
      %663 = vadd.xlane.f32.xlu0 %v662
      %v664 = vpop.xlane.xlu0 %663
      %v665 = vadd.f32 %v648, %v649
      %666 = vadd.xlane.f32.xlu0 %v665
      %v667 = vpop.xlane.xlu0 %666
      %v668 = vadd.f32 %v650, %v651
      %669 = vadd.xlane.f32.xlu0 %v668
      %v670 = vpop.xlane.xlu0 %669
      %v671 = vadd.f32 %v652, %v653
      %672 = vadd.xlane.f32.xlu0 %v671
      %v673 = vpop.xlane.xlu0 %672
      %v674 = vadd.f32 %v654, %v655
      %675 = vadd.xlane.f32.xlu0 %v674
      %v676 = vpop.xlane.xlu0 %675
      %v677 = vadd.f32 %v656, %v657
      %678 = vadd.xlane.f32.xlu0 %v677
      %v679 = vpop.xlane.xlu0 %678
      %v680 = vadd.f32 %v658, %v659
      %681 = vadd.xlane.f32.xlu0 %v680
      %v682 = vpop.xlane.xlu0 %681
      %v683 = vadd.f32 %v660, %v661
      %684 = vadd.xlane.f32.xlu0 %v683
      %v685 = vpop.xlane.xlu0 %684
      %v686 = vmul.f32 %v664, %v621
      %v687 = vmul.f32 %v667, %v621
      %v688 = vmul.f32 %v670, %v621
      %v689 = vmul.f32 %v673, %v621
      %v690 = vmul.f32 %v676, %v621
      %v691 = vmul.f32 %v679, %v621
      %v692 = vmul.f32 %v682, %v621
      %v693 = vmul.f32 %v685, %v621
      %v694 = vadd.f32 %v686, 1e-05
      %v695 = vadd.f32 %v687, 1e-05
      %v696 = vadd.f32 %v688, 1e-05
      %v697 = vadd.f32 %v689, 1e-05
      %v698 = vadd.f32 %v690, 1e-05
      %v699 = vadd.f32 %v691, 1e-05
      %v700 = vadd.f32 %v692, 1e-05
      %v701 = vadd.f32 %v693, 1e-05
      %v702 = vrsqrt.pop %v694
      %v703 = vrsqrt.pop %v695
      %v704 = vrsqrt.pop %v696
      %v705 = vrsqrt.pop %v697
      %v706 = vrsqrt.pop %v698
      %v707 = vrsqrt.pop %v699
      %v708 = vrsqrt.pop %v700
      %v709 = vrsqrt.pop %v701
      %v710 = vpack.c.bf16 %v632, %v630
      %v711 = vpack.c.bf16 %v633, %v631
      %v712 = vpack.c.bf16 %v636, %v634
      %v713 = vpack.c.bf16 %v637, %v635
      %v714 = vpack.c.bf16 %v640, %v638
      %v715 = vpack.c.bf16 %v641, %v639
      %v716 = vpack.c.bf16 %v644, %v642
      %v717 = vpack.c.bf16 %v645, %v643
      %v718 = vpack.c.bf16 %v703, %v702
      %v719 = vpack.c.bf16 %v705, %v704
      %v720 = vpack.c.bf16 %v707, %v706
      %v721 = vpack.c.bf16 %v709, %v708
      %v722 = vmul.bf16 %v710, %v718
      %v723 = vmul.bf16 %v711, %v718
      %v724 = vmul.bf16 %v712, %v719
      %v725 = vmul.bf16 %v713, %v719
      %v726 = vmul.bf16 %v714, %v720
      %v727 = vmul.bf16 %v715, %v720
      %v728 = vmul.bf16 %v716, %v721
      %v729 = vmul.bf16 %v717, %v721
      %s730 = scalar_lea.vmem %s9, 1
      %v731 = vld [vmem:[%s730] ss:$8 sm:$0x3]
      %v732 = vld [vmem:[%s2] sm:$0xff]
      %v733 = vld [vmem:[%s2 + $0x8] sm:$0xff]
      %v734 = vld [vmem:[%s2 + $0x10] sm:$0xff]
      %v735 = vld [vmem:[%s2 + $0x18] sm:$0xff]
      %v736 = vld [vmem:[%s2 + $0x20] sm:$0xff]
      %v737 = vld [vmem:[%s2 + $0x28] sm:$0xff]
      %v738 = vld [vmem:[%s2 + $0x30] sm:$0xff]
      %v739 = vld [vmem:[%s2 + $0x38] sm:$0xff]
      %v740 = vld [vmem:[%s2 + $0x40] sm:$0xff]
      %v741 = vld [vmem:[%s2 + $0x48] sm:$0xff]
      %v742 = vld [vmem:[%s2 + $0x50] sm:$0xff]
      %v743 = vld [vmem:[%s2 + $0x58] sm:$0xff]
      %v744 = vld [vmem:[%s2 + $0x60] sm:$0xff]
      %v745 = vld [vmem:[%s2 + $0x68] sm:$0xff]
      %v746 = vld [vmem:[%s2 + $0x70] sm:$0xff]
      %v747 = vld [vmem:[%s2 + $0x78] sm:$0xff]
      %v748 = vld [vmem:[%s2 + $0x80] sm:$0xff]
      %v749 = vld [vmem:[%s2 + $0x88] sm:$0xff]
      %v750 = vld [vmem:[%s2 + $0x90] sm:$0xff]
      %v751 = vld [vmem:[%s2 + $0x98] sm:$0xff]
      %v752 = vld [vmem:[%s2 + $0xa0] sm:$0xff]
      %v753 = vld [vmem:[%s2 + $0xa8] sm:$0xff]
      %v754 = vld [vmem:[%s2 + $0xb0] sm:$0xff]
      %v755 = vld [vmem:[%s2 + $0xb8] sm:$0xff]
      %v756 = vld [vmem:[%s2 + $0xc0] sm:$0xff]
      %v757 = vld [vmem:[%s2 + $0xc8] sm:$0xff]
      %v758 = vld [vmem:[%s2 + $0xd0] sm:$0xff]
      %v759 = vld [vmem:[%s2 + $0xd8] sm:$0xff]
      %v760 = vld [vmem:[%s2 + $0xe0] sm:$0xff]
      %v761 = vld [vmem:[%s2 + $0xe8] sm:$0xff]
      %v762 = vld [vmem:[%s2 + $0xf0] sm:$0xff]
      %v763 = vld [vmem:[%s2 + $0xf8] sm:$0xff]
      %v765 = vlaneseq
      %v766 = vshrl.u32 %v765, 7
      %v767 = vsub.s32 0, %v766
      %v768 = vrot.slane %v731, %v767
      %v769 = vlaneseq
      %v770 = vshrl.u32 %v769, 7
      %v771 = vsub.s32 1, %v770
      %v772 = vrot.slane %v731, %v771
      %v807 = vunpack.c.l.b16 %v732
      %v808 = vunpack.c.h.b16 %v732
      %v809 = vunpack.c.l.b16 %v733
      %v810 = vunpack.c.h.b16 %v733
      %v811 = vunpack.c.l.b16 %v734
      %v812 = vunpack.c.h.b16 %v734
      %v813 = vunpack.c.l.b16 %v735
      %v814 = vunpack.c.h.b16 %v735
      %v815 = vunpack.c.l.b16 %v736
      %v816 = vunpack.c.h.b16 %v736
      %v817 = vunpack.c.l.b16 %v737
      %v818 = vunpack.c.h.b16 %v737
      %v819 = vunpack.c.l.b16 %v738
      %v820 = vunpack.c.h.b16 %v738
      %v821 = vunpack.c.l.b16 %v739
      %v822 = vunpack.c.h.b16 %v739
      %v823 = vunpack.c.l.b16 %v740
      %v824 = vunpack.c.h.b16 %v740
      %v825 = vunpack.c.l.b16 %v741
      %v826 = vunpack.c.h.b16 %v741
      %v827 = vunpack.c.l.b16 %v742
      %v828 = vunpack.c.h.b16 %v742
      %v829 = vunpack.c.l.b16 %v743
      %v830 = vunpack.c.h.b16 %v743
      %v831 = vunpack.c.l.b16 %v744
      %v832 = vunpack.c.h.b16 %v744
      %v833 = vunpack.c.l.b16 %v745
      %v834 = vunpack.c.h.b16 %v745
      %v835 = vunpack.c.l.b16 %v746
      %v836 = vunpack.c.h.b16 %v746
      %v837 = vunpack.c.l.b16 %v747
      %v838 = vunpack.c.h.b16 %v747
      %v839 = vunpack.c.l.b16 %v748
      %v840 = vunpack.c.h.b16 %v748
      %v841 = vunpack.c.l.b16 %v749
      %v842 = vunpack.c.h.b16 %v749
      %v843 = vunpack.c.l.b16 %v750
      %v844 = vunpack.c.h.b16 %v750
      %v845 = vunpack.c.l.b16 %v751
      %v846 = vunpack.c.h.b16 %v751
      %v847 = vunpack.c.l.b16 %v752
      %v848 = vunpack.c.h.b16 %v752
      %v849 = vunpack.c.l.b16 %v753
      %v850 = vunpack.c.h.b16 %v753
      %v851 = vunpack.c.l.b16 %v754
      %v852 = vunpack.c.h.b16 %v754
      %v853 = vunpack.c.l.b16 %v755
      %v854 = vunpack.c.h.b16 %v755
      %v855 = vunpack.c.l.b16 %v756
      %v856 = vunpack.c.h.b16 %v756
      %v857 = vunpack.c.l.b16 %v757
      %v858 = vunpack.c.h.b16 %v757
      %v859 = vunpack.c.l.b16 %v758
      %v860 = vunpack.c.h.b16 %v758
      %v861 = vunpack.c.l.b16 %v759
      %v862 = vunpack.c.h.b16 %v759
      %v863 = vunpack.c.l.b16 %v760
      %v864 = vunpack.c.h.b16 %v760
      %v865 = vunpack.c.l.b16 %v761
      %v866 = vunpack.c.h.b16 %v761
      %v867 = vunpack.c.l.b16 %v762
      %v868 = vunpack.c.h.b16 %v762
      %v869 = vunpack.c.l.b16 %v763
      %v870 = vunpack.c.h.b16 %v763
      %v871 = vpack.c.b16 %v809, %v807
      %v872 = vpack.c.b16 %v810, %v808
      %v873 = vpack.c.b16 %v813, %v811
      %v874 = vpack.c.b16 %v814, %v812
      %v875 = vpack.c.b16 %v817, %v815
      %v876 = vpack.c.b16 %v818, %v816
      %v877 = vpack.c.b16 %v821, %v819
      %v878 = vpack.c.b16 %v822, %v820
      %v879 = vpack.c.b16 %v825, %v823
      %v880 = vpack.c.b16 %v826, %v824
      %v881 = vpack.c.b16 %v829, %v827
      %v882 = vpack.c.b16 %v830, %v828
      %v883 = vpack.c.b16 %v833, %v831
      %v884 = vpack.c.b16 %v834, %v832
      %v885 = vpack.c.b16 %v837, %v835
      %v886 = vpack.c.b16 %v838, %v836
      %v887 = vpack.c.b16 %v841, %v839
      %v888 = vpack.c.b16 %v842, %v840
      %v889 = vpack.c.b16 %v845, %v843
      %v890 = vpack.c.b16 %v846, %v844
      %v891 = vpack.c.b16 %v849, %v847
      %v892 = vpack.c.b16 %v850, %v848
      %v893 = vpack.c.b16 %v853, %v851
      %v894 = vpack.c.b16 %v854, %v852
      %v895 = vpack.c.b16 %v857, %v855
      %v896 = vpack.c.b16 %v858, %v856
      %v897 = vpack.c.b16 %v861, %v859
      %v898 = vpack.c.b16 %v862, %v860
      %v899 = vpack.c.b16 %v865, %v863
      %v900 = vpack.c.b16 %v866, %v864
      %v901 = vpack.c.b16 %v869, %v867
      %v902 = vpack.c.b16 %v870, %v868
      %935 = vmatprep.subr.bf16.mxu0 %v872
      %936 = vmatpush1.bf16.msra.mxu0 %v871
      %937 = vmatprep.subr.bf16.mxu0 %v874
      %938 = vmatpush1.bf16.msra.mxu0 %v873
      %939 = vmatprep.subr.bf16.mxu0 %v876
      %940 = vmatpush1.bf16.msra.mxu0 %v875
      %941 = vmatprep.subr.bf16.mxu0 %v878
      %942 = vmatpush1.bf16.msra.mxu0 %v877
      %943 = vmatprep.subr.bf16.mxu0 %v880
      %944 = vmatpush1.bf16.msra.mxu0 %v879
      %945 = vmatprep.subr.bf16.mxu0 %v882
      %946 = vmatpush1.bf16.msra.mxu0 %v881
      %947 = vmatprep.subr.bf16.mxu0 %v884
      %948 = vmatpush1.bf16.msra.mxu0 %v883
      %949 = vmatprep.subr.bf16.mxu0 %v886
      %950 = vmatpush1.bf16.msra.mxu0 %v885
      %951 = vmatprep.subr.bf16.mxu0 %v888
      %952 = vmatpush1.bf16.msra.mxu0 %v887
      %953 = vmatprep.subr.bf16.mxu0 %v890
      %954 = vmatpush1.bf16.msra.mxu0 %v889
      %955 = vmatprep.subr.bf16.mxu0 %v892
      %956 = vmatpush1.bf16.msra.mxu0 %v891
      %957 = vmatprep.subr.bf16.mxu0 %v894
      %958 = vmatpush1.bf16.msra.mxu0 %v893
      %959 = vmatprep.subr.bf16.mxu0 %v896
      %960 = vmatpush1.bf16.msra.mxu0 %v895
      %961 = vmatprep.subr.bf16.mxu0 %v898
      %962 = vmatpush1.bf16.msra.mxu0 %v897
      %963 = vmatprep.subr.bf16.mxu0 %v900
      %964 = vmatpush1.bf16.msra.mxu0 %v899
      %965 = vmatprep.subr.bf16.mxu0 %v902
      %966 = vmatpush1.bf16.msra.mxu0 %v901
      %967 = vmatprep.mubr.bf16.mxu0 %v723
      %968 = vmatmul.mubr.bf16.gmra.mrb[0].mxu0 %v722
      %v969 = vpop.f32.mrb[0].mxu0
      %v970 = vadd.f32 %v768, %v969
      %v971 = vpop.f32.mrb[0].mxu0
      %v972 = vadd.f32 %v772, %v971
      %v973 = vpop.f32.mrb[0].mxu0
      %v974 = vadd.f32 %v768, %v973
      %v975 = vpop.f32.mrb[0].mxu0
      %v976 = vadd.f32 %v772, %v975
      %977 = vmatprep.mubr.bf16.mxu0 %v725
      %978 = vmatmul.mubr.bf16.gmra.mrb[0].mxu0 %v724
      %v979 = vpop.f32.mrb[0].mxu0
      %v980 = vadd.f32 %v768, %v979
      %v981 = vpop.f32.mrb[0].mxu0
      %v982 = vadd.f32 %v772, %v981
      %v983 = vpop.f32.mrb[0].mxu0
      %v984 = vadd.f32 %v768, %v983
      %v985 = vpop.f32.mrb[0].mxu0
      %v986 = vadd.f32 %v772, %v985
      %987 = vmatprep.mubr.bf16.mxu0 %v727
      %988 = vmatmul.mubr.bf16.gmra.mrb[0].mxu0 %v726
      %v989 = vpop.f32.mrb[0].mxu0
      %v990 = vadd.f32 %v768, %v989
      %v991 = vpop.f32.mrb[0].mxu0
      %v992 = vadd.f32 %v772, %v991
      %v993 = vpop.f32.mrb[0].mxu0
      %v994 = vadd.f32 %v768, %v993
      %v995 = vpop.f32.mrb[0].mxu0
      %v996 = vadd.f32 %v772, %v995
      %997 = vmatprep.mubr.bf16.mxu0 %v729
      %998 = vmatmul.mubr.bf16.gmra.mrb[0].mxu0 %v728
      %v999 = vpop.f32.mrb[0].mxu0
      %v1000 = vadd.f32 %v768, %v999
      %v1001 = vpop.f32.mrb[0].mxu0
      %v1002 = vadd.f32 %v772, %v1001
      %v1003 = vpop.f32.mrb[0].mxu0
      %v1004 = vadd.f32 %v768, %v1003
      %v1005 = vpop.f32.mrb[0].mxu0
      %v1006 = vadd.f32 %v772, %v1005
      %1007 = vdwg.mxu0
      %vm1008 = vcmp.gt.f32.partialorder %v970, 0.0
      %vm1009 = vcmp.gt.f32.partialorder %v972, 0.0
      %vm1010 = vcmp.gt.f32.partialorder %v974, 0.0
      %vm1011 = vcmp.gt.f32.partialorder %v976, 0.0
      %vm1012 = vcmp.gt.f32.partialorder %v980, 0.0
      %vm1013 = vcmp.gt.f32.partialorder %v982, 0.0
      %vm1014 = vcmp.gt.f32.partialorder %v984, 0.0
      %vm1015 = vcmp.gt.f32.partialorder %v986, 0.0
      %vm1016 = vcmp.gt.f32.partialorder %v990, 0.0
      %vm1017 = vcmp.gt.f32.partialorder %v992, 0.0
      %vm1018 = vcmp.gt.f32.partialorder %v994, 0.0
      %vm1019 = vcmp.gt.f32.partialorder %v996, 0.0
      %vm1020 = vcmp.gt.f32.partialorder %v1000, 0.0
      %vm1021 = vcmp.gt.f32.partialorder %v1002, 0.0
      %vm1022 = vcmp.gt.f32.partialorder %v1004, 0.0
      %vm1023 = vcmp.gt.f32.partialorder %v1006, 0.0
      %v1024 = vmul.f32 %v970, 1.442695
      %v1025 = vpow.pop %v1024
      %v1026 = vmul.f32 %v972, 1.442695
      %v1027 = vpow.pop %v1026
      %v1028 = vmul.f32 %v974, 1.442695
      %v1029 = vpow.pop %v1028
      %v1030 = vmul.f32 %v976, 1.442695
      %v1031 = vpow.pop %v1030
      %v1032 = vmul.f32 %v980, 1.442695
      %v1033 = vpow.pop %v1032
      %v1034 = vmul.f32 %v982, 1.442695
      %v1035 = vpow.pop %v1034
      %v1036 = vmul.f32 %v984, 1.442695
      %v1037 = vpow.pop %v1036
      %v1038 = vmul.f32 %v986, 1.442695
      %v1039 = vpow.pop %v1038
      %v1040 = vmul.f32 %v990, 1.442695
      %v1041 = vpow.pop %v1040
      %v1042 = vmul.f32 %v992, 1.442695
      %v1043 = vpow.pop %v1042
      %v1044 = vmul.f32 %v994, 1.442695
      %v1045 = vpow.pop %v1044
      %v1046 = vmul.f32 %v996, 1.442695
      %v1047 = vpow.pop %v1046
      %v1048 = vmul.f32 %v1000, 1.442695
      %v1049 = vpow.pop %v1048
      %v1050 = vmul.f32 %v1002, 1.442695
      %v1051 = vpow.pop %v1050
      %v1052 = vmul.f32 %v1004, 1.442695
      %v1053 = vpow.pop %v1052
      %v1054 = vmul.f32 %v1006, 1.442695
      %v1055 = vpow.pop %v1054
      %v1056 = vsub.f32 %v1025, 1.0
      %v1057 = vsub.f32 %v1027, 1.0
      %v1058 = vsub.f32 %v1029, 1.0
      %v1059 = vsub.f32 %v1031, 1.0
      %v1060 = vsub.f32 %v1033, 1.0
      %v1061 = vsub.f32 %v1035, 1.0
      %v1062 = vsub.f32 %v1037, 1.0
      %v1063 = vsub.f32 %v1039, 1.0
      %v1064 = vsub.f32 %v1041, 1.0
      %v1065 = vsub.f32 %v1043, 1.0
      %v1066 = vsub.f32 %v1045, 1.0
      %v1067 = vsub.f32 %v1047, 1.0
      %v1068 = vsub.f32 %v1049, 1.0
      %v1069 = vsub.f32 %v1051, 1.0
      %v1070 = vsub.f32 %v1053, 1.0
      %v1071 = vsub.f32 %v1055, 1.0
      %v1072 = vsel %vm1008, %v970, %v1056
      %v1073 = vsel %vm1009, %v972, %v1057
      %v1074 = vsel %vm1010, %v974, %v1058
      %v1075 = vsel %vm1011, %v976, %v1059
      %v1076 = vsel %vm1012, %v980, %v1060
      %v1077 = vsel %vm1013, %v982, %v1061
      %v1078 = vsel %vm1014, %v984, %v1062
      %v1079 = vsel %vm1015, %v986, %v1063
      %v1080 = vsel %vm1016, %v990, %v1064
      %v1081 = vsel %vm1017, %v992, %v1065
      %v1082 = vsel %vm1018, %v994, %v1066
      %v1083 = vsel %vm1019, %v996, %v1067
      %v1084 = vsel %vm1020, %v1000, %v1068
      %v1085 = vsel %vm1021, %v1002, %v1069
      %v1086 = vsel %vm1022, %v1004, %v1070
      %v1087 = vsel %vm1023, %v1006, %v1071
      %v1088 = vadd.f32 %v1072, %v1073
      %1089 = vadd.xlane.f32.xlu0 %v1088
      %v1090 = vpop.xlane.xlu0 %1089
      %v1091 = vadd.f32 %v1074, %v1075
      %1092 = vadd.xlane.f32.xlu0 %v1091
      %v1093 = vpop.xlane.xlu0 %1092
      %v1094 = vadd.f32 %v1076, %v1077
      %1095 = vadd.xlane.f32.xlu0 %v1094
      %v1096 = vpop.xlane.xlu0 %1095
      %v1097 = vadd.f32 %v1078, %v1079
      %1098 = vadd.xlane.f32.xlu0 %v1097
      %v1099 = vpop.xlane.xlu0 %1098
      %v1100 = vadd.f32 %v1080, %v1081
      %1101 = vadd.xlane.f32.xlu0 %v1100
      %v1102 = vpop.xlane.xlu0 %1101
      %v1103 = vadd.f32 %v1082, %v1083
      %1104 = vadd.xlane.f32.xlu0 %v1103
      %v1105 = vpop.xlane.xlu0 %1104
      %v1106 = vadd.f32 %v1084, %v1085
      %1107 = vadd.xlane.f32.xlu0 %v1106
      %v1108 = vpop.xlane.xlu0 %1107
      %v1109 = vadd.f32 %v1086, %v1087
      %1110 = vadd.xlane.f32.xlu0 %v1109
      %v1111 = vpop.xlane.xlu0 %1110
      %v1112 = vmul.f32 %v1090, %v621
      %v1113 = vmul.f32 %v1093, %v621
      %v1114 = vmul.f32 %v1096, %v621
      %v1115 = vmul.f32 %v1099, %v621
      %v1116 = vmul.f32 %v1102, %v621
      %v1117 = vmul.f32 %v1105, %v621
      %v1118 = vmul.f32 %v1108, %v621
      %v1119 = vmul.f32 %v1111, %v621
      %v1120 = vsub.f32 %v1072, %v1112
      %v1121 = vsub.f32 %v1073, %v1112
      %v1122 = vsub.f32 %v1074, %v1113
      %v1123 = vsub.f32 %v1075, %v1113
      %v1124 = vsub.f32 %v1076, %v1114
      %v1125 = vsub.f32 %v1077, %v1114
      %v1126 = vsub.f32 %v1078, %v1115
      %v1127 = vsub.f32 %v1079, %v1115
      %v1128 = vsub.f32 %v1080, %v1116
      %v1129 = vsub.f32 %v1081, %v1116
      %v1130 = vsub.f32 %v1082, %v1117
      %v1131 = vsub.f32 %v1083, %v1117
      %v1132 = vsub.f32 %v1084, %v1118
      %v1133 = vsub.f32 %v1085, %v1118
      %v1134 = vsub.f32 %v1086, %v1119
      %v1135 = vsub.f32 %v1087, %v1119
      %v1136 = vmul.f32 %v1120, %v1120
      %v1137 = vmul.f32 %v1121, %v1121
      %v1138 = vmul.f32 %v1122, %v1122
      %v1139 = vmul.f32 %v1123, %v1123
      %v1140 = vmul.f32 %v1124, %v1124
      %v1141 = vmul.f32 %v1125, %v1125
      %v1142 = vmul.f32 %v1126, %v1126
      %v1143 = vmul.f32 %v1127, %v1127
      %v1144 = vmul.f32 %v1128, %v1128
      %v1145 = vmul.f32 %v1129, %v1129
      %v1146 = vmul.f32 %v1130, %v1130
      %v1147 = vmul.f32 %v1131, %v1131
      %v1148 = vmul.f32 %v1132, %v1132
      %v1149 = vmul.f32 %v1133, %v1133
      %v1150 = vmul.f32 %v1134, %v1134
      %v1151 = vmul.f32 %v1135, %v1135
      %v1152 = vadd.f32 %v1136, %v1137
      %1153 = vadd.xlane.f32.xlu0 %v1152
      %v1154 = vpop.xlane.xlu0 %1153
      %v1155 = vadd.f32 %v1138, %v1139
      %1156 = vadd.xlane.f32.xlu0 %v1155
      %v1157 = vpop.xlane.xlu0 %1156
      %v1158 = vadd.f32 %v1140, %v1141
      %1159 = vadd.xlane.f32.xlu0 %v1158
      %v1160 = vpop.xlane.xlu0 %1159
      %v1161 = vadd.f32 %v1142, %v1143
      %1162 = vadd.xlane.f32.xlu0 %v1161
      %v1163 = vpop.xlane.xlu0 %1162
      %v1164 = vadd.f32 %v1144, %v1145
      %1165 = vadd.xlane.f32.xlu0 %v1164
      %v1166 = vpop.xlane.xlu0 %1165
      %v1167 = vadd.f32 %v1146, %v1147
      %1168 = vadd.xlane.f32.xlu0 %v1167
      %v1169 = vpop.xlane.xlu0 %1168
      %v1170 = vadd.f32 %v1148, %v1149
      %1171 = vadd.xlane.f32.xlu0 %v1170
      %v1172 = vpop.xlane.xlu0 %1171
      %v1173 = vadd.f32 %v1150, %v1151
      %1174 = vadd.xlane.f32.xlu0 %v1173
      %v1175 = vpop.xlane.xlu0 %1174
      %v1176 = vmul.f32 %v1154, %v621
      %v1177 = vmul.f32 %v1157, %v621
      %v1178 = vmul.f32 %v1160, %v621
      %v1179 = vmul.f32 %v1163, %v621
      %v1180 = vmul.f32 %v1166, %v621
      %v1181 = vmul.f32 %v1169, %v621
      %v1182 = vmul.f32 %v1172, %v621
      %v1183 = vmul.f32 %v1175, %v621
      %v1184 = vadd.f32 %v1176, 1e-05
      %v1185 = vadd.f32 %v1177, 1e-05
      %v1186 = vadd.f32 %v1178, 1e-05
      %v1187 = vadd.f32 %v1179, 1e-05
      %v1188 = vadd.f32 %v1180, 1e-05
      %v1189 = vadd.f32 %v1181, 1e-05
      %v1190 = vadd.f32 %v1182, 1e-05
      %v1191 = vadd.f32 %v1183, 1e-05
      %v1192 = vrsqrt.pop %v1184
      %v1193 = vrsqrt.pop %v1185
      %v1194 = vrsqrt.pop %v1186
      %v1195 = vrsqrt.pop %v1187
      %v1196 = vrsqrt.pop %v1188
      %v1197 = vrsqrt.pop %v1189
      %v1198 = vrsqrt.pop %v1190
      %v1199 = vrsqrt.pop %v1191
      %v1200 = vpack.c.bf16 %v1122, %v1120
      %v1201 = vpack.c.bf16 %v1123, %v1121
      %v1202 = vpack.c.bf16 %v1126, %v1124
      %v1203 = vpack.c.bf16 %v1127, %v1125
      %v1204 = vpack.c.bf16 %v1130, %v1128
      %v1205 = vpack.c.bf16 %v1131, %v1129
      %v1206 = vpack.c.bf16 %v1134, %v1132
      %v1207 = vpack.c.bf16 %v1135, %v1133
      %v1208 = vpack.c.bf16 %v1193, %v1192
      %v1209 = vpack.c.bf16 %v1195, %v1194
      %v1210 = vpack.c.bf16 %v1197, %v1196
      %v1211 = vpack.c.bf16 %v1199, %v1198
      %v1212 = vmul.bf16 %v1200, %v1208
      %v1213 = vmul.bf16 %v1201, %v1208
      %v1214 = vmul.bf16 %v1202, %v1209
      %v1215 = vmul.bf16 %v1203, %v1209
      %v1216 = vmul.bf16 %v1204, %v1210
      %v1217 = vmul.bf16 %v1205, %v1210
      %v1218 = vmul.bf16 %v1206, %v1211
      %v1219 = vmul.bf16 %v1207, %v1211
      %s1220 = scalar_lea.vmem %s9, 2
      %v1221 = vld [vmem:[%s1220] ss:$8 sm:$0x3]
      %v1222 = vld [vmem:[%s3] sm:$0xff]
      %v1223 = vld [vmem:[%s3 + $0x8] sm:$0xff]
      %v1224 = vld [vmem:[%s3 + $0x10] sm:$0xff]
      %v1225 = vld [vmem:[%s3 + $0x18] sm:$0xff]
      %v1226 = vld [vmem:[%s3 + $0x20] sm:$0xff]
      %v1227 = vld [vmem:[%s3 + $0x28] sm:$0xff]
      %v1228 = vld [vmem:[%s3 + $0x30] sm:$0xff]
      %v1229 = vld [vmem:[%s3 + $0x38] sm:$0xff]
      %v1230 = vld [vmem:[%s3 + $0x40] sm:$0xff]
      %v1231 = vld [vmem:[%s3 + $0x48] sm:$0xff]
      %v1232 = vld [vmem:[%s3 + $0x50] sm:$0xff]
      %v1233 = vld [vmem:[%s3 + $0x58] sm:$0xff]
      %v1234 = vld [vmem:[%s3 + $0x60] sm:$0xff]
      %v1235 = vld [vmem:[%s3 + $0x68] sm:$0xff]
      %v1236 = vld [vmem:[%s3 + $0x70] sm:$0xff]
      %v1237 = vld [vmem:[%s3 + $0x78] sm:$0xff]
      %v1238 = vld [vmem:[%s3 + $0x80] sm:$0xff]
      %v1239 = vld [vmem:[%s3 + $0x88] sm:$0xff]
      %v1240 = vld [vmem:[%s3 + $0x90] sm:$0xff]
      %v1241 = vld [vmem:[%s3 + $0x98] sm:$0xff]
      %v1242 = vld [vmem:[%s3 + $0xa0] sm:$0xff]
      %v1243 = vld [vmem:[%s3 + $0xa8] sm:$0xff]
      %v1244 = vld [vmem:[%s3 + $0xb0] sm:$0xff]
      %v1245 = vld [vmem:[%s3 + $0xb8] sm:$0xff]
      %v1246 = vld [vmem:[%s3 + $0xc0] sm:$0xff]
      %v1247 = vld [vmem:[%s3 + $0xc8] sm:$0xff]
      %v1248 = vld [vmem:[%s3 + $0xd0] sm:$0xff]
      %v1249 = vld [vmem:[%s3 + $0xd8] sm:$0xff]
      %v1250 = vld [vmem:[%s3 + $0xe0] sm:$0xff]
      %v1251 = vld [vmem:[%s3 + $0xe8] sm:$0xff]
      %v1252 = vld [vmem:[%s3 + $0xf0] sm:$0xff]
      %v1253 = vld [vmem:[%s3 + $0xf8] sm:$0xff]
      %v1255 = vlaneseq
      %v1256 = vshrl.u32 %v1255, 7
      %v1257 = vsub.s32 0, %v1256
      %v1258 = vrot.slane %v1221, %v1257
      %v1259 = vlaneseq
      %v1260 = vshrl.u32 %v1259, 7
      %v1261 = vsub.s32 1, %v1260
      %v1262 = vrot.slane %v1221, %v1261
      %v1297 = vunpack.c.l.b16 %v1222
      %v1298 = vunpack.c.h.b16 %v1222
      %v1299 = vunpack.c.l.b16 %v1223
      %v1300 = vunpack.c.h.b16 %v1223
      %v1301 = vunpack.c.l.b16 %v1224
      %v1302 = vunpack.c.h.b16 %v1224
      %v1303 = vunpack.c.l.b16 %v1225
      %v1304 = vunpack.c.h.b16 %v1225
      %v1305 = vunpack.c.l.b16 %v1226
      %v1306 = vunpack.c.h.b16 %v1226
      %v1307 = vunpack.c.l.b16 %v1227
      %v1308 = vunpack.c.h.b16 %v1227
      %v1309 = vunpack.c.l.b16 %v1228
      %v1310 = vunpack.c.h.b16 %v1228
      %v1311 = vunpack.c.l.b16 %v1229
      %v1312 = vunpack.c.h.b16 %v1229
      %v1313 = vunpack.c.l.b16 %v1230
      %v1314 = vunpack.c.h.b16 %v1230
      %v1315 = vunpack.c.l.b16 %v1231
      %v1316 = vunpack.c.h.b16 %v1231
      %v1317 = vunpack.c.l.b16 %v1232
      %v1318 = vunpack.c.h.b16 %v1232
      %v1319 = vunpack.c.l.b16 %v1233
      %v1320 = vunpack.c.h.b16 %v1233
      %v1321 = vunpack.c.l.b16 %v1234
      %v1322 = vunpack.c.h.b16 %v1234
      %v1323 = vunpack.c.l.b16 %v1235
      %v1324 = vunpack.c.h.b16 %v1235
      %v1325 = vunpack.c.l.b16 %v1236
      %v1326 = vunpack.c.h.b16 %v1236
      %v1327 = vunpack.c.l.b16 %v1237
      %v1328 = vunpack.c.h.b16 %v1237
      %v1329 = vunpack.c.l.b16 %v1238
      %v1330 = vunpack.c.h.b16 %v1238
      %v1331 = vunpack.c.l.b16 %v1239
      %v1332 = vunpack.c.h.b16 %v1239
      %v1333 = vunpack.c.l.b16 %v1240
      %v1334 = vunpack.c.h.b16 %v1240
      %v1335 = vunpack.c.l.b16 %v1241
      %v1336 = vunpack.c.h.b16 %v1241
      %v1337 = vunpack.c.l.b16 %v1242
      %v1338 = vunpack.c.h.b16 %v1242
      %v1339 = vunpack.c.l.b16 %v1243
      %v1340 = vunpack.c.h.b16 %v1243
      %v1341 = vunpack.c.l.b16 %v1244
      %v1342 = vunpack.c.h.b16 %v1244
      %v1343 = vunpack.c.l.b16 %v1245
      %v1344 = vunpack.c.h.b16 %v1245
      %v1345 = vunpack.c.l.b16 %v1246
      %v1346 = vunpack.c.h.b16 %v1246
      %v1347 = vunpack.c.l.b16 %v1247
      %v1348 = vunpack.c.h.b16 %v1247
      %v1349 = vunpack.c.l.b16 %v1248
      %v1350 = vunpack.c.h.b16 %v1248
      %v1351 = vunpack.c.l.b16 %v1249
      %v1352 = vunpack.c.h.b16 %v1249
      %v1353 = vunpack.c.l.b16 %v1250
      %v1354 = vunpack.c.h.b16 %v1250
      %v1355 = vunpack.c.l.b16 %v1251
      %v1356 = vunpack.c.h.b16 %v1251
      %v1357 = vunpack.c.l.b16 %v1252
      %v1358 = vunpack.c.h.b16 %v1252
      %v1359 = vunpack.c.l.b16 %v1253
      %v1360 = vunpack.c.h.b16 %v1253
      %v1361 = vpack.c.b16 %v1299, %v1297
      %v1362 = vpack.c.b16 %v1300, %v1298
      %v1363 = vpack.c.b16 %v1303, %v1301
      %v1364 = vpack.c.b16 %v1304, %v1302
      %v1365 = vpack.c.b16 %v1307, %v1305
      %v1366 = vpack.c.b16 %v1308, %v1306
      %v1367 = vpack.c.b16 %v1311, %v1309
      %v1368 = vpack.c.b16 %v1312, %v1310
      %v1369 = vpack.c.b16 %v1315, %v1313
      %v1370 = vpack.c.b16 %v1316, %v1314
      %v1371 = vpack.c.b16 %v1319, %v1317
      %v1372 = vpack.c.b16 %v1320, %v1318
      %v1373 = vpack.c.b16 %v1323, %v1321
      %v1374 = vpack.c.b16 %v1324, %v1322
      %v1375 = vpack.c.b16 %v1327, %v1325
      %v1376 = vpack.c.b16 %v1328, %v1326
      %v1377 = vpack.c.b16 %v1331, %v1329
      %v1378 = vpack.c.b16 %v1332, %v1330
      %v1379 = vpack.c.b16 %v1335, %v1333
      %v1380 = vpack.c.b16 %v1336, %v1334
      %v1381 = vpack.c.b16 %v1339, %v1337
      %v1382 = vpack.c.b16 %v1340, %v1338
      %v1383 = vpack.c.b16 %v1343, %v1341
      %v1384 = vpack.c.b16 %v1344, %v1342
      %v1385 = vpack.c.b16 %v1347, %v1345
      %v1386 = vpack.c.b16 %v1348, %v1346
      %v1387 = vpack.c.b16 %v1351, %v1349
      %v1388 = vpack.c.b16 %v1352, %v1350
      %v1389 = vpack.c.b16 %v1355, %v1353
      %v1390 = vpack.c.b16 %v1356, %v1354
      %v1391 = vpack.c.b16 %v1359, %v1357
      %v1392 = vpack.c.b16 %v1360, %v1358
      %1425 = vmatprep.subr.bf16.mxu0 %v1362
      %1426 = vmatpush1.bf16.msra.mxu0 %v1361
      %1427 = vmatprep.subr.bf16.mxu0 %v1364
      %1428 = vmatpush1.bf16.msra.mxu0 %v1363
      %1429 = vmatprep.subr.bf16.mxu0 %v1366
      %1430 = vmatpush1.bf16.msra.mxu0 %v1365
      %1431 = vmatprep.subr.bf16.mxu0 %v1368
      %1432 = vmatpush1.bf16.msra.mxu0 %v1367
      %1433 = vmatprep.subr.bf16.mxu0 %v1370
      %1434 = vmatpush1.bf16.msra.mxu0 %v1369
      %1435 = vmatprep.subr.bf16.mxu0 %v1372
      %1436 = vmatpush1.bf16.msra.mxu0 %v1371
      %1437 = vmatprep.subr.bf16.mxu0 %v1374
      %1438 = vmatpush1.bf16.msra.mxu0 %v1373
      %1439 = vmatprep.subr.bf16.mxu0 %v1376
      %1440 = vmatpush1.bf16.msra.mxu0 %v1375
      %1441 = vmatprep.subr.bf16.mxu0 %v1378
      %1442 = vmatpush1.bf16.msra.mxu0 %v1377
      %1443 = vmatprep.subr.bf16.mxu0 %v1380
      %1444 = vmatpush1.bf16.msra.mxu0 %v1379
      %1445 = vmatprep.subr.bf16.mxu0 %v1382
      %1446 = vmatpush1.bf16.msra.mxu0 %v1381
      %1447 = vmatprep.subr.bf16.mxu0 %v1384
      %1448 = vmatpush1.bf16.msra.mxu0 %v1383
      %1449 = vmatprep.subr.bf16.mxu0 %v1386
      %1450 = vmatpush1.bf16.msra.mxu0 %v1385
      %1451 = vmatprep.subr.bf16.mxu0 %v1388
      %1452 = vmatpush1.bf16.msra.mxu0 %v1387
      %1453 = vmatprep.subr.bf16.mxu0 %v1390
      %1454 = vmatpush1.bf16.msra.mxu0 %v1389
      %1455 = vmatprep.subr.bf16.mxu0 %v1392
      %1456 = vmatpush1.bf16.msra.mxu0 %v1391
      %1457 = vmatprep.mubr.bf16.mxu0 %v1213
      %1458 = vmatmul.mubr.bf16.gmra.mrb[0].mxu0 %v1212
      %v1459 = vpop.f32.mrb[0].mxu0
      %v1460 = vadd.f32 %v1258, %v1459
      %v1461 = vpop.f32.mrb[0].mxu0
      %v1462 = vadd.f32 %v1262, %v1461
      %v1463 = vpop.f32.mrb[0].mxu0
      %v1464 = vadd.f32 %v1258, %v1463
      %v1465 = vpop.f32.mrb[0].mxu0
      %v1466 = vadd.f32 %v1262, %v1465
      %1467 = vmatprep.mubr.bf16.mxu0 %v1215
      %1468 = vmatmul.mubr.bf16.gmra.mrb[0].mxu0 %v1214
      %v1469 = vpop.f32.mrb[0].mxu0
      %v1470 = vadd.f32 %v1258, %v1469
      %v1471 = vpop.f32.mrb[0].mxu0
      %v1472 = vadd.f32 %v1262, %v1471
      %v1473 = vpop.f32.mrb[0].mxu0
      %v1474 = vadd.f32 %v1258, %v1473
      %v1475 = vpop.f32.mrb[0].mxu0
      %v1476 = vadd.f32 %v1262, %v1475
      %1477 = vmatprep.mubr.bf16.mxu0 %v1217
      %1478 = vmatmul.mubr.bf16.gmra.mrb[0].mxu0 %v1216
      %v1479 = vpop.f32.mrb[0].mxu0
      %v1480 = vadd.f32 %v1258, %v1479
      %v1481 = vpop.f32.mrb[0].mxu0
      %v1482 = vadd.f32 %v1262, %v1481
      %v1483 = vpop.f32.mrb[0].mxu0
      %v1484 = vadd.f32 %v1258, %v1483
      %v1485 = vpop.f32.mrb[0].mxu0
      %v1486 = vadd.f32 %v1262, %v1485
      %1487 = vmatprep.mubr.bf16.mxu0 %v1219
      %1488 = vmatmul.mubr.bf16.gmra.mrb[0].mxu0 %v1218
      %v1489 = vpop.f32.mrb[0].mxu0
      %v1490 = vadd.f32 %v1258, %v1489
      %v1491 = vpop.f32.mrb[0].mxu0
      %v1492 = vadd.f32 %v1262, %v1491
      %v1493 = vpop.f32.mrb[0].mxu0
      %v1494 = vadd.f32 %v1258, %v1493
      %v1495 = vpop.f32.mrb[0].mxu0
      %v1496 = vadd.f32 %v1262, %v1495
      %1497 = vdwg.mxu0
      %vm1498 = vcmp.gt.f32.partialorder %v1460, 0.0
      %vm1499 = vcmp.gt.f32.partialorder %v1462, 0.0
      %vm1500 = vcmp.gt.f32.partialorder %v1464, 0.0
      %vm1501 = vcmp.gt.f32.partialorder %v1466, 0.0
      %vm1502 = vcmp.gt.f32.partialorder %v1470, 0.0
      %vm1503 = vcmp.gt.f32.partialorder %v1472, 0.0
      %vm1504 = vcmp.gt.f32.partialorder %v1474, 0.0
      %vm1505 = vcmp.gt.f32.partialorder %v1476, 0.0
      %vm1506 = vcmp.gt.f32.partialorder %v1480, 0.0
      %vm1507 = vcmp.gt.f32.partialorder %v1482, 0.0
      %vm1508 = vcmp.gt.f32.partialorder %v1484, 0.0
      %vm1509 = vcmp.gt.f32.partialorder %v1486, 0.0
      %vm1510 = vcmp.gt.f32.partialorder %v1490, 0.0
      %vm1511 = vcmp.gt.f32.partialorder %v1492, 0.0
      %vm1512 = vcmp.gt.f32.partialorder %v1494, 0.0
      %vm1513 = vcmp.gt.f32.partialorder %v1496, 0.0
      %v1514 = vmul.f32 %v1460, 1.442695
      %v1515 = vpow.pop %v1514
      %v1516 = vmul.f32 %v1462, 1.442695
      %v1517 = vpow.pop %v1516
      %v1518 = vmul.f32 %v1464, 1.442695
      %v1519 = vpow.pop %v1518
      %v1520 = vmul.f32 %v1466, 1.442695
      %v1521 = vpow.pop %v1520
      %v1522 = vmul.f32 %v1470, 1.442695
      %v1523 = vpow.pop %v1522
      %v1524 = vmul.f32 %v1472, 1.442695
      %v1525 = vpow.pop %v1524
      %v1526 = vmul.f32 %v1474, 1.442695
      %v1527 = vpow.pop %v1526
      %v1528 = vmul.f32 %v1476, 1.442695
      %v1529 = vpow.pop %v1528
      %v1530 = vmul.f32 %v1480, 1.442695
      %v1531 = vpow.pop %v1530
      %v1532 = vmul.f32 %v1482, 1.442695
      %v1533 = vpow.pop %v1532
      %v1534 = vmul.f32 %v1484, 1.442695
      %v1535 = vpow.pop %v1534
      %v1536 = vmul.f32 %v1486, 1.442695
      %v1537 = vpow.pop %v1536
      %v1538 = vmul.f32 %v1490, 1.442695
      %v1539 = vpow.pop %v1538
      %v1540 = vmul.f32 %v1492, 1.442695
      %v1541 = vpow.pop %v1540
      %v1542 = vmul.f32 %v1494, 1.442695
      %v1543 = vpow.pop %v1542
      %v1544 = vmul.f32 %v1496, 1.442695
      %v1545 = vpow.pop %v1544
      %v1546 = vsub.f32 %v1515, 1.0
      %v1547 = vsub.f32 %v1517, 1.0
      %v1548 = vsub.f32 %v1519, 1.0
      %v1549 = vsub.f32 %v1521, 1.0
      %v1550 = vsub.f32 %v1523, 1.0
      %v1551 = vsub.f32 %v1525, 1.0
      %v1552 = vsub.f32 %v1527, 1.0
      %v1553 = vsub.f32 %v1529, 1.0
      %v1554 = vsub.f32 %v1531, 1.0
      %v1555 = vsub.f32 %v1533, 1.0
      %v1556 = vsub.f32 %v1535, 1.0
      %v1557 = vsub.f32 %v1537, 1.0
      %v1558 = vsub.f32 %v1539, 1.0
      %v1559 = vsub.f32 %v1541, 1.0
      %v1560 = vsub.f32 %v1543, 1.0
      %v1561 = vsub.f32 %v1545, 1.0
      %v1562 = vsel %vm1498, %v1460, %v1546
      %v1563 = vsel %vm1499, %v1462, %v1547
      %v1564 = vsel %vm1500, %v1464, %v1548
      %v1565 = vsel %vm1501, %v1466, %v1549
      %v1566 = vsel %vm1502, %v1470, %v1550
      %v1567 = vsel %vm1503, %v1472, %v1551
      %v1568 = vsel %vm1504, %v1474, %v1552
      %v1569 = vsel %vm1505, %v1476, %v1553
      %v1570 = vsel %vm1506, %v1480, %v1554
      %v1571 = vsel %vm1507, %v1482, %v1555
      %v1572 = vsel %vm1508, %v1484, %v1556
      %v1573 = vsel %vm1509, %v1486, %v1557
      %v1574 = vsel %vm1510, %v1490, %v1558
      %v1575 = vsel %vm1511, %v1492, %v1559
      %v1576 = vsel %vm1512, %v1494, %v1560
      %v1577 = vsel %vm1513, %v1496, %v1561
      %v1578 = vadd.f32 %v1562, %v1563
      %1579 = vadd.xlane.f32.xlu0 %v1578
      %v1580 = vpop.xlane.xlu0 %1579
      %v1581 = vadd.f32 %v1564, %v1565
      %1582 = vadd.xlane.f32.xlu0 %v1581
      %v1583 = vpop.xlane.xlu0 %1582
      %v1584 = vadd.f32 %v1566, %v1567
      %1585 = vadd.xlane.f32.xlu0 %v1584
      %v1586 = vpop.xlane.xlu0 %1585
      %v1587 = vadd.f32 %v1568, %v1569
      %1588 = vadd.xlane.f32.xlu0 %v1587
      %v1589 = vpop.xlane.xlu0 %1588
      %v1590 = vadd.f32 %v1570, %v1571
      %1591 = vadd.xlane.f32.xlu0 %v1590
      %v1592 = vpop.xlane.xlu0 %1591
      %v1593 = vadd.f32 %v1572, %v1573
      %1594 = vadd.xlane.f32.xlu0 %v1593
      %v1595 = vpop.xlane.xlu0 %1594
      %v1596 = vadd.f32 %v1574, %v1575
      %1597 = vadd.xlane.f32.xlu0 %v1596
      %v1598 = vpop.xlane.xlu0 %1597
      %v1599 = vadd.f32 %v1576, %v1577
      %1600 = vadd.xlane.f32.xlu0 %v1599
      %v1601 = vpop.xlane.xlu0 %1600
      %v1602 = vmul.f32 %v1580, %v621
      %v1603 = vmul.f32 %v1583, %v621
      %v1604 = vmul.f32 %v1586, %v621
      %v1605 = vmul.f32 %v1589, %v621
      %v1606 = vmul.f32 %v1592, %v621
      %v1607 = vmul.f32 %v1595, %v621
      %v1608 = vmul.f32 %v1598, %v621
      %v1609 = vmul.f32 %v1601, %v621
      %v1610 = vsub.f32 %v1562, %v1602
      %v1611 = vsub.f32 %v1563, %v1602
      %v1612 = vsub.f32 %v1564, %v1603
      %v1613 = vsub.f32 %v1565, %v1603
      %v1614 = vsub.f32 %v1566, %v1604
      %v1615 = vsub.f32 %v1567, %v1604
      %v1616 = vsub.f32 %v1568, %v1605
      %v1617 = vsub.f32 %v1569, %v1605
      %v1618 = vsub.f32 %v1570, %v1606
      %v1619 = vsub.f32 %v1571, %v1606
      %v1620 = vsub.f32 %v1572, %v1607
      %v1621 = vsub.f32 %v1573, %v1607
      %v1622 = vsub.f32 %v1574, %v1608
      %v1623 = vsub.f32 %v1575, %v1608
      %v1624 = vsub.f32 %v1576, %v1609
      %v1625 = vsub.f32 %v1577, %v1609
      %v1626 = vmul.f32 %v1610, %v1610
      %v1627 = vmul.f32 %v1611, %v1611
      %v1628 = vmul.f32 %v1612, %v1612
      %v1629 = vmul.f32 %v1613, %v1613
      %v1630 = vmul.f32 %v1614, %v1614
      %v1631 = vmul.f32 %v1615, %v1615
      %v1632 = vmul.f32 %v1616, %v1616
      %v1633 = vmul.f32 %v1617, %v1617
      %v1634 = vmul.f32 %v1618, %v1618
      %v1635 = vmul.f32 %v1619, %v1619
      %v1636 = vmul.f32 %v1620, %v1620
      %v1637 = vmul.f32 %v1621, %v1621
      %v1638 = vmul.f32 %v1622, %v1622
      %v1639 = vmul.f32 %v1623, %v1623
      %v1640 = vmul.f32 %v1624, %v1624
      %v1641 = vmul.f32 %v1625, %v1625
      %v1642 = vadd.f32 %v1626, %v1627
      %1643 = vadd.xlane.f32.xlu0 %v1642
      %v1644 = vpop.xlane.xlu0 %1643
      %v1645 = vadd.f32 %v1628, %v1629
      %1646 = vadd.xlane.f32.xlu0 %v1645
      %v1647 = vpop.xlane.xlu0 %1646
      %v1648 = vadd.f32 %v1630, %v1631
      %1649 = vadd.xlane.f32.xlu0 %v1648
      %v1650 = vpop.xlane.xlu0 %1649
      %v1651 = vadd.f32 %v1632, %v1633
      %1652 = vadd.xlane.f32.xlu0 %v1651
      %v1653 = vpop.xlane.xlu0 %1652
      %v1654 = vadd.f32 %v1634, %v1635
      %1655 = vadd.xlane.f32.xlu0 %v1654
      %v1656 = vpop.xlane.xlu0 %1655
      %v1657 = vadd.f32 %v1636, %v1637
      %1658 = vadd.xlane.f32.xlu0 %v1657
      %v1659 = vpop.xlane.xlu0 %1658
      %v1660 = vadd.f32 %v1638, %v1639
      %1661 = vadd.xlane.f32.xlu0 %v1660
      %v1662 = vpop.xlane.xlu0 %1661
      %v1663 = vadd.f32 %v1640, %v1641
      %1664 = vadd.xlane.f32.xlu0 %v1663
      %v1665 = vpop.xlane.xlu0 %1664
      %v1666 = vmul.f32 %v1644, %v621
      %v1667 = vmul.f32 %v1647, %v621
      %v1668 = vmul.f32 %v1650, %v621
      %v1669 = vmul.f32 %v1653, %v621
      %v1670 = vmul.f32 %v1656, %v621
      %v1671 = vmul.f32 %v1659, %v621
      %v1672 = vmul.f32 %v1662, %v621
      %v1673 = vmul.f32 %v1665, %v621
      %v1674 = vadd.f32 %v1666, 1e-05
      %v1675 = vadd.f32 %v1667, 1e-05
      %v1676 = vadd.f32 %v1668, 1e-05
      %v1677 = vadd.f32 %v1669, 1e-05
      %v1678 = vadd.f32 %v1670, 1e-05
      %v1679 = vadd.f32 %v1671, 1e-05
      %v1680 = vadd.f32 %v1672, 1e-05
      %v1681 = vadd.f32 %v1673, 1e-05
      %v1682 = vrsqrt.pop %v1674
      %v1683 = vrsqrt.pop %v1675
      %v1684 = vrsqrt.pop %v1676
      %v1685 = vrsqrt.pop %v1677
      %v1686 = vrsqrt.pop %v1678
      %v1687 = vrsqrt.pop %v1679
      %v1688 = vrsqrt.pop %v1680
      %v1689 = vrsqrt.pop %v1681
      %v1690 = vpack.c.bf16 %v1612, %v1610
      %v1691 = vpack.c.bf16 %v1613, %v1611
      %v1692 = vpack.c.bf16 %v1616, %v1614
      %v1693 = vpack.c.bf16 %v1617, %v1615
      %v1694 = vpack.c.bf16 %v1620, %v1618
      %v1695 = vpack.c.bf16 %v1621, %v1619
      %v1696 = vpack.c.bf16 %v1624, %v1622
      %v1697 = vpack.c.bf16 %v1625, %v1623
      %v1698 = vpack.c.bf16 %v1683, %v1682
      %v1699 = vpack.c.bf16 %v1685, %v1684
      %v1700 = vpack.c.bf16 %v1687, %v1686
      %v1701 = vpack.c.bf16 %v1689, %v1688
      %v1702 = vmul.bf16 %v1690, %v1698
      %v1703 = vmul.bf16 %v1691, %v1698
      %v1704 = vmul.bf16 %v1692, %v1699
      %v1705 = vmul.bf16 %v1693, %v1699
      %v1706 = vmul.bf16 %v1694, %v1700
      %v1707 = vmul.bf16 %v1695, %v1700
      %v1708 = vmul.bf16 %v1696, %v1701
      %v1709 = vmul.bf16 %v1697, %v1701
      %s1710 = scalar_lea.vmem %s9, 3
      %v1711 = vld [vmem:[%s1710] ss:$8 sm:$0x3]
      %v1712 = vld [vmem:[%s4] sm:$0xff]
      %v1713 = vld [vmem:[%s4 + $0x8] sm:$0xff]
      %v1714 = vld [vmem:[%s4 + $0x10] sm:$0xff]
      %v1715 = vld [vmem:[%s4 + $0x18] sm:$0xff]
      %v1716 = vld [vmem:[%s4 + $0x20] sm:$0xff]
      %v1717 = vld [vmem:[%s4 + $0x28] sm:$0xff]
      %v1718 = vld [vmem:[%s4 + $0x30] sm:$0xff]
      %v1719 = vld [vmem:[%s4 + $0x38] sm:$0xff]
      %v1720 = vld [vmem:[%s4 + $0x40] sm:$0xff]
      %v1721 = vld [vmem:[%s4 + $0x48] sm:$0xff]
      %v1722 = vld [vmem:[%s4 + $0x50] sm:$0xff]
      %v1723 = vld [vmem:[%s4 + $0x58] sm:$0xff]
      %v1724 = vld [vmem:[%s4 + $0x60] sm:$0xff]
      %v1725 = vld [vmem:[%s4 + $0x68] sm:$0xff]
      %v1726 = vld [vmem:[%s4 + $0x70] sm:$0xff]
      %v1727 = vld [vmem:[%s4 + $0x78] sm:$0xff]
      %v1728 = vld [vmem:[%s4 + $0x80] sm:$0xff]
      %v1729 = vld [vmem:[%s4 + $0x88] sm:$0xff]
      %v1730 = vld [vmem:[%s4 + $0x90] sm:$0xff]
      %v1731 = vld [vmem:[%s4 + $0x98] sm:$0xff]
      %v1732 = vld [vmem:[%s4 + $0xa0] sm:$0xff]
      %v1733 = vld [vmem:[%s4 + $0xa8] sm:$0xff]
      %v1734 = vld [vmem:[%s4 + $0xb0] sm:$0xff]
      %v1735 = vld [vmem:[%s4 + $0xb8] sm:$0xff]
      %v1736 = vld [vmem:[%s4 + $0xc0] sm:$0xff]
      %v1737 = vld [vmem:[%s4 + $0xc8] sm:$0xff]
      %v1738 = vld [vmem:[%s4 + $0xd0] sm:$0xff]
      %v1739 = vld [vmem:[%s4 + $0xd8] sm:$0xff]
      %v1740 = vld [vmem:[%s4 + $0xe0] sm:$0xff]
      %v1741 = vld [vmem:[%s4 + $0xe8] sm:$0xff]
      %v1742 = vld [vmem:[%s4 + $0xf0] sm:$0xff]
      %v1743 = vld [vmem:[%s4 + $0xf8] sm:$0xff]
      %v1745 = vlaneseq
      %v1746 = vshrl.u32 %v1745, 7
      %v1747 = vsub.s32 0, %v1746
      %v1748 = vrot.slane %v1711, %v1747
      %v1749 = vlaneseq
      %v1750 = vshrl.u32 %v1749, 7
      %v1751 = vsub.s32 1, %v1750
      %v1752 = vrot.slane %v1711, %v1751
      %v1787 = vunpack.c.l.b16 %v1712
      %v1788 = vunpack.c.h.b16 %v1712
      %v1789 = vunpack.c.l.b16 %v1713
      %v1790 = vunpack.c.h.b16 %v1713
      %v1791 = vunpack.c.l.b16 %v1714
      %v1792 = vunpack.c.h.b16 %v1714
      %v1793 = vunpack.c.l.b16 %v1715
      %v1794 = vunpack.c.h.b16 %v1715
      %v1795 = vunpack.c.l.b16 %v1716
      %v1796 = vunpack.c.h.b16 %v1716
      %v1797 = vunpack.c.l.b16 %v1717
      %v1798 = vunpack.c.h.b16 %v1717
      %v1799 = vunpack.c.l.b16 %v1718
      %v1800 = vunpack.c.h.b16 %v1718
      %v1801 = vunpack.c.l.b16 %v1719
      %v1802 = vunpack.c.h.b16 %v1719
      %v1803 = vunpack.c.l.b16 %v1720
      %v1804 = vunpack.c.h.b16 %v1720
      %v1805 = vunpack.c.l.b16 %v1721
      %v1806 = vunpack.c.h.b16 %v1721
      %v1807 = vunpack.c.l.b16 %v1722
      %v1808 = vunpack.c.h.b16 %v1722
      %v1809 = vunpack.c.l.b16 %v1723
      %v1810 = vunpack.c.h.b16 %v1723
      %v1811 = vunpack.c.l.b16 %v1724
      %v1812 = vunpack.c.h.b16 %v1724
      %v1813 = vunpack.c.l.b16 %v1725
      %v1814 = vunpack.c.h.b16 %v1725
      %v1815 = vunpack.c.l.b16 %v1726
      %v1816 = vunpack.c.h.b16 %v1726
      %v1817 = vunpack.c.l.b16 %v1727
      %v1818 = vunpack.c.h.b16 %v1727
      %v1819 = vunpack.c.l.b16 %v1728
      %v1820 = vunpack.c.h.b16 %v1728
      %v1821 = vunpack.c.l.b16 %v1729
      %v1822 = vunpack.c.h.b16 %v1729
      %v1823 = vunpack.c.l.b16 %v1730
      %v1824 = vunpack.c.h.b16 %v1730
      %v1825 = vunpack.c.l.b16 %v1731
      %v1826 = vunpack.c.h.b16 %v1731
      %v1827 = vunpack.c.l.b16 %v1732
      %v1828 = vunpack.c.h.b16 %v1732
      %v1829 = vunpack.c.l.b16 %v1733
      %v1830 = vunpack.c.h.b16 %v1733
      %v1831 = vunpack.c.l.b16 %v1734
      %v1832 = vunpack.c.h.b16 %v1734
      %v1833 = vunpack.c.l.b16 %v1735
      %v1834 = vunpack.c.h.b16 %v1735
      %v1835 = vunpack.c.l.b16 %v1736
      %v1836 = vunpack.c.h.b16 %v1736
      %v1837 = vunpack.c.l.b16 %v1737
      %v1838 = vunpack.c.h.b16 %v1737
      %v1839 = vunpack.c.l.b16 %v1738
      %v1840 = vunpack.c.h.b16 %v1738
      %v1841 = vunpack.c.l.b16 %v1739
      %v1842 = vunpack.c.h.b16 %v1739
      %v1843 = vunpack.c.l.b16 %v1740
      %v1844 = vunpack.c.h.b16 %v1740
      %v1845 = vunpack.c.l.b16 %v1741
      %v1846 = vunpack.c.h.b16 %v1741
      %v1847 = vunpack.c.l.b16 %v1742
      %v1848 = vunpack.c.h.b16 %v1742
      %v1849 = vunpack.c.l.b16 %v1743
      %v1850 = vunpack.c.h.b16 %v1743
      %v1851 = vpack.c.b16 %v1789, %v1787
      %v1852 = vpack.c.b16 %v1790, %v1788
      %v1853 = vpack.c.b16 %v1793, %v1791
      %v1854 = vpack.c.b16 %v1794, %v1792
      %v1855 = vpack.c.b16 %v1797, %v1795
      %v1856 = vpack.c.b16 %v1798, %v1796
      %v1857 = vpack.c.b16 %v1801, %v1799
      %v1858 = vpack.c.b16 %v1802, %v1800
      %v1859 = vpack.c.b16 %v1805, %v1803
      %v1860 = vpack.c.b16 %v1806, %v1804
      %v1861 = vpack.c.b16 %v1809, %v1807
      %v1862 = vpack.c.b16 %v1810, %v1808
      %v1863 = vpack.c.b16 %v1813, %v1811
      %v1864 = vpack.c.b16 %v1814, %v1812
      %v1865 = vpack.c.b16 %v1817, %v1815
      %v1866 = vpack.c.b16 %v1818, %v1816
      %v1867 = vpack.c.b16 %v1821, %v1819
      %v1868 = vpack.c.b16 %v1822, %v1820
      %v1869 = vpack.c.b16 %v1825, %v1823
      %v1870 = vpack.c.b16 %v1826, %v1824
      %v1871 = vpack.c.b16 %v1829, %v1827
      %v1872 = vpack.c.b16 %v1830, %v1828
      %v1873 = vpack.c.b16 %v1833, %v1831
      %v1874 = vpack.c.b16 %v1834, %v1832
      %v1875 = vpack.c.b16 %v1837, %v1835
      %v1876 = vpack.c.b16 %v1838, %v1836
      %v1877 = vpack.c.b16 %v1841, %v1839
      %v1878 = vpack.c.b16 %v1842, %v1840
      %v1879 = vpack.c.b16 %v1845, %v1843
      %v1880 = vpack.c.b16 %v1846, %v1844
      %v1881 = vpack.c.b16 %v1849, %v1847
      %v1882 = vpack.c.b16 %v1850, %v1848
      %1915 = vmatprep.subr.bf16.mxu0 %v1852
      %1916 = vmatpush1.bf16.msra.mxu0 %v1851
      %1917 = vmatprep.subr.bf16.mxu0 %v1854
      %1918 = vmatpush1.bf16.msra.mxu0 %v1853
      %1919 = vmatprep.subr.bf16.mxu0 %v1856
      %1920 = vmatpush1.bf16.msra.mxu0 %v1855
      %1921 = vmatprep.subr.bf16.mxu0 %v1858
      %1922 = vmatpush1.bf16.msra.mxu0 %v1857
      %1923 = vmatprep.subr.bf16.mxu0 %v1860
      %1924 = vmatpush1.bf16.msra.mxu0 %v1859
      %1925 = vmatprep.subr.bf16.mxu0 %v1862
      %1926 = vmatpush1.bf16.msra.mxu0 %v1861
      %1927 = vmatprep.subr.bf16.mxu0 %v1864
      %1928 = vmatpush1.bf16.msra.mxu0 %v1863
      %1929 = vmatprep.subr.bf16.mxu0 %v1866
      %1930 = vmatpush1.bf16.msra.mxu0 %v1865
      %1931 = vmatprep.subr.bf16.mxu0 %v1868
      %1932 = vmatpush1.bf16.msra.mxu0 %v1867
      %1933 = vmatprep.subr.bf16.mxu0 %v1870
      %1934 = vmatpush1.bf16.msra.mxu0 %v1869
      %1935 = vmatprep.subr.bf16.mxu0 %v1872
      %1936 = vmatpush1.bf16.msra.mxu0 %v1871
      %1937 = vmatprep.subr.bf16.mxu0 %v1874
      %1938 = vmatpush1.bf16.msra.mxu0 %v1873
      %1939 = vmatprep.subr.bf16.mxu0 %v1876
      %1940 = vmatpush1.bf16.msra.mxu0 %v1875
      %1941 = vmatprep.subr.bf16.mxu0 %v1878
      %1942 = vmatpush1.bf16.msra.mxu0 %v1877
      %1943 = vmatprep.subr.bf16.mxu0 %v1880
      %1944 = vmatpush1.bf16.msra.mxu0 %v1879
      %1945 = vmatprep.subr.bf16.mxu0 %v1882
      %1946 = vmatpush1.bf16.msra.mxu0 %v1881
      %1947 = vmatprep.mubr.bf16.mxu0 %v1703
      %1948 = vmatmul.mubr.bf16.gmra.mrb[0].mxu0 %v1702
      %v1949 = vpop.f32.mrb[0].mxu0
      %v1950 = vadd.f32 %v1748, %v1949
      %v1951 = vpop.f32.mrb[0].mxu0
      %v1952 = vadd.f32 %v1752, %v1951
      %v1953 = vpop.f32.mrb[0].mxu0
      %v1954 = vadd.f32 %v1748, %v1953
      %v1955 = vpop.f32.mrb[0].mxu0
      %v1956 = vadd.f32 %v1752, %v1955
      %1957 = vmatprep.mubr.bf16.mxu0 %v1705
      %1958 = vmatmul.mubr.bf16.gmra.mrb[0].mxu0 %v1704
      %v1959 = vpop.f32.mrb[0].mxu0
      %v1960 = vadd.f32 %v1748, %v1959
      %v1961 = vpop.f32.mrb[0].mxu0
      %v1962 = vadd.f32 %v1752, %v1961
      %v1963 = vpop.f32.mrb[0].mxu0
      %v1964 = vadd.f32 %v1748, %v1963
      %v1965 = vpop.f32.mrb[0].mxu0
      %v1966 = vadd.f32 %v1752, %v1965
      %1967 = vmatprep.mubr.bf16.mxu0 %v1707
      %1968 = vmatmul.mubr.bf16.gmra.mrb[0].mxu0 %v1706
      %v1969 = vpop.f32.mrb[0].mxu0
      %v1970 = vadd.f32 %v1748, %v1969
      %v1971 = vpop.f32.mrb[0].mxu0
      %v1972 = vadd.f32 %v1752, %v1971
      %v1973 = vpop.f32.mrb[0].mxu0
      %v1974 = vadd.f32 %v1748, %v1973
      %v1975 = vpop.f32.mrb[0].mxu0
      %v1976 = vadd.f32 %v1752, %v1975
      %1977 = vmatprep.mubr.bf16.mxu0 %v1709
      %1978 = vmatmul.mubr.bf16.gmra.mrb[0].mxu0 %v1708
      %v1979 = vpop.f32.mrb[0].mxu0
      %v1980 = vadd.f32 %v1748, %v1979
      %v1981 = vpop.f32.mrb[0].mxu0
      %v1982 = vadd.f32 %v1752, %v1981
      %v1983 = vpop.f32.mrb[0].mxu0
      %v1984 = vadd.f32 %v1748, %v1983
      %v1985 = vpop.f32.mrb[0].mxu0
      %v1986 = vadd.f32 %v1752, %v1985
      %1987 = vdwg.mxu0
      %vm1988 = vcmp.gt.f32.partialorder %v1950, 0.0
      %vm1989 = vcmp.gt.f32.partialorder %v1952, 0.0
      %vm1990 = vcmp.gt.f32.partialorder %v1954, 0.0
      %vm1991 = vcmp.gt.f32.partialorder %v1956, 0.0
      %vm1992 = vcmp.gt.f32.partialorder %v1960, 0.0
      %vm1993 = vcmp.gt.f32.partialorder %v1962, 0.0
      %vm1994 = vcmp.gt.f32.partialorder %v1964, 0.0
      %vm1995 = vcmp.gt.f32.partialorder %v1966, 0.0
      %vm1996 = vcmp.gt.f32.partialorder %v1970, 0.0
      %vm1997 = vcmp.gt.f32.partialorder %v1972, 0.0
      %vm1998 = vcmp.gt.f32.partialorder %v1974, 0.0
      %vm1999 = vcmp.gt.f32.partialorder %v1976, 0.0
      %vm2000 = vcmp.gt.f32.partialorder %v1980, 0.0
      %vm2001 = vcmp.gt.f32.partialorder %v1982, 0.0
      %vm2002 = vcmp.gt.f32.partialorder %v1984, 0.0
      %vm2003 = vcmp.gt.f32.partialorder %v1986, 0.0
      %v2004 = vmul.f32 %v1950, 1.442695
      %v2005 = vpow.pop %v2004
      %v2006 = vmul.f32 %v1952, 1.442695
      %v2007 = vpow.pop %v2006
      %v2008 = vmul.f32 %v1954, 1.442695
      %v2009 = vpow.pop %v2008
      %v2010 = vmul.f32 %v1956, 1.442695
      %v2011 = vpow.pop %v2010
      %v2012 = vmul.f32 %v1960, 1.442695
      %v2013 = vpow.pop %v2012
      %v2014 = vmul.f32 %v1962, 1.442695
      %v2015 = vpow.pop %v2014
      %v2016 = vmul.f32 %v1964, 1.442695
      %v2017 = vpow.pop %v2016
      %v2018 = vmul.f32 %v1966, 1.442695
      %v2019 = vpow.pop %v2018
      %v2020 = vmul.f32 %v1970, 1.442695
      %v2021 = vpow.pop %v2020
      %v2022 = vmul.f32 %v1972, 1.442695
      %v2023 = vpow.pop %v2022
      %v2024 = vmul.f32 %v1974, 1.442695
      %v2025 = vpow.pop %v2024
      %v2026 = vmul.f32 %v1976, 1.442695
      %v2027 = vpow.pop %v2026
      %v2028 = vmul.f32 %v1980, 1.442695
      %v2029 = vpow.pop %v2028
      %v2030 = vmul.f32 %v1982, 1.442695
      %v2031 = vpow.pop %v2030
      %v2032 = vmul.f32 %v1984, 1.442695
      %v2033 = vpow.pop %v2032
      %v2034 = vmul.f32 %v1986, 1.442695
      %v2035 = vpow.pop %v2034
      %v2036 = vsub.f32 %v2005, 1.0
      %v2037 = vsub.f32 %v2007, 1.0
      %v2038 = vsub.f32 %v2009, 1.0
      %v2039 = vsub.f32 %v2011, 1.0
      %v2040 = vsub.f32 %v2013, 1.0
      %v2041 = vsub.f32 %v2015, 1.0
      %v2042 = vsub.f32 %v2017, 1.0
      %v2043 = vsub.f32 %v2019, 1.0
      %v2044 = vsub.f32 %v2021, 1.0
      %v2045 = vsub.f32 %v2023, 1.0
      %v2046 = vsub.f32 %v2025, 1.0
      %v2047 = vsub.f32 %v2027, 1.0
      %v2048 = vsub.f32 %v2029, 1.0
      %v2049 = vsub.f32 %v2031, 1.0
      %v2050 = vsub.f32 %v2033, 1.0
      %v2051 = vsub.f32 %v2035, 1.0
      %v2052 = vsel %vm1988, %v1950, %v2036
      %v2053 = vsel %vm1989, %v1952, %v2037
      %v2054 = vsel %vm1990, %v1954, %v2038
      %v2055 = vsel %vm1991, %v1956, %v2039
      %v2056 = vsel %vm1992, %v1960, %v2040
      %v2057 = vsel %vm1993, %v1962, %v2041
      %v2058 = vsel %vm1994, %v1964, %v2042
      %v2059 = vsel %vm1995, %v1966, %v2043
      %v2060 = vsel %vm1996, %v1970, %v2044
      %v2061 = vsel %vm1997, %v1972, %v2045
      %v2062 = vsel %vm1998, %v1974, %v2046
      %v2063 = vsel %vm1999, %v1976, %v2047
      %v2064 = vsel %vm2000, %v1980, %v2048
      %v2065 = vsel %vm2001, %v1982, %v2049
      %v2066 = vsel %vm2002, %v1984, %v2050
      %v2067 = vsel %vm2003, %v1986, %v2051
      %v2068 = vadd.f32 %v2052, %v2053
      %2069 = vadd.xlane.f32.xlu0 %v2068
      %v2070 = vpop.xlane.xlu0 %2069
      %v2071 = vadd.f32 %v2054, %v2055
      %2072 = vadd.xlane.f32.xlu0 %v2071
      %v2073 = vpop.xlane.xlu0 %2072
      %v2074 = vadd.f32 %v2056, %v2057
      %2075 = vadd.xlane.f32.xlu0 %v2074
      %v2076 = vpop.xlane.xlu0 %2075
      %v2077 = vadd.f32 %v2058, %v2059
      %2078 = vadd.xlane.f32.xlu0 %v2077
      %v2079 = vpop.xlane.xlu0 %2078
      %v2080 = vadd.f32 %v2060, %v2061
      %2081 = vadd.xlane.f32.xlu0 %v2080
      %v2082 = vpop.xlane.xlu0 %2081
      %v2083 = vadd.f32 %v2062, %v2063
      %2084 = vadd.xlane.f32.xlu0 %v2083
      %v2085 = vpop.xlane.xlu0 %2084
      %v2086 = vadd.f32 %v2064, %v2065
      %2087 = vadd.xlane.f32.xlu0 %v2086
      %v2088 = vpop.xlane.xlu0 %2087
      %v2089 = vadd.f32 %v2066, %v2067
      %2090 = vadd.xlane.f32.xlu0 %v2089
      %v2091 = vpop.xlane.xlu0 %2090
      %v2092 = vmul.f32 %v2070, %v621
      %v2093 = vmul.f32 %v2073, %v621
      %v2094 = vmul.f32 %v2076, %v621
      %v2095 = vmul.f32 %v2079, %v621
      %v2096 = vmul.f32 %v2082, %v621
      %v2097 = vmul.f32 %v2085, %v621
      %v2098 = vmul.f32 %v2088, %v621
      %v2099 = vmul.f32 %v2091, %v621
      %v2100 = vsub.f32 %v2052, %v2092
      %v2101 = vsub.f32 %v2053, %v2092
      %v2102 = vsub.f32 %v2054, %v2093
      %v2103 = vsub.f32 %v2055, %v2093
      %v2104 = vsub.f32 %v2056, %v2094
      %v2105 = vsub.f32 %v2057, %v2094
      %v2106 = vsub.f32 %v2058, %v2095
      %v2107 = vsub.f32 %v2059, %v2095
      %v2108 = vsub.f32 %v2060, %v2096
      %v2109 = vsub.f32 %v2061, %v2096
      %v2110 = vsub.f32 %v2062, %v2097
      %v2111 = vsub.f32 %v2063, %v2097
      %v2112 = vsub.f32 %v2064, %v2098
      %v2113 = vsub.f32 %v2065, %v2098
      %v2114 = vsub.f32 %v2066, %v2099
      %v2115 = vsub.f32 %v2067, %v2099
      %v2116 = vmul.f32 %v2100, %v2100
      %v2117 = vmul.f32 %v2101, %v2101
      %v2118 = vmul.f32 %v2102, %v2102
      %v2119 = vmul.f32 %v2103, %v2103
      %v2120 = vmul.f32 %v2104, %v2104
      %v2121 = vmul.f32 %v2105, %v2105
      %v2122 = vmul.f32 %v2106, %v2106
      %v2123 = vmul.f32 %v2107, %v2107
      %v2124 = vmul.f32 %v2108, %v2108
      %v2125 = vmul.f32 %v2109, %v2109
      %v2126 = vmul.f32 %v2110, %v2110
      %v2127 = vmul.f32 %v2111, %v2111
      %v2128 = vmul.f32 %v2112, %v2112
      %v2129 = vmul.f32 %v2113, %v2113
      %v2130 = vmul.f32 %v2114, %v2114
      %v2131 = vmul.f32 %v2115, %v2115
      %v2132 = vadd.f32 %v2116, %v2117
      %2133 = vadd.xlane.f32.xlu0 %v2132
      %v2134 = vpop.xlane.xlu0 %2133
      %v2135 = vadd.f32 %v2118, %v2119
      %2136 = vadd.xlane.f32.xlu0 %v2135
      %v2137 = vpop.xlane.xlu0 %2136
      %v2138 = vadd.f32 %v2120, %v2121
      %2139 = vadd.xlane.f32.xlu0 %v2138
      %v2140 = vpop.xlane.xlu0 %2139
      %v2141 = vadd.f32 %v2122, %v2123
      %2142 = vadd.xlane.f32.xlu0 %v2141
      %v2143 = vpop.xlane.xlu0 %2142
      %v2144 = vadd.f32 %v2124, %v2125
      %2145 = vadd.xlane.f32.xlu0 %v2144
      %v2146 = vpop.xlane.xlu0 %2145
      %v2147 = vadd.f32 %v2126, %v2127
      %2148 = vadd.xlane.f32.xlu0 %v2147
      %v2149 = vpop.xlane.xlu0 %2148
      %v2150 = vadd.f32 %v2128, %v2129
      %2151 = vadd.xlane.f32.xlu0 %v2150
      %v2152 = vpop.xlane.xlu0 %2151
      %v2153 = vadd.f32 %v2130, %v2131
      %2154 = vadd.xlane.f32.xlu0 %v2153
      %v2155 = vpop.xlane.xlu0 %2154
      %v2156 = vmul.f32 %v2134, %v621
      %v2157 = vmul.f32 %v2137, %v621
      %v2158 = vmul.f32 %v2140, %v621
      %v2159 = vmul.f32 %v2143, %v621
      %v2160 = vmul.f32 %v2146, %v621
      %v2161 = vmul.f32 %v2149, %v621
      %v2162 = vmul.f32 %v2152, %v621
      %v2163 = vmul.f32 %v2155, %v621
      %v2164 = vadd.f32 %v2156, 1e-05
      %v2165 = vadd.f32 %v2157, 1e-05
      %v2166 = vadd.f32 %v2158, 1e-05
      %v2167 = vadd.f32 %v2159, 1e-05
      %v2168 = vadd.f32 %v2160, 1e-05
      %v2169 = vadd.f32 %v2161, 1e-05
      %v2170 = vadd.f32 %v2162, 1e-05
      %v2171 = vadd.f32 %v2163, 1e-05
      %v2172 = vrsqrt.pop %v2164
      %v2173 = vrsqrt.pop %v2165
      %v2174 = vrsqrt.pop %v2166
      %v2175 = vrsqrt.pop %v2167
      %v2176 = vrsqrt.pop %v2168
      %v2177 = vrsqrt.pop %v2169
      %v2178 = vrsqrt.pop %v2170
      %v2179 = vrsqrt.pop %v2171
      %v2180 = vpack.c.bf16 %v2102, %v2100
      %v2181 = vpack.c.bf16 %v2103, %v2101
      %v2182 = vpack.c.bf16 %v2106, %v2104
      %v2183 = vpack.c.bf16 %v2107, %v2105
      %v2184 = vpack.c.bf16 %v2110, %v2108
      %v2185 = vpack.c.bf16 %v2111, %v2109
      %v2186 = vpack.c.bf16 %v2114, %v2112
      %v2187 = vpack.c.bf16 %v2115, %v2113
      %v2188 = vpack.c.bf16 %v2173, %v2172
      %v2189 = vpack.c.bf16 %v2175, %v2174
      %v2190 = vpack.c.bf16 %v2177, %v2176
      %v2191 = vpack.c.bf16 %v2179, %v2178
      %v2192 = vmul.bf16 %v2180, %v2188
      %v2193 = vmul.bf16 %v2181, %v2188
      %v2194 = vmul.bf16 %v2182, %v2189
      %v2195 = vmul.bf16 %v2183, %v2189
      %v2196 = vmul.bf16 %v2184, %v2190
      %v2197 = vmul.bf16 %v2185, %v2190
      %v2198 = vmul.bf16 %v2186, %v2191
      %v2199 = vmul.bf16 %v2187, %v2191
      %s2200 = scalar_lea.vmem %s9, 4
      %v2201 = vld [vmem:[%s2200] ss:$8 sm:$0x3]
      %v2202 = vld [vmem:[%s5] sm:$0xff]
      %v2203 = vld [vmem:[%s5 + $0x8] sm:$0xff]
      %v2204 = vld [vmem:[%s5 + $0x10] sm:$0xff]
      %v2205 = vld [vmem:[%s5 + $0x18] sm:$0xff]
      %v2206 = vld [vmem:[%s5 + $0x20] sm:$0xff]
      %v2207 = vld [vmem:[%s5 + $0x28] sm:$0xff]
      %v2208 = vld [vmem:[%s5 + $0x30] sm:$0xff]
      %v2209 = vld [vmem:[%s5 + $0x38] sm:$0xff]
      %v2210 = vld [vmem:[%s5 + $0x40] sm:$0xff]
      %v2211 = vld [vmem:[%s5 + $0x48] sm:$0xff]
      %v2212 = vld [vmem:[%s5 + $0x50] sm:$0xff]
      %v2213 = vld [vmem:[%s5 + $0x58] sm:$0xff]
      %v2214 = vld [vmem:[%s5 + $0x60] sm:$0xff]
      %v2215 = vld [vmem:[%s5 + $0x68] sm:$0xff]
      %v2216 = vld [vmem:[%s5 + $0x70] sm:$0xff]
      %v2217 = vld [vmem:[%s5 + $0x78] sm:$0xff]
      %v2218 = vld [vmem:[%s5 + $0x80] sm:$0xff]
      %v2219 = vld [vmem:[%s5 + $0x88] sm:$0xff]
      %v2220 = vld [vmem:[%s5 + $0x90] sm:$0xff]
      %v2221 = vld [vmem:[%s5 + $0x98] sm:$0xff]
      %v2222 = vld [vmem:[%s5 + $0xa0] sm:$0xff]
      %v2223 = vld [vmem:[%s5 + $0xa8] sm:$0xff]
      %v2224 = vld [vmem:[%s5 + $0xb0] sm:$0xff]
      %v2225 = vld [vmem:[%s5 + $0xb8] sm:$0xff]
      %v2226 = vld [vmem:[%s5 + $0xc0] sm:$0xff]
      %v2227 = vld [vmem:[%s5 + $0xc8] sm:$0xff]
      %v2228 = vld [vmem:[%s5 + $0xd0] sm:$0xff]
      %v2229 = vld [vmem:[%s5 + $0xd8] sm:$0xff]
      %v2230 = vld [vmem:[%s5 + $0xe0] sm:$0xff]
      %v2231 = vld [vmem:[%s5 + $0xe8] sm:$0xff]
      %v2232 = vld [vmem:[%s5 + $0xf0] sm:$0xff]
      %v2233 = vld [vmem:[%s5 + $0xf8] sm:$0xff]
      %v2235 = vlaneseq
      %v2236 = vshrl.u32 %v2235, 7
      %v2237 = vsub.s32 0, %v2236
      %v2238 = vrot.slane %v2201, %v2237
      %v2239 = vlaneseq
      %v2240 = vshrl.u32 %v2239, 7
      %v2241 = vsub.s32 1, %v2240
      %v2242 = vrot.slane %v2201, %v2241
      %v2277 = vunpack.c.l.b16 %v2202
      %v2278 = vunpack.c.h.b16 %v2202
      %v2279 = vunpack.c.l.b16 %v2203
      %v2280 = vunpack.c.h.b16 %v2203
      %v2281 = vunpack.c.l.b16 %v2204
      %v2282 = vunpack.c.h.b16 %v2204
      %v2283 = vunpack.c.l.b16 %v2205
      %v2284 = vunpack.c.h.b16 %v2205
      %v2285 = vunpack.c.l.b16 %v2206
      %v2286 = vunpack.c.h.b16 %v2206
      %v2287 = vunpack.c.l.b16 %v2207
      %v2288 = vunpack.c.h.b16 %v2207
      %v2289 = vunpack.c.l.b16 %v2208
      %v2290 = vunpack.c.h.b16 %v2208
      %v2291 = vunpack.c.l.b16 %v2209
      %v2292 = vunpack.c.h.b16 %v2209
      %v2293 = vunpack.c.l.b16 %v2210
      %v2294 = vunpack.c.h.b16 %v2210
      %v2295 = vunpack.c.l.b16 %v2211
      %v2296 = vunpack.c.h.b16 %v2211
      %v2297 = vunpack.c.l.b16 %v2212
      %v2298 = vunpack.c.h.b16 %v2212
      %v2299 = vunpack.c.l.b16 %v2213
      %v2300 = vunpack.c.h.b16 %v2213
      %v2301 = vunpack.c.l.b16 %v2214
      %v2302 = vunpack.c.h.b16 %v2214
      %v2303 = vunpack.c.l.b16 %v2215
      %v2304 = vunpack.c.h.b16 %v2215
      %v2305 = vunpack.c.l.b16 %v2216
      %v2306 = vunpack.c.h.b16 %v2216
      %v2307 = vunpack.c.l.b16 %v2217
      %v2308 = vunpack.c.h.b16 %v2217
      %v2309 = vunpack.c.l.b16 %v2218
      %v2310 = vunpack.c.h.b16 %v2218
      %v2311 = vunpack.c.l.b16 %v2219
      %v2312 = vunpack.c.h.b16 %v2219
      %v2313 = vunpack.c.l.b16 %v2220
      %v2314 = vunpack.c.h.b16 %v2220
      %v2315 = vunpack.c.l.b16 %v2221
      %v2316 = vunpack.c.h.b16 %v2221
      %v2317 = vunpack.c.l.b16 %v2222
      %v2318 = vunpack.c.h.b16 %v2222
      %v2319 = vunpack.c.l.b16 %v2223
      %v2320 = vunpack.c.h.b16 %v2223
      %v2321 = vunpack.c.l.b16 %v2224
      %v2322 = vunpack.c.h.b16 %v2224
      %v2323 = vunpack.c.l.b16 %v2225
      %v2324 = vunpack.c.h.b16 %v2225
      %v2325 = vunpack.c.l.b16 %v2226
      %v2326 = vunpack.c.h.b16 %v2226
      %v2327 = vunpack.c.l.b16 %v2227
      %v2328 = vunpack.c.h.b16 %v2227
      %v2329 = vunpack.c.l.b16 %v2228
      %v2330 = vunpack.c.h.b16 %v2228
      %v2331 = vunpack.c.l.b16 %v2229
      %v2332 = vunpack.c.h.b16 %v2229
      %v2333 = vunpack.c.l.b16 %v2230
      %v2334 = vunpack.c.h.b16 %v2230
      %v2335 = vunpack.c.l.b16 %v2231
      %v2336 = vunpack.c.h.b16 %v2231
      %v2337 = vunpack.c.l.b16 %v2232
      %v2338 = vunpack.c.h.b16 %v2232
      %v2339 = vunpack.c.l.b16 %v2233
      %v2340 = vunpack.c.h.b16 %v2233
      %v2341 = vpack.c.b16 %v2279, %v2277
      %v2342 = vpack.c.b16 %v2280, %v2278
      %v2343 = vpack.c.b16 %v2283, %v2281
      %v2344 = vpack.c.b16 %v2284, %v2282
      %v2345 = vpack.c.b16 %v2287, %v2285
      %v2346 = vpack.c.b16 %v2288, %v2286
      %v2347 = vpack.c.b16 %v2291, %v2289
      %v2348 = vpack.c.b16 %v2292, %v2290
      %v2349 = vpack.c.b16 %v2295, %v2293
      %v2350 = vpack.c.b16 %v2296, %v2294
      %v2351 = vpack.c.b16 %v2299, %v2297
      %v2352 = vpack.c.b16 %v2300, %v2298
      %v2353 = vpack.c.b16 %v2303, %v2301
      %v2354 = vpack.c.b16 %v2304, %v2302
      %v2355 = vpack.c.b16 %v2307, %v2305
      %v2356 = vpack.c.b16 %v2308, %v2306
      %v2357 = vpack.c.b16 %v2311, %v2309
      %v2358 = vpack.c.b16 %v2312, %v2310
      %v2359 = vpack.c.b16 %v2315, %v2313
      %v2360 = vpack.c.b16 %v2316, %v2314
      %v2361 = vpack.c.b16 %v2319, %v2317
      %v2362 = vpack.c.b16 %v2320, %v2318
      %v2363 = vpack.c.b16 %v2323, %v2321
      %v2364 = vpack.c.b16 %v2324, %v2322
      %v2365 = vpack.c.b16 %v2327, %v2325
      %v2366 = vpack.c.b16 %v2328, %v2326
      %v2367 = vpack.c.b16 %v2331, %v2329
      %v2368 = vpack.c.b16 %v2332, %v2330
      %v2369 = vpack.c.b16 %v2335, %v2333
      %v2370 = vpack.c.b16 %v2336, %v2334
      %v2371 = vpack.c.b16 %v2339, %v2337
      %v2372 = vpack.c.b16 %v2340, %v2338
      %2405 = vmatprep.subr.bf16.mxu0 %v2342
      %2406 = vmatpush1.bf16.msra.mxu0 %v2341
      %2407 = vmatprep.subr.bf16.mxu0 %v2344
      %2408 = vmatpush1.bf16.msra.mxu0 %v2343
      %2409 = vmatprep.subr.bf16.mxu0 %v2346
      %2410 = vmatpush1.bf16.msra.mxu0 %v2345
      %2411 = vmatprep.subr.bf16.mxu0 %v2348
      %2412 = vmatpush1.bf16.msra.mxu0 %v2347
      %2413 = vmatprep.subr.bf16.mxu0 %v2350
      %2414 = vmatpush1.bf16.msra.mxu0 %v2349
      %2415 = vmatprep.subr.bf16.mxu0 %v2352
      %2416 = vmatpush1.bf16.msra.mxu0 %v2351
      %2417 = vmatprep.subr.bf16.mxu0 %v2354
      %2418 = vmatpush1.bf16.msra.mxu0 %v2353
      %2419 = vmatprep.subr.bf16.mxu0 %v2356
      %2420 = vmatpush1.bf16.msra.mxu0 %v2355
      %2421 = vmatprep.subr.bf16.mxu0 %v2358
      %2422 = vmatpush1.bf16.msra.mxu0 %v2357
      %2423 = vmatprep.subr.bf16.mxu0 %v2360
      %2424 = vmatpush1.bf16.msra.mxu0 %v2359
      %2425 = vmatprep.subr.bf16.mxu0 %v2362
      %2426 = vmatpush1.bf16.msra.mxu0 %v2361
      %2427 = vmatprep.subr.bf16.mxu0 %v2364
      %2428 = vmatpush1.bf16.msra.mxu0 %v2363
      %2429 = vmatprep.subr.bf16.mxu0 %v2366
      %2430 = vmatpush1.bf16.msra.mxu0 %v2365
      %2431 = vmatprep.subr.bf16.mxu0 %v2368
      %2432 = vmatpush1.bf16.msra.mxu0 %v2367
      %2433 = vmatprep.subr.bf16.mxu0 %v2370
      %2434 = vmatpush1.bf16.msra.mxu0 %v2369
      %2435 = vmatprep.subr.bf16.mxu0 %v2372
      %2436 = vmatpush1.bf16.msra.mxu0 %v2371
      %2437 = vmatprep.mubr.bf16.mxu0 %v2193
      %2438 = vmatmul.mubr.bf16.gmra.mrb[0].mxu0 %v2192
      %v2439 = vpop.f32.mrb[0].mxu0
      %v2440 = vadd.f32 %v2238, %v2439
      %v2441 = vpop.f32.mrb[0].mxu0
      %v2442 = vadd.f32 %v2242, %v2441
      %v2443 = vpop.f32.mrb[0].mxu0
      %v2444 = vadd.f32 %v2238, %v2443
      %v2445 = vpop.f32.mrb[0].mxu0
      %v2446 = vadd.f32 %v2242, %v2445
      %2447 = vmatprep.mubr.bf16.mxu0 %v2195
      %2448 = vmatmul.mubr.bf16.gmra.mrb[0].mxu0 %v2194
      %v2449 = vpop.f32.mrb[0].mxu0
      %v2450 = vadd.f32 %v2238, %v2449
      %v2451 = vpop.f32.mrb[0].mxu0
      %v2452 = vadd.f32 %v2242, %v2451
      %v2453 = vpop.f32.mrb[0].mxu0
      %v2454 = vadd.f32 %v2238, %v2453
      %v2455 = vpop.f32.mrb[0].mxu0
      %v2456 = vadd.f32 %v2242, %v2455
      %2457 = vmatprep.mubr.bf16.mxu0 %v2197
      %2458 = vmatmul.mubr.bf16.gmra.mrb[0].mxu0 %v2196
      %v2459 = vpop.f32.mrb[0].mxu0
      %v2460 = vadd.f32 %v2238, %v2459
      %v2461 = vpop.f32.mrb[0].mxu0
      %v2462 = vadd.f32 %v2242, %v2461
      %v2463 = vpop.f32.mrb[0].mxu0
      %v2464 = vadd.f32 %v2238, %v2463
      %v2465 = vpop.f32.mrb[0].mxu0
      %v2466 = vadd.f32 %v2242, %v2465
      %2467 = vmatprep.mubr.bf16.mxu0 %v2199
      %2468 = vmatmul.mubr.bf16.gmra.mrb[0].mxu0 %v2198
      %v2469 = vpop.f32.mrb[0].mxu0
      %v2470 = vadd.f32 %v2238, %v2469
      %v2471 = vpop.f32.mrb[0].mxu0
      %v2472 = vadd.f32 %v2242, %v2471
      %v2473 = vpop.f32.mrb[0].mxu0
      %v2474 = vadd.f32 %v2238, %v2473
      %v2475 = vpop.f32.mrb[0].mxu0
      %v2476 = vadd.f32 %v2242, %v2475
      %2477 = vdwg.mxu0
      %vm2478 = vcmp.gt.f32.partialorder %v2440, 0.0
      %vm2479 = vcmp.gt.f32.partialorder %v2442, 0.0
      %vm2480 = vcmp.gt.f32.partialorder %v2444, 0.0
      %vm2481 = vcmp.gt.f32.partialorder %v2446, 0.0
      %vm2482 = vcmp.gt.f32.partialorder %v2450, 0.0
      %vm2483 = vcmp.gt.f32.partialorder %v2452, 0.0
      %vm2484 = vcmp.gt.f32.partialorder %v2454, 0.0
      %vm2485 = vcmp.gt.f32.partialorder %v2456, 0.0
      %vm2486 = vcmp.gt.f32.partialorder %v2460, 0.0
      %vm2487 = vcmp.gt.f32.partialorder %v2462, 0.0
      %vm2488 = vcmp.gt.f32.partialorder %v2464, 0.0
      %vm2489 = vcmp.gt.f32.partialorder %v2466, 0.0
      %vm2490 = vcmp.gt.f32.partialorder %v2470, 0.0
      %vm2491 = vcmp.gt.f32.partialorder %v2472, 0.0
      %vm2492 = vcmp.gt.f32.partialorder %v2474, 0.0
      %vm2493 = vcmp.gt.f32.partialorder %v2476, 0.0
      %v2494 = vmul.f32 %v2440, 1.442695
      %v2495 = vpow.pop %v2494
      %v2496 = vmul.f32 %v2442, 1.442695
      %v2497 = vpow.pop %v2496
      %v2498 = vmul.f32 %v2444, 1.442695
      %v2499 = vpow.pop %v2498
      %v2500 = vmul.f32 %v2446, 1.442695
      %v2501 = vpow.pop %v2500
      %v2502 = vmul.f32 %v2450, 1.442695
      %v2503 = vpow.pop %v2502
      %v2504 = vmul.f32 %v2452, 1.442695
      %v2505 = vpow.pop %v2504
      %v2506 = vmul.f32 %v2454, 1.442695
      %v2507 = vpow.pop %v2506
      %v2508 = vmul.f32 %v2456, 1.442695
      %v2509 = vpow.pop %v2508
      %v2510 = vmul.f32 %v2460, 1.442695
      %v2511 = vpow.pop %v2510
      %v2512 = vmul.f32 %v2462, 1.442695
      %v2513 = vpow.pop %v2512
      %v2514 = vmul.f32 %v2464, 1.442695
      %v2515 = vpow.pop %v2514
      %v2516 = vmul.f32 %v2466, 1.442695
      %v2517 = vpow.pop %v2516
      %v2518 = vmul.f32 %v2470, 1.442695
      %v2519 = vpow.pop %v2518
      %v2520 = vmul.f32 %v2472, 1.442695
      %v2521 = vpow.pop %v2520
      %v2522 = vmul.f32 %v2474, 1.442695
      %v2523 = vpow.pop %v2522
      %v2524 = vmul.f32 %v2476, 1.442695
      %v2525 = vpow.pop %v2524
      %v2526 = vsub.f32 %v2495, 1.0
      %v2527 = vsub.f32 %v2497, 1.0
      %v2528 = vsub.f32 %v2499, 1.0
      %v2529 = vsub.f32 %v2501, 1.0
      %v2530 = vsub.f32 %v2503, 1.0
      %v2531 = vsub.f32 %v2505, 1.0
      %v2532 = vsub.f32 %v2507, 1.0
      %v2533 = vsub.f32 %v2509, 1.0
      %v2534 = vsub.f32 %v2511, 1.0
      %v2535 = vsub.f32 %v2513, 1.0
      %v2536 = vsub.f32 %v2515, 1.0
      %v2537 = vsub.f32 %v2517, 1.0
      %v2538 = vsub.f32 %v2519, 1.0
      %v2539 = vsub.f32 %v2521, 1.0
      %v2540 = vsub.f32 %v2523, 1.0
      %v2541 = vsub.f32 %v2525, 1.0
      %v2542 = vsel %vm2478, %v2440, %v2526
      %v2543 = vsel %vm2479, %v2442, %v2527
      %v2544 = vsel %vm2480, %v2444, %v2528
      %v2545 = vsel %vm2481, %v2446, %v2529
      %v2546 = vsel %vm2482, %v2450, %v2530
      %v2547 = vsel %vm2483, %v2452, %v2531
      %v2548 = vsel %vm2484, %v2454, %v2532
      %v2549 = vsel %vm2485, %v2456, %v2533
      %v2550 = vsel %vm2486, %v2460, %v2534
      %v2551 = vsel %vm2487, %v2462, %v2535
      %v2552 = vsel %vm2488, %v2464, %v2536
      %v2553 = vsel %vm2489, %v2466, %v2537
      %v2554 = vsel %vm2490, %v2470, %v2538
      %v2555 = vsel %vm2491, %v2472, %v2539
      %v2556 = vsel %vm2492, %v2474, %v2540
      %v2557 = vsel %vm2493, %v2476, %v2541
      %v2558 = vadd.f32 %v2542, %v2543
      %2559 = vadd.xlane.f32.xlu0 %v2558
      %v2560 = vpop.xlane.xlu0 %2559
      %v2561 = vadd.f32 %v2544, %v2545
      %2562 = vadd.xlane.f32.xlu0 %v2561
      %v2563 = vpop.xlane.xlu0 %2562
      %v2564 = vadd.f32 %v2546, %v2547
      %2565 = vadd.xlane.f32.xlu0 %v2564
      %v2566 = vpop.xlane.xlu0 %2565
      %v2567 = vadd.f32 %v2548, %v2549
      %2568 = vadd.xlane.f32.xlu0 %v2567
      %v2569 = vpop.xlane.xlu0 %2568
      %v2570 = vadd.f32 %v2550, %v2551
      %2571 = vadd.xlane.f32.xlu0 %v2570
      %v2572 = vpop.xlane.xlu0 %2571
      %v2573 = vadd.f32 %v2552, %v2553
      %2574 = vadd.xlane.f32.xlu0 %v2573
      %v2575 = vpop.xlane.xlu0 %2574
      %v2576 = vadd.f32 %v2554, %v2555
      %2577 = vadd.xlane.f32.xlu0 %v2576
      %v2578 = vpop.xlane.xlu0 %2577
      %v2579 = vadd.f32 %v2556, %v2557
      %2580 = vadd.xlane.f32.xlu0 %v2579
      %v2581 = vpop.xlane.xlu0 %2580
      %v2582 = vmul.f32 %v2560, %v621
      %v2583 = vmul.f32 %v2563, %v621
      %v2584 = vmul.f32 %v2566, %v621
      %v2585 = vmul.f32 %v2569, %v621
      %v2586 = vmul.f32 %v2572, %v621
      %v2587 = vmul.f32 %v2575, %v621
      %v2588 = vmul.f32 %v2578, %v621
      %v2589 = vmul.f32 %v2581, %v621
      %v2590 = vsub.f32 %v2542, %v2582
      %v2591 = vsub.f32 %v2543, %v2582
      %v2592 = vsub.f32 %v2544, %v2583
      %v2593 = vsub.f32 %v2545, %v2583
      %v2594 = vsub.f32 %v2546, %v2584
      %v2595 = vsub.f32 %v2547, %v2584
      %v2596 = vsub.f32 %v2548, %v2585
      %v2597 = vsub.f32 %v2549, %v2585
      %v2598 = vsub.f32 %v2550, %v2586
      %v2599 = vsub.f32 %v2551, %v2586
      %v2600 = vsub.f32 %v2552, %v2587
      %v2601 = vsub.f32 %v2553, %v2587
      %v2602 = vsub.f32 %v2554, %v2588
      %v2603 = vsub.f32 %v2555, %v2588
      %v2604 = vsub.f32 %v2556, %v2589
      %v2605 = vsub.f32 %v2557, %v2589
      %v2606 = vmul.f32 %v2590, %v2590
      %v2607 = vmul.f32 %v2591, %v2591
      %v2608 = vmul.f32 %v2592, %v2592
      %v2609 = vmul.f32 %v2593, %v2593
      %v2610 = vmul.f32 %v2594, %v2594
      %v2611 = vmul.f32 %v2595, %v2595
      %v2612 = vmul.f32 %v2596, %v2596
      %v2613 = vmul.f32 %v2597, %v2597
      %v2614 = vmul.f32 %v2598, %v2598
      %v2615 = vmul.f32 %v2599, %v2599
      %v2616 = vmul.f32 %v2600, %v2600
      %v2617 = vmul.f32 %v2601, %v2601
      %v2618 = vmul.f32 %v2602, %v2602
      %v2619 = vmul.f32 %v2603, %v2603
      %v2620 = vmul.f32 %v2604, %v2604
      %v2621 = vmul.f32 %v2605, %v2605
      %v2622 = vadd.f32 %v2606, %v2607
      %2623 = vadd.xlane.f32.xlu0 %v2622
      %v2624 = vpop.xlane.xlu0 %2623
      %v2625 = vadd.f32 %v2608, %v2609
      %2626 = vadd.xlane.f32.xlu0 %v2625
      %v2627 = vpop.xlane.xlu0 %2626
      %v2628 = vadd.f32 %v2610, %v2611
      %2629 = vadd.xlane.f32.xlu0 %v2628
      %v2630 = vpop.xlane.xlu0 %2629
      %v2631 = vadd.f32 %v2612, %v2613
      %2632 = vadd.xlane.f32.xlu0 %v2631
      %v2633 = vpop.xlane.xlu0 %2632
      %v2634 = vadd.f32 %v2614, %v2615
      %2635 = vadd.xlane.f32.xlu0 %v2634
      %v2636 = vpop.xlane.xlu0 %2635
      %v2637 = vadd.f32 %v2616, %v2617
      %2638 = vadd.xlane.f32.xlu0 %v2637
      %v2639 = vpop.xlane.xlu0 %2638
      %v2640 = vadd.f32 %v2618, %v2619
      %2641 = vadd.xlane.f32.xlu0 %v2640
      %v2642 = vpop.xlane.xlu0 %2641
      %v2643 = vadd.f32 %v2620, %v2621
      %2644 = vadd.xlane.f32.xlu0 %v2643
      %v2645 = vpop.xlane.xlu0 %2644
      %v2646 = vmul.f32 %v2624, %v621
      %v2647 = vmul.f32 %v2627, %v621
      %v2648 = vmul.f32 %v2630, %v621
      %v2649 = vmul.f32 %v2633, %v621
      %v2650 = vmul.f32 %v2636, %v621
      %v2651 = vmul.f32 %v2639, %v621
      %v2652 = vmul.f32 %v2642, %v621
      %v2653 = vmul.f32 %v2645, %v621
      %v2654 = vadd.f32 %v2646, 1e-05
      %v2655 = vadd.f32 %v2647, 1e-05
      %v2656 = vadd.f32 %v2648, 1e-05
      %v2657 = vadd.f32 %v2649, 1e-05
      %v2658 = vadd.f32 %v2650, 1e-05
      %v2659 = vadd.f32 %v2651, 1e-05
      %v2660 = vadd.f32 %v2652, 1e-05
      %v2661 = vadd.f32 %v2653, 1e-05
      %v2662 = vrsqrt.pop %v2654
      %v2663 = vrsqrt.pop %v2655
      %v2664 = vrsqrt.pop %v2656
      %v2665 = vrsqrt.pop %v2657
      %v2666 = vrsqrt.pop %v2658
      %v2667 = vrsqrt.pop %v2659
      %v2668 = vrsqrt.pop %v2660
      %v2669 = vrsqrt.pop %v2661
      %v2670 = vpack.c.bf16 %v2592, %v2590
      %v2671 = vpack.c.bf16 %v2593, %v2591
      %v2672 = vpack.c.bf16 %v2596, %v2594
      %v2673 = vpack.c.bf16 %v2597, %v2595
      %v2674 = vpack.c.bf16 %v2600, %v2598
      %v2675 = vpack.c.bf16 %v2601, %v2599
      %v2676 = vpack.c.bf16 %v2604, %v2602
      %v2677 = vpack.c.bf16 %v2605, %v2603
      %v2678 = vpack.c.bf16 %v2663, %v2662
      %v2679 = vpack.c.bf16 %v2665, %v2664
      %v2680 = vpack.c.bf16 %v2667, %v2666
      %v2681 = vpack.c.bf16 %v2669, %v2668
      %v2682 = vmul.bf16 %v2670, %v2678
      %v2683 = vmul.bf16 %v2671, %v2678
      %v2684 = vmul.bf16 %v2672, %v2679
      %v2685 = vmul.bf16 %v2673, %v2679
      %v2686 = vmul.bf16 %v2674, %v2680
      %v2687 = vmul.bf16 %v2675, %v2680
      %v2688 = vmul.bf16 %v2676, %v2681
      %v2689 = vmul.bf16 %v2677, %v2681
      %s2690 = scalar_lea.vmem %s9, 5
      %v2691 = vld [vmem:[%s2690] ss:$8 sm:$0x3]
      %v2692 = vld [vmem:[%s6] sm:$0xff]
      %v2693 = vld [vmem:[%s6 + $0x8] sm:$0xff]
      %v2694 = vld [vmem:[%s6 + $0x10] sm:$0xff]
      %v2695 = vld [vmem:[%s6 + $0x18] sm:$0xff]
      %v2696 = vld [vmem:[%s6 + $0x20] sm:$0xff]
      %v2697 = vld [vmem:[%s6 + $0x28] sm:$0xff]
      %v2698 = vld [vmem:[%s6 + $0x30] sm:$0xff]
      %v2699 = vld [vmem:[%s6 + $0x38] sm:$0xff]
      %v2700 = vld [vmem:[%s6 + $0x40] sm:$0xff]
      %v2701 = vld [vmem:[%s6 + $0x48] sm:$0xff]
      %v2702 = vld [vmem:[%s6 + $0x50] sm:$0xff]
      %v2703 = vld [vmem:[%s6 + $0x58] sm:$0xff]
      %v2704 = vld [vmem:[%s6 + $0x60] sm:$0xff]
      %v2705 = vld [vmem:[%s6 + $0x68] sm:$0xff]
      %v2706 = vld [vmem:[%s6 + $0x70] sm:$0xff]
      %v2707 = vld [vmem:[%s6 + $0x78] sm:$0xff]
      %v2708 = vld [vmem:[%s6 + $0x80] sm:$0xff]
      %v2709 = vld [vmem:[%s6 + $0x88] sm:$0xff]
      %v2710 = vld [vmem:[%s6 + $0x90] sm:$0xff]
      %v2711 = vld [vmem:[%s6 + $0x98] sm:$0xff]
      %v2712 = vld [vmem:[%s6 + $0xa0] sm:$0xff]
      %v2713 = vld [vmem:[%s6 + $0xa8] sm:$0xff]
      %v2714 = vld [vmem:[%s6 + $0xb0] sm:$0xff]
      %v2715 = vld [vmem:[%s6 + $0xb8] sm:$0xff]
      %v2716 = vld [vmem:[%s6 + $0xc0] sm:$0xff]
      %v2717 = vld [vmem:[%s6 + $0xc8] sm:$0xff]
      %v2718 = vld [vmem:[%s6 + $0xd0] sm:$0xff]
      %v2719 = vld [vmem:[%s6 + $0xd8] sm:$0xff]
      %v2720 = vld [vmem:[%s6 + $0xe0] sm:$0xff]
      %v2721 = vld [vmem:[%s6 + $0xe8] sm:$0xff]
      %v2722 = vld [vmem:[%s6 + $0xf0] sm:$0xff]
      %v2723 = vld [vmem:[%s6 + $0xf8] sm:$0xff]
      %v2725 = vlaneseq
      %v2726 = vshrl.u32 %v2725, 7
      %v2727 = vsub.s32 0, %v2726
      %v2728 = vrot.slane %v2691, %v2727
      %v2729 = vlaneseq
      %v2730 = vshrl.u32 %v2729, 7
      %v2731 = vsub.s32 1, %v2730
      %v2732 = vrot.slane %v2691, %v2731
      %v2767 = vunpack.c.l.b16 %v2692
      %v2768 = vunpack.c.h.b16 %v2692
      %v2769 = vunpack.c.l.b16 %v2693
      %v2770 = vunpack.c.h.b16 %v2693
      %v2771 = vunpack.c.l.b16 %v2694
      %v2772 = vunpack.c.h.b16 %v2694
      %v2773 = vunpack.c.l.b16 %v2695
      %v2774 = vunpack.c.h.b16 %v2695
      %v2775 = vunpack.c.l.b16 %v2696
      %v2776 = vunpack.c.h.b16 %v2696
      %v2777 = vunpack.c.l.b16 %v2697
      %v2778 = vunpack.c.h.b16 %v2697
      %v2779 = vunpack.c.l.b16 %v2698
      %v2780 = vunpack.c.h.b16 %v2698
      %v2781 = vunpack.c.l.b16 %v2699
      %v2782 = vunpack.c.h.b16 %v2699
      %v2783 = vunpack.c.l.b16 %v2700
      %v2784 = vunpack.c.h.b16 %v2700
      %v2785 = vunpack.c.l.b16 %v2701
      %v2786 = vunpack.c.h.b16 %v2701
      %v2787 = vunpack.c.l.b16 %v2702
      %v2788 = vunpack.c.h.b16 %v2702
      %v2789 = vunpack.c.l.b16 %v2703
      %v2790 = vunpack.c.h.b16 %v2703
      %v2791 = vunpack.c.l.b16 %v2704
      %v2792 = vunpack.c.h.b16 %v2704
      %v2793 = vunpack.c.l.b16 %v2705
      %v2794 = vunpack.c.h.b16 %v2705
      %v2795 = vunpack.c.l.b16 %v2706
      %v2796 = vunpack.c.h.b16 %v2706
      %v2797 = vunpack.c.l.b16 %v2707
      %v2798 = vunpack.c.h.b16 %v2707
      %v2799 = vunpack.c.l.b16 %v2708
      %v2800 = vunpack.c.h.b16 %v2708
      %v2801 = vunpack.c.l.b16 %v2709
      %v2802 = vunpack.c.h.b16 %v2709
      %v2803 = vunpack.c.l.b16 %v2710
      %v2804 = vunpack.c.h.b16 %v2710
      %v2805 = vunpack.c.l.b16 %v2711
      %v2806 = vunpack.c.h.b16 %v2711
      %v2807 = vunpack.c.l.b16 %v2712
      %v2808 = vunpack.c.h.b16 %v2712
      %v2809 = vunpack.c.l.b16 %v2713
      %v2810 = vunpack.c.h.b16 %v2713
      %v2811 = vunpack.c.l.b16 %v2714
      %v2812 = vunpack.c.h.b16 %v2714
      %v2813 = vunpack.c.l.b16 %v2715
      %v2814 = vunpack.c.h.b16 %v2715
      %v2815 = vunpack.c.l.b16 %v2716
      %v2816 = vunpack.c.h.b16 %v2716
      %v2817 = vunpack.c.l.b16 %v2717
      %v2818 = vunpack.c.h.b16 %v2717
      %v2819 = vunpack.c.l.b16 %v2718
      %v2820 = vunpack.c.h.b16 %v2718
      %v2821 = vunpack.c.l.b16 %v2719
      %v2822 = vunpack.c.h.b16 %v2719
      %v2823 = vunpack.c.l.b16 %v2720
      %v2824 = vunpack.c.h.b16 %v2720
      %v2825 = vunpack.c.l.b16 %v2721
      %v2826 = vunpack.c.h.b16 %v2721
      %v2827 = vunpack.c.l.b16 %v2722
      %v2828 = vunpack.c.h.b16 %v2722
      %v2829 = vunpack.c.l.b16 %v2723
      %v2830 = vunpack.c.h.b16 %v2723
      %v2831 = vpack.c.b16 %v2769, %v2767
      %v2832 = vpack.c.b16 %v2770, %v2768
      %v2833 = vpack.c.b16 %v2773, %v2771
      %v2834 = vpack.c.b16 %v2774, %v2772
      %v2835 = vpack.c.b16 %v2777, %v2775
      %v2836 = vpack.c.b16 %v2778, %v2776
      %v2837 = vpack.c.b16 %v2781, %v2779
      %v2838 = vpack.c.b16 %v2782, %v2780
      %v2839 = vpack.c.b16 %v2785, %v2783
      %v2840 = vpack.c.b16 %v2786, %v2784
      %v2841 = vpack.c.b16 %v2789, %v2787
      %v2842 = vpack.c.b16 %v2790, %v2788
      %v2843 = vpack.c.b16 %v2793, %v2791
      %v2844 = vpack.c.b16 %v2794, %v2792
      %v2845 = vpack.c.b16 %v2797, %v2795
      %v2846 = vpack.c.b16 %v2798, %v2796
      %v2847 = vpack.c.b16 %v2801, %v2799
      %v2848 = vpack.c.b16 %v2802, %v2800
      %v2849 = vpack.c.b16 %v2805, %v2803
      %v2850 = vpack.c.b16 %v2806, %v2804
      %v2851 = vpack.c.b16 %v2809, %v2807
      %v2852 = vpack.c.b16 %v2810, %v2808
      %v2853 = vpack.c.b16 %v2813, %v2811
      %v2854 = vpack.c.b16 %v2814, %v2812
      %v2855 = vpack.c.b16 %v2817, %v2815
      %v2856 = vpack.c.b16 %v2818, %v2816
      %v2857 = vpack.c.b16 %v2821, %v2819
      %v2858 = vpack.c.b16 %v2822, %v2820
      %v2859 = vpack.c.b16 %v2825, %v2823
      %v2860 = vpack.c.b16 %v2826, %v2824
      %v2861 = vpack.c.b16 %v2829, %v2827
      %v2862 = vpack.c.b16 %v2830, %v2828
      %2895 = vmatprep.subr.bf16.mxu0 %v2832
      %2896 = vmatpush1.bf16.msra.mxu0 %v2831
      %2897 = vmatprep.subr.bf16.mxu0 %v2834
      %2898 = vmatpush1.bf16.msra.mxu0 %v2833
      %2899 = vmatprep.subr.bf16.mxu0 %v2836
      %2900 = vmatpush1.bf16.msra.mxu0 %v2835
      %2901 = vmatprep.subr.bf16.mxu0 %v2838
      %2902 = vmatpush1.bf16.msra.mxu0 %v2837
      %2903 = vmatprep.subr.bf16.mxu0 %v2840
      %2904 = vmatpush1.bf16.msra.mxu0 %v2839
      %2905 = vmatprep.subr.bf16.mxu0 %v2842
      %2906 = vmatpush1.bf16.msra.mxu0 %v2841
      %2907 = vmatprep.subr.bf16.mxu0 %v2844
      %2908 = vmatpush1.bf16.msra.mxu0 %v2843
      %2909 = vmatprep.subr.bf16.mxu0 %v2846
      %2910 = vmatpush1.bf16.msra.mxu0 %v2845
      %2911 = vmatprep.subr.bf16.mxu0 %v2848
      %2912 = vmatpush1.bf16.msra.mxu0 %v2847
      %2913 = vmatprep.subr.bf16.mxu0 %v2850
      %2914 = vmatpush1.bf16.msra.mxu0 %v2849
      %2915 = vmatprep.subr.bf16.mxu0 %v2852
      %2916 = vmatpush1.bf16.msra.mxu0 %v2851
      %2917 = vmatprep.subr.bf16.mxu0 %v2854
      %2918 = vmatpush1.bf16.msra.mxu0 %v2853
      %2919 = vmatprep.subr.bf16.mxu0 %v2856
      %2920 = vmatpush1.bf16.msra.mxu0 %v2855
      %2921 = vmatprep.subr.bf16.mxu0 %v2858
      %2922 = vmatpush1.bf16.msra.mxu0 %v2857
      %2923 = vmatprep.subr.bf16.mxu0 %v2860
      %2924 = vmatpush1.bf16.msra.mxu0 %v2859
      %2925 = vmatprep.subr.bf16.mxu0 %v2862
      %2926 = vmatpush1.bf16.msra.mxu0 %v2861
      %2927 = vmatprep.mubr.bf16.mxu0 %v2683
      %2928 = vmatmul.mubr.bf16.gmra.mrb[0].mxu0 %v2682
      %v2929 = vpop.f32.mrb[0].mxu0
      %v2930 = vadd.f32 %v2728, %v2929
      %v2931 = vpop.f32.mrb[0].mxu0
      %v2932 = vadd.f32 %v2732, %v2931
      %v2933 = vpop.f32.mrb[0].mxu0
      %v2934 = vadd.f32 %v2728, %v2933
      %v2935 = vpop.f32.mrb[0].mxu0
      %v2936 = vadd.f32 %v2732, %v2935
      %2937 = vmatprep.mubr.bf16.mxu0 %v2685
      %2938 = vmatmul.mubr.bf16.gmra.mrb[0].mxu0 %v2684
      %v2939 = vpop.f32.mrb[0].mxu0
      %v2940 = vadd.f32 %v2728, %v2939
      %v2941 = vpop.f32.mrb[0].mxu0
      %v2942 = vadd.f32 %v2732, %v2941
      %v2943 = vpop.f32.mrb[0].mxu0
      %v2944 = vadd.f32 %v2728, %v2943
      %v2945 = vpop.f32.mrb[0].mxu0
      %v2946 = vadd.f32 %v2732, %v2945
      %2947 = vmatprep.mubr.bf16.mxu0 %v2687
      %2948 = vmatmul.mubr.bf16.gmra.mrb[0].mxu0 %v2686
      %v2949 = vpop.f32.mrb[0].mxu0
      %v2950 = vadd.f32 %v2728, %v2949
      %v2951 = vpop.f32.mrb[0].mxu0
      %v2952 = vadd.f32 %v2732, %v2951
      %v2953 = vpop.f32.mrb[0].mxu0
      %v2954 = vadd.f32 %v2728, %v2953
      %v2955 = vpop.f32.mrb[0].mxu0
      %v2956 = vadd.f32 %v2732, %v2955
      %2957 = vmatprep.mubr.bf16.mxu0 %v2689
      %2958 = vmatmul.mubr.bf16.gmra.mrb[0].mxu0 %v2688
      %v2959 = vpop.f32.mrb[0].mxu0
      %v2960 = vadd.f32 %v2728, %v2959
      %v2961 = vpop.f32.mrb[0].mxu0
      %v2962 = vadd.f32 %v2732, %v2961
      %v2963 = vpop.f32.mrb[0].mxu0
      %v2964 = vadd.f32 %v2728, %v2963
      %v2965 = vpop.f32.mrb[0].mxu0
      %v2966 = vadd.f32 %v2732, %v2965
      %2967 = vdwg.mxu0
      %vm2968 = vcmp.gt.f32.partialorder %v2930, 0.0
      %vm2969 = vcmp.gt.f32.partialorder %v2932, 0.0
      %vm2970 = vcmp.gt.f32.partialorder %v2934, 0.0
      %vm2971 = vcmp.gt.f32.partialorder %v2936, 0.0
      %vm2972 = vcmp.gt.f32.partialorder %v2940, 0.0
      %vm2973 = vcmp.gt.f32.partialorder %v2942, 0.0
      %vm2974 = vcmp.gt.f32.partialorder %v2944, 0.0
      %vm2975 = vcmp.gt.f32.partialorder %v2946, 0.0
      %vm2976 = vcmp.gt.f32.partialorder %v2950, 0.0
      %vm2977 = vcmp.gt.f32.partialorder %v2952, 0.0
      %vm2978 = vcmp.gt.f32.partialorder %v2954, 0.0
      %vm2979 = vcmp.gt.f32.partialorder %v2956, 0.0
      %vm2980 = vcmp.gt.f32.partialorder %v2960, 0.0
      %vm2981 = vcmp.gt.f32.partialorder %v2962, 0.0
      %vm2982 = vcmp.gt.f32.partialorder %v2964, 0.0
      %vm2983 = vcmp.gt.f32.partialorder %v2966, 0.0
      %v2984 = vmul.f32 %v2930, 1.442695
      %v2985 = vpow.pop %v2984
      %v2986 = vmul.f32 %v2932, 1.442695
      %v2987 = vpow.pop %v2986
      %v2988 = vmul.f32 %v2934, 1.442695
      %v2989 = vpow.pop %v2988
      %v2990 = vmul.f32 %v2936, 1.442695
      %v2991 = vpow.pop %v2990
      %v2992 = vmul.f32 %v2940, 1.442695
      %v2993 = vpow.pop %v2992
      %v2994 = vmul.f32 %v2942, 1.442695
      %v2995 = vpow.pop %v2994
      %v2996 = vmul.f32 %v2944, 1.442695
      %v2997 = vpow.pop %v2996
      %v2998 = vmul.f32 %v2946, 1.442695
      %v2999 = vpow.pop %v2998
      %v3000 = vmul.f32 %v2950, 1.442695
      %v3001 = vpow.pop %v3000
      %v3002 = vmul.f32 %v2952, 1.442695
      %v3003 = vpow.pop %v3002
      %v3004 = vmul.f32 %v2954, 1.442695
      %v3005 = vpow.pop %v3004
      %v3006 = vmul.f32 %v2956, 1.442695
      %v3007 = vpow.pop %v3006
      %v3008 = vmul.f32 %v2960, 1.442695
      %v3009 = vpow.pop %v3008
      %v3010 = vmul.f32 %v2962, 1.442695
      %v3011 = vpow.pop %v3010
      %v3012 = vmul.f32 %v2964, 1.442695
      %v3013 = vpow.pop %v3012
      %v3014 = vmul.f32 %v2966, 1.442695
      %v3015 = vpow.pop %v3014
      %v3016 = vsub.f32 %v2985, 1.0
      %v3017 = vsub.f32 %v2987, 1.0
      %v3018 = vsub.f32 %v2989, 1.0
      %v3019 = vsub.f32 %v2991, 1.0
      %v3020 = vsub.f32 %v2993, 1.0
      %v3021 = vsub.f32 %v2995, 1.0
      %v3022 = vsub.f32 %v2997, 1.0
      %v3023 = vsub.f32 %v2999, 1.0
      %v3024 = vsub.f32 %v3001, 1.0
      %v3025 = vsub.f32 %v3003, 1.0
      %v3026 = vsub.f32 %v3005, 1.0
      %v3027 = vsub.f32 %v3007, 1.0
      %v3028 = vsub.f32 %v3009, 1.0
      %v3029 = vsub.f32 %v3011, 1.0
      %v3030 = vsub.f32 %v3013, 1.0
      %v3031 = vsub.f32 %v3015, 1.0
      %v3032 = vsel %vm2968, %v2930, %v3016
      %v3033 = vsel %vm2969, %v2932, %v3017
      %v3034 = vsel %vm2970, %v2934, %v3018
      %v3035 = vsel %vm2971, %v2936, %v3019
      %v3036 = vsel %vm2972, %v2940, %v3020
      %v3037 = vsel %vm2973, %v2942, %v3021
      %v3038 = vsel %vm2974, %v2944, %v3022
      %v3039 = vsel %vm2975, %v2946, %v3023
      %v3040 = vsel %vm2976, %v2950, %v3024
      %v3041 = vsel %vm2977, %v2952, %v3025
      %v3042 = vsel %vm2978, %v2954, %v3026
      %v3043 = vsel %vm2979, %v2956, %v3027
      %v3044 = vsel %vm2980, %v2960, %v3028
      %v3045 = vsel %vm2981, %v2962, %v3029
      %v3046 = vsel %vm2982, %v2964, %v3030
      %v3047 = vsel %vm2983, %v2966, %v3031
      %v3048 = vadd.f32 %v3032, %v3033
      %3049 = vadd.xlane.f32.xlu0 %v3048
      %v3050 = vpop.xlane.xlu0 %3049
      %v3051 = vadd.f32 %v3034, %v3035
      %3052 = vadd.xlane.f32.xlu0 %v3051
      %v3053 = vpop.xlane.xlu0 %3052
      %v3054 = vadd.f32 %v3036, %v3037
      %3055 = vadd.xlane.f32.xlu0 %v3054
      %v3056 = vpop.xlane.xlu0 %3055
      %v3057 = vadd.f32 %v3038, %v3039
      %3058 = vadd.xlane.f32.xlu0 %v3057
      %v3059 = vpop.xlane.xlu0 %3058
      %v3060 = vadd.f32 %v3040, %v3041
      %3061 = vadd.xlane.f32.xlu0 %v3060
      %v3062 = vpop.xlane.xlu0 %3061
      %v3063 = vadd.f32 %v3042, %v3043
      %3064 = vadd.xlane.f32.xlu0 %v3063
      %v3065 = vpop.xlane.xlu0 %3064
      %v3066 = vadd.f32 %v3044, %v3045
      %3067 = vadd.xlane.f32.xlu0 %v3066
      %v3068 = vpop.xlane.xlu0 %3067
      %v3069 = vadd.f32 %v3046, %v3047
      %3070 = vadd.xlane.f32.xlu0 %v3069
      %v3071 = vpop.xlane.xlu0 %3070
      %v3072 = vmul.f32 %v3050, %v621
      %v3073 = vmul.f32 %v3053, %v621
      %v3074 = vmul.f32 %v3056, %v621
      %v3075 = vmul.f32 %v3059, %v621
      %v3076 = vmul.f32 %v3062, %v621
      %v3077 = vmul.f32 %v3065, %v621
      %v3078 = vmul.f32 %v3068, %v621
      %v3079 = vmul.f32 %v3071, %v621
      %v3080 = vsub.f32 %v3032, %v3072
      %v3081 = vsub.f32 %v3033, %v3072
      %v3082 = vsub.f32 %v3034, %v3073
      %v3083 = vsub.f32 %v3035, %v3073
      %v3084 = vsub.f32 %v3036, %v3074
      %v3085 = vsub.f32 %v3037, %v3074
      %v3086 = vsub.f32 %v3038, %v3075
      %v3087 = vsub.f32 %v3039, %v3075
      %v3088 = vsub.f32 %v3040, %v3076
      %v3089 = vsub.f32 %v3041, %v3076
      %v3090 = vsub.f32 %v3042, %v3077
      %v3091 = vsub.f32 %v3043, %v3077
      %v3092 = vsub.f32 %v3044, %v3078
      %v3093 = vsub.f32 %v3045, %v3078
      %v3094 = vsub.f32 %v3046, %v3079
      %v3095 = vsub.f32 %v3047, %v3079
      %v3096 = vmul.f32 %v3080, %v3080
      %v3097 = vmul.f32 %v3081, %v3081
      %v3098 = vmul.f32 %v3082, %v3082
      %v3099 = vmul.f32 %v3083, %v3083
      %v3100 = vmul.f32 %v3084, %v3084
      %v3101 = vmul.f32 %v3085, %v3085
      %v3102 = vmul.f32 %v3086, %v3086
      %v3103 = vmul.f32 %v3087, %v3087
      %v3104 = vmul.f32 %v3088, %v3088
      %v3105 = vmul.f32 %v3089, %v3089
      %v3106 = vmul.f32 %v3090, %v3090
      %v3107 = vmul.f32 %v3091, %v3091
      %v3108 = vmul.f32 %v3092, %v3092
      %v3109 = vmul.f32 %v3093, %v3093
      %v3110 = vmul.f32 %v3094, %v3094
      %v3111 = vmul.f32 %v3095, %v3095
      %v3112 = vadd.f32 %v3096, %v3097
      %3113 = vadd.xlane.f32.xlu0 %v3112
      %v3114 = vpop.xlane.xlu0 %3113
      %v3115 = vadd.f32 %v3098, %v3099
      %3116 = vadd.xlane.f32.xlu0 %v3115
      %v3117 = vpop.xlane.xlu0 %3116
      %v3118 = vadd.f32 %v3100, %v3101
      %3119 = vadd.xlane.f32.xlu0 %v3118
      %v3120 = vpop.xlane.xlu0 %3119
      %v3121 = vadd.f32 %v3102, %v3103
      %3122 = vadd.xlane.f32.xlu0 %v3121
      %v3123 = vpop.xlane.xlu0 %3122
      %v3124 = vadd.f32 %v3104, %v3105
      %3125 = vadd.xlane.f32.xlu0 %v3124
      %v3126 = vpop.xlane.xlu0 %3125
      %v3127 = vadd.f32 %v3106, %v3107
      %3128 = vadd.xlane.f32.xlu0 %v3127
      %v3129 = vpop.xlane.xlu0 %3128
      %v3130 = vadd.f32 %v3108, %v3109
      %3131 = vadd.xlane.f32.xlu0 %v3130
      %v3132 = vpop.xlane.xlu0 %3131
      %v3133 = vadd.f32 %v3110, %v3111
      %3134 = vadd.xlane.f32.xlu0 %v3133
      %v3135 = vpop.xlane.xlu0 %3134
      %v3136 = vmul.f32 %v3114, %v621
      %v3137 = vmul.f32 %v3117, %v621
      %v3138 = vmul.f32 %v3120, %v621
      %v3139 = vmul.f32 %v3123, %v621
      %v3140 = vmul.f32 %v3126, %v621
      %v3141 = vmul.f32 %v3129, %v621
      %v3142 = vmul.f32 %v3132, %v621
      %v3143 = vmul.f32 %v3135, %v621
      %v3144 = vadd.f32 %v3136, 1e-05
      %v3145 = vadd.f32 %v3137, 1e-05
      %v3146 = vadd.f32 %v3138, 1e-05
      %v3147 = vadd.f32 %v3139, 1e-05
      %v3148 = vadd.f32 %v3140, 1e-05
      %v3149 = vadd.f32 %v3141, 1e-05
      %v3150 = vadd.f32 %v3142, 1e-05
      %v3151 = vadd.f32 %v3143, 1e-05
      %v3152 = vrsqrt.pop %v3144
      %v3153 = vrsqrt.pop %v3145
      %v3154 = vrsqrt.pop %v3146
      %v3155 = vrsqrt.pop %v3147
      %v3156 = vrsqrt.pop %v3148
      %v3157 = vrsqrt.pop %v3149
      %v3158 = vrsqrt.pop %v3150
      %v3159 = vrsqrt.pop %v3151
      %v3160 = vpack.c.bf16 %v3082, %v3080
      %v3161 = vpack.c.bf16 %v3083, %v3081
      %v3162 = vpack.c.bf16 %v3086, %v3084
      %v3163 = vpack.c.bf16 %v3087, %v3085
      %v3164 = vpack.c.bf16 %v3090, %v3088
      %v3165 = vpack.c.bf16 %v3091, %v3089
      %v3166 = vpack.c.bf16 %v3094, %v3092
      %v3167 = vpack.c.bf16 %v3095, %v3093
      %v3168 = vpack.c.bf16 %v3153, %v3152
      %v3169 = vpack.c.bf16 %v3155, %v3154
      %v3170 = vpack.c.bf16 %v3157, %v3156
      %v3171 = vpack.c.bf16 %v3159, %v3158
      %v3172 = vmul.bf16 %v3160, %v3168
      %v3173 = vmul.bf16 %v3161, %v3168
      %v3174 = vmul.bf16 %v3162, %v3169
      %v3175 = vmul.bf16 %v3163, %v3169
      %v3176 = vmul.bf16 %v3164, %v3170
      %v3177 = vmul.bf16 %v3165, %v3170
      %v3178 = vmul.bf16 %v3166, %v3171
      %v3179 = vmul.bf16 %v3167, %v3171
      %s3180 = scalar_lea.vmem %s9, 6
      %v3181 = vld [vmem:[%s3180] ss:$8 sm:$0x3]
      %v3182 = vld [vmem:[%s7] sm:$0xff]
      %v3183 = vld [vmem:[%s7 + $0x8] sm:$0xff]
      %v3184 = vld [vmem:[%s7 + $0x10] sm:$0xff]
      %v3185 = vld [vmem:[%s7 + $0x18] sm:$0xff]
      %v3186 = vld [vmem:[%s7 + $0x20] sm:$0xff]
      %v3187 = vld [vmem:[%s7 + $0x28] sm:$0xff]
      %v3188 = vld [vmem:[%s7 + $0x30] sm:$0xff]
      %v3189 = vld [vmem:[%s7 + $0x38] sm:$0xff]
      %v3190 = vld [vmem:[%s7 + $0x40] sm:$0xff]
      %v3191 = vld [vmem:[%s7 + $0x48] sm:$0xff]
      %v3192 = vld [vmem:[%s7 + $0x50] sm:$0xff]
      %v3193 = vld [vmem:[%s7 + $0x58] sm:$0xff]
      %v3194 = vld [vmem:[%s7 + $0x60] sm:$0xff]
      %v3195 = vld [vmem:[%s7 + $0x68] sm:$0xff]
      %v3196 = vld [vmem:[%s7 + $0x70] sm:$0xff]
      %v3197 = vld [vmem:[%s7 + $0x78] sm:$0xff]
      %v3198 = vld [vmem:[%s7 + $0x80] sm:$0xff]
      %v3199 = vld [vmem:[%s7 + $0x88] sm:$0xff]
      %v3200 = vld [vmem:[%s7 + $0x90] sm:$0xff]
      %v3201 = vld [vmem:[%s7 + $0x98] sm:$0xff]
      %v3202 = vld [vmem:[%s7 + $0xa0] sm:$0xff]
      %v3203 = vld [vmem:[%s7 + $0xa8] sm:$0xff]
      %v3204 = vld [vmem:[%s7 + $0xb0] sm:$0xff]
      %v3205 = vld [vmem:[%s7 + $0xb8] sm:$0xff]
      %v3206 = vld [vmem:[%s7 + $0xc0] sm:$0xff]
      %v3207 = vld [vmem:[%s7 + $0xc8] sm:$0xff]
      %v3208 = vld [vmem:[%s7 + $0xd0] sm:$0xff]
      %v3209 = vld [vmem:[%s7 + $0xd8] sm:$0xff]
      %v3210 = vld [vmem:[%s7 + $0xe0] sm:$0xff]
      %v3211 = vld [vmem:[%s7 + $0xe8] sm:$0xff]
      %v3212 = vld [vmem:[%s7 + $0xf0] sm:$0xff]
      %v3213 = vld [vmem:[%s7 + $0xf8] sm:$0xff]
      %v3215 = vlaneseq
      %v3216 = vshrl.u32 %v3215, 7
      %v3217 = vsub.s32 0, %v3216
      %v3218 = vrot.slane %v3181, %v3217
      %v3219 = vlaneseq
      %v3220 = vshrl.u32 %v3219, 7
      %v3221 = vsub.s32 1, %v3220
      %v3222 = vrot.slane %v3181, %v3221
      %v3257 = vunpack.c.l.b16 %v3182
      %v3258 = vunpack.c.h.b16 %v3182
      %v3259 = vunpack.c.l.b16 %v3183
      %v3260 = vunpack.c.h.b16 %v3183
      %v3261 = vunpack.c.l.b16 %v3184
      %v3262 = vunpack.c.h.b16 %v3184
      %v3263 = vunpack.c.l.b16 %v3185
      %v3264 = vunpack.c.h.b16 %v3185
      %v3265 = vunpack.c.l.b16 %v3186
      %v3266 = vunpack.c.h.b16 %v3186
      %v3267 = vunpack.c.l.b16 %v3187
      %v3268 = vunpack.c.h.b16 %v3187
      %v3269 = vunpack.c.l.b16 %v3188
      %v3270 = vunpack.c.h.b16 %v3188
      %v3271 = vunpack.c.l.b16 %v3189
      %v3272 = vunpack.c.h.b16 %v3189
      %v3273 = vunpack.c.l.b16 %v3190
      %v3274 = vunpack.c.h.b16 %v3190
      %v3275 = vunpack.c.l.b16 %v3191
      %v3276 = vunpack.c.h.b16 %v3191
      %v3277 = vunpack.c.l.b16 %v3192
      %v3278 = vunpack.c.h.b16 %v3192
      %v3279 = vunpack.c.l.b16 %v3193
      %v3280 = vunpack.c.h.b16 %v3193
      %v3281 = vunpack.c.l.b16 %v3194
      %v3282 = vunpack.c.h.b16 %v3194
      %v3283 = vunpack.c.l.b16 %v3195
      %v3284 = vunpack.c.h.b16 %v3195
      %v3285 = vunpack.c.l.b16 %v3196
      %v3286 = vunpack.c.h.b16 %v3196
      %v3287 = vunpack.c.l.b16 %v3197
      %v3288 = vunpack.c.h.b16 %v3197
      %v3289 = vunpack.c.l.b16 %v3198
      %v3290 = vunpack.c.h.b16 %v3198
      %v3291 = vunpack.c.l.b16 %v3199
      %v3292 = vunpack.c.h.b16 %v3199
      %v3293 = vunpack.c.l.b16 %v3200
      %v3294 = vunpack.c.h.b16 %v3200
      %v3295 = vunpack.c.l.b16 %v3201
      %v3296 = vunpack.c.h.b16 %v3201
      %v3297 = vunpack.c.l.b16 %v3202
      %v3298 = vunpack.c.h.b16 %v3202
      %v3299 = vunpack.c.l.b16 %v3203
      %v3300 = vunpack.c.h.b16 %v3203
      %v3301 = vunpack.c.l.b16 %v3204
      %v3302 = vunpack.c.h.b16 %v3204
      %v3303 = vunpack.c.l.b16 %v3205
      %v3304 = vunpack.c.h.b16 %v3205
      %v3305 = vunpack.c.l.b16 %v3206
      %v3306 = vunpack.c.h.b16 %v3206
      %v3307 = vunpack.c.l.b16 %v3207
      %v3308 = vunpack.c.h.b16 %v3207
      %v3309 = vunpack.c.l.b16 %v3208
      %v3310 = vunpack.c.h.b16 %v3208
      %v3311 = vunpack.c.l.b16 %v3209
      %v3312 = vunpack.c.h.b16 %v3209
      %v3313 = vunpack.c.l.b16 %v3210
      %v3314 = vunpack.c.h.b16 %v3210
      %v3315 = vunpack.c.l.b16 %v3211
      %v3316 = vunpack.c.h.b16 %v3211
      %v3317 = vunpack.c.l.b16 %v3212
      %v3318 = vunpack.c.h.b16 %v3212
      %v3319 = vunpack.c.l.b16 %v3213
      %v3320 = vunpack.c.h.b16 %v3213
      %v3321 = vpack.c.b16 %v3259, %v3257
      %v3322 = vpack.c.b16 %v3260, %v3258
      %v3323 = vpack.c.b16 %v3263, %v3261
      %v3324 = vpack.c.b16 %v3264, %v3262
      %v3325 = vpack.c.b16 %v3267, %v3265
      %v3326 = vpack.c.b16 %v3268, %v3266
      %v3327 = vpack.c.b16 %v3271, %v3269
      %v3328 = vpack.c.b16 %v3272, %v3270
      %v3329 = vpack.c.b16 %v3275, %v3273
      %v3330 = vpack.c.b16 %v3276, %v3274
      %v3331 = vpack.c.b16 %v3279, %v3277
      %v3332 = vpack.c.b16 %v3280, %v3278
      %v3333 = vpack.c.b16 %v3283, %v3281
      %v3334 = vpack.c.b16 %v3284, %v3282
      %v3335 = vpack.c.b16 %v3287, %v3285
      %v3336 = vpack.c.b16 %v3288, %v3286
      %v3337 = vpack.c.b16 %v3291, %v3289
      %v3338 = vpack.c.b16 %v3292, %v3290
      %v3339 = vpack.c.b16 %v3295, %v3293
      %v3340 = vpack.c.b16 %v3296, %v3294
      %v3341 = vpack.c.b16 %v3299, %v3297
      %v3342 = vpack.c.b16 %v3300, %v3298
      %v3343 = vpack.c.b16 %v3303, %v3301
      %v3344 = vpack.c.b16 %v3304, %v3302
      %v3345 = vpack.c.b16 %v3307, %v3305
      %v3346 = vpack.c.b16 %v3308, %v3306
      %v3347 = vpack.c.b16 %v3311, %v3309
      %v3348 = vpack.c.b16 %v3312, %v3310
      %v3349 = vpack.c.b16 %v3315, %v3313
      %v3350 = vpack.c.b16 %v3316, %v3314
      %v3351 = vpack.c.b16 %v3319, %v3317
      %v3352 = vpack.c.b16 %v3320, %v3318
      %3385 = vmatprep.subr.bf16.mxu0 %v3322
      %3386 = vmatpush1.bf16.msra.mxu0 %v3321
      %3387 = vmatprep.subr.bf16.mxu0 %v3324
      %3388 = vmatpush1.bf16.msra.mxu0 %v3323
      %3389 = vmatprep.subr.bf16.mxu0 %v3326
      %3390 = vmatpush1.bf16.msra.mxu0 %v3325
      %3391 = vmatprep.subr.bf16.mxu0 %v3328
      %3392 = vmatpush1.bf16.msra.mxu0 %v3327
      %3393 = vmatprep.subr.bf16.mxu0 %v3330
      %3394 = vmatpush1.bf16.msra.mxu0 %v3329
      %3395 = vmatprep.subr.bf16.mxu0 %v3332
      %3396 = vmatpush1.bf16.msra.mxu0 %v3331
      %3397 = vmatprep.subr.bf16.mxu0 %v3334
      %3398 = vmatpush1.bf16.msra.mxu0 %v3333
      %3399 = vmatprep.subr.bf16.mxu0 %v3336
      %3400 = vmatpush1.bf16.msra.mxu0 %v3335
      %3401 = vmatprep.subr.bf16.mxu0 %v3338
      %3402 = vmatpush1.bf16.msra.mxu0 %v3337
      %3403 = vmatprep.subr.bf16.mxu0 %v3340
      %3404 = vmatpush1.bf16.msra.mxu0 %v3339
      %3405 = vmatprep.subr.bf16.mxu0 %v3342
      %3406 = vmatpush1.bf16.msra.mxu0 %v3341
      %3407 = vmatprep.subr.bf16.mxu0 %v3344
      %3408 = vmatpush1.bf16.msra.mxu0 %v3343
      %3409 = vmatprep.subr.bf16.mxu0 %v3346
      %3410 = vmatpush1.bf16.msra.mxu0 %v3345
      %3411 = vmatprep.subr.bf16.mxu0 %v3348
      %3412 = vmatpush1.bf16.msra.mxu0 %v3347
      %3413 = vmatprep.subr.bf16.mxu0 %v3350
      %3414 = vmatpush1.bf16.msra.mxu0 %v3349
      %3415 = vmatprep.subr.bf16.mxu0 %v3352
      %3416 = vmatpush1.bf16.msra.mxu0 %v3351
      %3417 = vmatprep.mubr.bf16.mxu0 %v3173
      %3418 = vmatmul.mubr.bf16.gmra.mrb[0].mxu0 %v3172
      %v3419 = vpop.f32.mrb[0].mxu0
      %v3420 = vadd.f32 %v3218, %v3419
      %v3421 = vpop.f32.mrb[0].mxu0
      %v3422 = vadd.f32 %v3222, %v3421
      %v3423 = vpop.f32.mrb[0].mxu0
      %v3424 = vadd.f32 %v3218, %v3423
      %v3425 = vpop.f32.mrb[0].mxu0
      %v3426 = vadd.f32 %v3222, %v3425
      %3427 = vmatprep.mubr.bf16.mxu0 %v3175
      %3428 = vmatmul.mubr.bf16.gmra.mrb[0].mxu0 %v3174
      %v3429 = vpop.f32.mrb[0].mxu0
      %v3430 = vadd.f32 %v3218, %v3429
      %v3431 = vpop.f32.mrb[0].mxu0
      %v3432 = vadd.f32 %v3222, %v3431
      %v3433 = vpop.f32.mrb[0].mxu0
      %v3434 = vadd.f32 %v3218, %v3433
      %v3435 = vpop.f32.mrb[0].mxu0
      %v3436 = vadd.f32 %v3222, %v3435
      %3437 = vmatprep.mubr.bf16.mxu0 %v3177
      %3438 = vmatmul.mubr.bf16.gmra.mrb[0].mxu0 %v3176
      %v3439 = vpop.f32.mrb[0].mxu0
      %v3440 = vadd.f32 %v3218, %v3439
      %v3441 = vpop.f32.mrb[0].mxu0
      %v3442 = vadd.f32 %v3222, %v3441
      %v3443 = vpop.f32.mrb[0].mxu0
      %v3444 = vadd.f32 %v3218, %v3443
      %v3445 = vpop.f32.mrb[0].mxu0
      %v3446 = vadd.f32 %v3222, %v3445
      %3447 = vmatprep.mubr.bf16.mxu0 %v3179
      %3448 = vmatmul.mubr.bf16.gmra.mrb[0].mxu0 %v3178
      %v3449 = vpop.f32.mrb[0].mxu0
      %v3450 = vadd.f32 %v3218, %v3449
      %v3451 = vpop.f32.mrb[0].mxu0
      %v3452 = vadd.f32 %v3222, %v3451
      %v3453 = vpop.f32.mrb[0].mxu0
      %v3454 = vadd.f32 %v3218, %v3453
      %v3455 = vpop.f32.mrb[0].mxu0
      %v3456 = vadd.f32 %v3222, %v3455
      %3457 = vdwg.mxu0
      %vm3458 = vcmp.gt.f32.partialorder %v3420, 0.0
      %vm3459 = vcmp.gt.f32.partialorder %v3422, 0.0
      %vm3460 = vcmp.gt.f32.partialorder %v3424, 0.0
      %vm3461 = vcmp.gt.f32.partialorder %v3426, 0.0
      %vm3462 = vcmp.gt.f32.partialorder %v3430, 0.0
      %vm3463 = vcmp.gt.f32.partialorder %v3432, 0.0
      %vm3464 = vcmp.gt.f32.partialorder %v3434, 0.0
      %vm3465 = vcmp.gt.f32.partialorder %v3436, 0.0
      %vm3466 = vcmp.gt.f32.partialorder %v3440, 0.0
      %vm3467 = vcmp.gt.f32.partialorder %v3442, 0.0
      %vm3468 = vcmp.gt.f32.partialorder %v3444, 0.0
      %vm3469 = vcmp.gt.f32.partialorder %v3446, 0.0
      %vm3470 = vcmp.gt.f32.partialorder %v3450, 0.0
      %vm3471 = vcmp.gt.f32.partialorder %v3452, 0.0
      %vm3472 = vcmp.gt.f32.partialorder %v3454, 0.0
      %vm3473 = vcmp.gt.f32.partialorder %v3456, 0.0
      %v3474 = vmul.f32 %v3420, 1.442695
      %v3475 = vpow.pop %v3474
      %v3476 = vmul.f32 %v3422, 1.442695
      %v3477 = vpow.pop %v3476
      %v3478 = vmul.f32 %v3424, 1.442695
      %v3479 = vpow.pop %v3478
      %v3480 = vmul.f32 %v3426, 1.442695
      %v3481 = vpow.pop %v3480
      %v3482 = vmul.f32 %v3430, 1.442695
      %v3483 = vpow.pop %v3482
      %v3484 = vmul.f32 %v3432, 1.442695
      %v3485 = vpow.pop %v3484
      %v3486 = vmul.f32 %v3434, 1.442695
      %v3487 = vpow.pop %v3486
      %v3488 = vmul.f32 %v3436, 1.442695
      %v3489 = vpow.pop %v3488
      %v3490 = vmul.f32 %v3440, 1.442695
      %v3491 = vpow.pop %v3490
      %v3492 = vmul.f32 %v3442, 1.442695
      %v3493 = vpow.pop %v3492
      %v3494 = vmul.f32 %v3444, 1.442695
      %v3495 = vpow.pop %v3494
      %v3496 = vmul.f32 %v3446, 1.442695
      %v3497 = vpow.pop %v3496
      %v3498 = vmul.f32 %v3450, 1.442695
      %v3499 = vpow.pop %v3498
      %v3500 = vmul.f32 %v3452, 1.442695
      %v3501 = vpow.pop %v3500
      %v3502 = vmul.f32 %v3454, 1.442695
      %v3503 = vpow.pop %v3502
      %v3504 = vmul.f32 %v3456, 1.442695
      %v3505 = vpow.pop %v3504
      %v3506 = vsub.f32 %v3475, 1.0
      %v3507 = vsub.f32 %v3477, 1.0
      %v3508 = vsub.f32 %v3479, 1.0
      %v3509 = vsub.f32 %v3481, 1.0
      %v3510 = vsub.f32 %v3483, 1.0
      %v3511 = vsub.f32 %v3485, 1.0
      %v3512 = vsub.f32 %v3487, 1.0
      %v3513 = vsub.f32 %v3489, 1.0
      %v3514 = vsub.f32 %v3491, 1.0
      %v3515 = vsub.f32 %v3493, 1.0
      %v3516 = vsub.f32 %v3495, 1.0
      %v3517 = vsub.f32 %v3497, 1.0
      %v3518 = vsub.f32 %v3499, 1.0
      %v3519 = vsub.f32 %v3501, 1.0
      %v3520 = vsub.f32 %v3503, 1.0
      %v3521 = vsub.f32 %v3505, 1.0
      %v3522 = vsel %vm3458, %v3420, %v3506
      %v3523 = vsel %vm3459, %v3422, %v3507
      %v3524 = vsel %vm3460, %v3424, %v3508
      %v3525 = vsel %vm3461, %v3426, %v3509
      %v3526 = vsel %vm3462, %v3430, %v3510
      %v3527 = vsel %vm3463, %v3432, %v3511
      %v3528 = vsel %vm3464, %v3434, %v3512
      %v3529 = vsel %vm3465, %v3436, %v3513
      %v3530 = vsel %vm3466, %v3440, %v3514
      %v3531 = vsel %vm3467, %v3442, %v3515
      %v3532 = vsel %vm3468, %v3444, %v3516
      %v3533 = vsel %vm3469, %v3446, %v3517
      %v3534 = vsel %vm3470, %v3450, %v3518
      %v3535 = vsel %vm3471, %v3452, %v3519
      %v3536 = vsel %vm3472, %v3454, %v3520
      %v3537 = vsel %vm3473, %v3456, %v3521
      %v3538 = vadd.f32 %v3522, %v3523
      %3539 = vadd.xlane.f32.xlu0 %v3538
      %v3540 = vpop.xlane.xlu0 %3539
      %v3541 = vadd.f32 %v3524, %v3525
      %3542 = vadd.xlane.f32.xlu0 %v3541
      %v3543 = vpop.xlane.xlu0 %3542
      %v3544 = vadd.f32 %v3526, %v3527
      %3545 = vadd.xlane.f32.xlu0 %v3544
      %v3546 = vpop.xlane.xlu0 %3545
      %v3547 = vadd.f32 %v3528, %v3529
      %3548 = vadd.xlane.f32.xlu0 %v3547
      %v3549 = vpop.xlane.xlu0 %3548
      %v3550 = vadd.f32 %v3530, %v3531
      %3551 = vadd.xlane.f32.xlu0 %v3550
      %v3552 = vpop.xlane.xlu0 %3551
      %v3553 = vadd.f32 %v3532, %v3533
      %3554 = vadd.xlane.f32.xlu0 %v3553
      %v3555 = vpop.xlane.xlu0 %3554
      %v3556 = vadd.f32 %v3534, %v3535
      %3557 = vadd.xlane.f32.xlu0 %v3556
      %v3558 = vpop.xlane.xlu0 %3557
      %v3559 = vadd.f32 %v3536, %v3537
      %3560 = vadd.xlane.f32.xlu0 %v3559
      %v3561 = vpop.xlane.xlu0 %3560
      %v3562 = vmul.f32 %v3540, %v621
      %v3563 = vmul.f32 %v3543, %v621
      %v3564 = vmul.f32 %v3546, %v621
      %v3565 = vmul.f32 %v3549, %v621
      %v3566 = vmul.f32 %v3552, %v621
      %v3567 = vmul.f32 %v3555, %v621
      %v3568 = vmul.f32 %v3558, %v621
      %v3569 = vmul.f32 %v3561, %v621
      %v3570 = vsub.f32 %v3522, %v3562
      %v3571 = vsub.f32 %v3523, %v3562
      %v3572 = vsub.f32 %v3524, %v3563
      %v3573 = vsub.f32 %v3525, %v3563
      %v3574 = vsub.f32 %v3526, %v3564
      %v3575 = vsub.f32 %v3527, %v3564
      %v3576 = vsub.f32 %v3528, %v3565
      %v3577 = vsub.f32 %v3529, %v3565
      %v3578 = vsub.f32 %v3530, %v3566
      %v3579 = vsub.f32 %v3531, %v3566
      %v3580 = vsub.f32 %v3532, %v3567
      %v3581 = vsub.f32 %v3533, %v3567
      %v3582 = vsub.f32 %v3534, %v3568
      %v3583 = vsub.f32 %v3535, %v3568
      %v3584 = vsub.f32 %v3536, %v3569
      %v3585 = vsub.f32 %v3537, %v3569
      %v3586 = vmul.f32 %v3570, %v3570
      %v3587 = vmul.f32 %v3571, %v3571
      %v3588 = vmul.f32 %v3572, %v3572
      %v3589 = vmul.f32 %v3573, %v3573
      %v3590 = vmul.f32 %v3574, %v3574
      %v3591 = vmul.f32 %v3575, %v3575
      %v3592 = vmul.f32 %v3576, %v3576
      %v3593 = vmul.f32 %v3577, %v3577
      %v3594 = vmul.f32 %v3578, %v3578
      %v3595 = vmul.f32 %v3579, %v3579
      %v3596 = vmul.f32 %v3580, %v3580
      %v3597 = vmul.f32 %v3581, %v3581
      %v3598 = vmul.f32 %v3582, %v3582
      %v3599 = vmul.f32 %v3583, %v3583
      %v3600 = vmul.f32 %v3584, %v3584
      %v3601 = vmul.f32 %v3585, %v3585
      %v3602 = vadd.f32 %v3586, %v3587
      %3603 = vadd.xlane.f32.xlu0 %v3602
      %v3604 = vpop.xlane.xlu0 %3603
      %v3605 = vadd.f32 %v3588, %v3589
      %3606 = vadd.xlane.f32.xlu0 %v3605
      %v3607 = vpop.xlane.xlu0 %3606
      %v3608 = vadd.f32 %v3590, %v3591
      %3609 = vadd.xlane.f32.xlu0 %v3608
      %v3610 = vpop.xlane.xlu0 %3609
      %v3611 = vadd.f32 %v3592, %v3593
      %3612 = vadd.xlane.f32.xlu0 %v3611
      %v3613 = vpop.xlane.xlu0 %3612
      %v3614 = vadd.f32 %v3594, %v3595
      %3615 = vadd.xlane.f32.xlu0 %v3614
      %v3616 = vpop.xlane.xlu0 %3615
      %v3617 = vadd.f32 %v3596, %v3597
      %3618 = vadd.xlane.f32.xlu0 %v3617
      %v3619 = vpop.xlane.xlu0 %3618
      %v3620 = vadd.f32 %v3598, %v3599
      %3621 = vadd.xlane.f32.xlu0 %v3620
      %v3622 = vpop.xlane.xlu0 %3621
      %v3623 = vadd.f32 %v3600, %v3601
      %3624 = vadd.xlane.f32.xlu0 %v3623
      %v3625 = vpop.xlane.xlu0 %3624
      %v3626 = vmul.f32 %v3604, %v621
      %v3627 = vmul.f32 %v3607, %v621
      %v3628 = vmul.f32 %v3610, %v621
      %v3629 = vmul.f32 %v3613, %v621
      %v3630 = vmul.f32 %v3616, %v621
      %v3631 = vmul.f32 %v3619, %v621
      %v3632 = vmul.f32 %v3622, %v621
      %v3633 = vmul.f32 %v3625, %v621
      %v3634 = vadd.f32 %v3626, 1e-05
      %v3635 = vadd.f32 %v3627, 1e-05
      %v3636 = vadd.f32 %v3628, 1e-05
      %v3637 = vadd.f32 %v3629, 1e-05
      %v3638 = vadd.f32 %v3630, 1e-05
      %v3639 = vadd.f32 %v3631, 1e-05
      %v3640 = vadd.f32 %v3632, 1e-05
      %v3641 = vadd.f32 %v3633, 1e-05
      %v3642 = vrsqrt.pop %v3634
      %v3643 = vrsqrt.pop %v3635
      %v3644 = vrsqrt.pop %v3636
      %v3645 = vrsqrt.pop %v3637
      %v3646 = vrsqrt.pop %v3638
      %v3647 = vrsqrt.pop %v3639
      %v3648 = vrsqrt.pop %v3640
      %v3649 = vrsqrt.pop %v3641
      %v3650 = vpack.c.bf16 %v3572, %v3570
      %v3651 = vpack.c.bf16 %v3573, %v3571
      %v3652 = vpack.c.bf16 %v3576, %v3574
      %v3653 = vpack.c.bf16 %v3577, %v3575
      %v3654 = vpack.c.bf16 %v3580, %v3578
      %v3655 = vpack.c.bf16 %v3581, %v3579
      %v3656 = vpack.c.bf16 %v3584, %v3582
      %v3657 = vpack.c.bf16 %v3585, %v3583
      %v3658 = vpack.c.bf16 %v3643, %v3642
      %v3659 = vpack.c.bf16 %v3645, %v3644
      %v3660 = vpack.c.bf16 %v3647, %v3646
      %v3661 = vpack.c.bf16 %v3649, %v3648
      %v3662 = vmul.bf16 %v3650, %v3658
      %v3663 = vmul.bf16 %v3651, %v3658
      %v3664 = vmul.bf16 %v3652, %v3659
      %v3665 = vmul.bf16 %v3653, %v3659
      %v3666 = vmul.bf16 %v3654, %v3660
      %v3667 = vmul.bf16 %v3655, %v3660
      %v3668 = vmul.bf16 %v3656, %v3661
      %v3669 = vmul.bf16 %v3657, %v3661
      %v3670 = vld [vmem:[%s9 + $0x7] ss:$0 sm:$0xff]
      %v3671 = vld [vmem:[%s8] sm:$0xf]
      %v3672 = vld [vmem:[%s8 + $0x4] sm:$0xf]
      %v3673 = vld [vmem:[%s8 + $0x8] sm:$0xf]
      %v3674 = vld [vmem:[%s8 + $0xc] sm:$0xf]
      %v3675 = vld [vmem:[%s8 + $0x10] sm:$0xf]
      %v3676 = vld [vmem:[%s8 + $0x14] sm:$0xf]
      %v3677 = vld [vmem:[%s8 + $0x18] sm:$0xf]
      %v3678 = vld [vmem:[%s8 + $0x1c] sm:$0xf]
      %v3679 = vld [vmem:[%s8 + $0x20] sm:$0xf]
      %v3680 = vld [vmem:[%s8 + $0x24] sm:$0xf]
      %v3681 = vld [vmem:[%s8 + $0x28] sm:$0xf]
      %v3682 = vld [vmem:[%s8 + $0x2c] sm:$0xf]
      %v3683 = vld [vmem:[%s8 + $0x30] sm:$0xf]
      %v3684 = vld [vmem:[%s8 + $0x34] sm:$0xf]
      %v3685 = vld [vmem:[%s8 + $0x38] sm:$0xf]
      %v3686 = vld [vmem:[%s8 + $0x3c] sm:$0xf]
      %v3687 = vld [vmem:[%s8 + $0x40] sm:$0xf]
      %v3688 = vld [vmem:[%s8 + $0x44] sm:$0xf]
      %v3689 = vld [vmem:[%s8 + $0x48] sm:$0xf]
      %v3690 = vld [vmem:[%s8 + $0x4c] sm:$0xf]
      %v3691 = vld [vmem:[%s8 + $0x50] sm:$0xf]
      %v3692 = vld [vmem:[%s8 + $0x54] sm:$0xf]
      %v3693 = vld [vmem:[%s8 + $0x58] sm:$0xf]
      %v3694 = vld [vmem:[%s8 + $0x5c] sm:$0xf]
      %v3695 = vld [vmem:[%s8 + $0x60] sm:$0xf]
      %v3696 = vld [vmem:[%s8 + $0x64] sm:$0xf]
      %v3697 = vld [vmem:[%s8 + $0x68] sm:$0xf]
      %v3698 = vld [vmem:[%s8 + $0x6c] sm:$0xf]
      %v3699 = vld [vmem:[%s8 + $0x70] sm:$0xf]
      %v3700 = vld [vmem:[%s8 + $0x74] sm:$0xf]
      %v3701 = vld [vmem:[%s8 + $0x78] sm:$0xf]
      %v3702 = vld [vmem:[%s8 + $0x7c] sm:$0xf]
      %v3735 = vunpack.c.l.b16 %v3671
      %v3736 = vunpack.c.l.b16 %v3672
      %v3737 = vunpack.c.l.b16 %v3673
      %v3738 = vunpack.c.l.b16 %v3674
      %v3739 = vunpack.c.l.b16 %v3675
      %v3740 = vunpack.c.l.b16 %v3676
      %v3741 = vunpack.c.l.b16 %v3677
      %v3742 = vunpack.c.l.b16 %v3678
      %v3743 = vunpack.c.l.b16 %v3679
      %v3744 = vunpack.c.l.b16 %v3680
      %v3745 = vunpack.c.l.b16 %v3681
      %v3746 = vunpack.c.l.b16 %v3682
      %v3747 = vunpack.c.l.b16 %v3683
      %v3748 = vunpack.c.l.b16 %v3684
      %v3749 = vunpack.c.l.b16 %v3685
      %v3750 = vunpack.c.l.b16 %v3686
      %v3751 = vunpack.c.l.b16 %v3687
      %v3752 = vunpack.c.l.b16 %v3688
      %v3753 = vunpack.c.l.b16 %v3689
      %v3754 = vunpack.c.l.b16 %v3690
      %v3755 = vunpack.c.l.b16 %v3691
      %v3756 = vunpack.c.l.b16 %v3692
      %v3757 = vunpack.c.l.b16 %v3693
      %v3758 = vunpack.c.l.b16 %v3694
      %v3759 = vunpack.c.l.b16 %v3695
      %v3760 = vunpack.c.l.b16 %v3696
      %v3761 = vunpack.c.l.b16 %v3697
      %v3762 = vunpack.c.l.b16 %v3698
      %v3763 = vunpack.c.l.b16 %v3699
      %v3764 = vunpack.c.l.b16 %v3700
      %v3765 = vunpack.c.l.b16 %v3701
      %v3766 = vunpack.c.l.b16 %v3702
      %v3767 = vpack.c.b16 %v3736, %v3735
      %v3768 = vpack.c.b16 %v3738, %v3737
      %v3769 = vpack.c.b16 %v3740, %v3739
      %v3770 = vpack.c.b16 %v3742, %v3741
      %v3771 = vpack.c.b16 %v3744, %v3743
      %v3772 = vpack.c.b16 %v3746, %v3745
      %v3773 = vpack.c.b16 %v3748, %v3747
      %v3774 = vpack.c.b16 %v3750, %v3749
      %v3775 = vpack.c.b16 %v3752, %v3751
      %v3776 = vpack.c.b16 %v3754, %v3753
      %v3777 = vpack.c.b16 %v3756, %v3755
      %v3778 = vpack.c.b16 %v3758, %v3757
      %v3779 = vpack.c.b16 %v3760, %v3759
      %v3780 = vpack.c.b16 %v3762, %v3761
      %v3781 = vpack.c.b16 %v3764, %v3763
      %v3782 = vpack.c.b16 %v3766, %v3765
      %3799 = vmatprep.subr.bf16.mxu0 0
      %3800 = vmatpush1.bf16.msra.mxu0 %v3767
      %3801 = vmatprep.subr.bf16.mxu0 0
      %3802 = vmatpush1.bf16.msra.mxu0 %v3768
      %3803 = vmatprep.subr.bf16.mxu0 0
      %3804 = vmatpush1.bf16.msra.mxu0 %v3769
      %3805 = vmatprep.subr.bf16.mxu0 0
      %3806 = vmatpush1.bf16.msra.mxu0 %v3770
      %3807 = vmatprep.subr.bf16.mxu0 0
      %3808 = vmatpush1.bf16.msra.mxu0 %v3771
      %3809 = vmatprep.subr.bf16.mxu0 0
      %3810 = vmatpush1.bf16.msra.mxu0 %v3772
      %3811 = vmatprep.subr.bf16.mxu0 0
      %3812 = vmatpush1.bf16.msra.mxu0 %v3773
      %3813 = vmatprep.subr.bf16.mxu0 0
      %3814 = vmatpush1.bf16.msra.mxu0 %v3774
      %3815 = vmatprep.subr.bf16.mxu0 0
      %3816 = vmatpush1.bf16.msra.mxu0 %v3775
      %3817 = vmatprep.subr.bf16.mxu0 0
      %3818 = vmatpush1.bf16.msra.mxu0 %v3776
      %3819 = vmatprep.subr.bf16.mxu0 0
      %3820 = vmatpush1.bf16.msra.mxu0 %v3777
      %3821 = vmatprep.subr.bf16.mxu0 0
      %3822 = vmatpush1.bf16.msra.mxu0 %v3778
      %3823 = vmatprep.subr.bf16.mxu0 0
      %3824 = vmatpush1.bf16.msra.mxu0 %v3779
      %3825 = vmatprep.subr.bf16.mxu0 0
      %3826 = vmatpush1.bf16.msra.mxu0 %v3780
      %3827 = vmatprep.subr.bf16.mxu0 0
      %3828 = vmatpush1.bf16.msra.mxu0 %v3781
      %3829 = vmatprep.subr.bf16.mxu0 0
      %3830 = vmatpush1.bf16.msra.mxu0 %v3782
      %3831 = vmatprep.mubr.bf16.mxu0 %v3663
      %3832 = vmatmul.mubr.bf16.gmra.mrb[0].mxu0 %v3662
      %v3833 = vpop.f32.mrb[0].mxu0
      %v3834 = vadd.f32 %v3670, %v3833
      %v3835 = vpop.f32.mrb[0].mxu0
      %v3836 = vpop.f32.mrb[0].mxu0
      %v3837 = vadd.f32 %v3670, %v3836
      %v3838 = vpop.f32.mrb[0].mxu0
      %3839 = vmatprep.mubr.bf16.mxu0 %v3665
      %3840 = vmatmul.mubr.bf16.gmra.mrb[0].mxu0 %v3664
      %v3841 = vpop.f32.mrb[0].mxu0
      %v3842 = vadd.f32 %v3670, %v3841
      %v3843 = vpop.f32.mrb[0].mxu0
      %v3844 = vpop.f32.mrb[0].mxu0
      %v3845 = vadd.f32 %v3670, %v3844
      %v3846 = vpop.f32.mrb[0].mxu0
      %3847 = vmatprep.mubr.bf16.mxu0 %v3667
      %3848 = vmatmul.mubr.bf16.gmra.mrb[0].mxu0 %v3666
      %v3849 = vpop.f32.mrb[0].mxu0
      %v3850 = vadd.f32 %v3670, %v3849
      %v3851 = vpop.f32.mrb[0].mxu0
      %v3852 = vpop.f32.mrb[0].mxu0
      %v3853 = vadd.f32 %v3670, %v3852
      %v3854 = vpop.f32.mrb[0].mxu0
      %3855 = vmatprep.mubr.bf16.mxu0 %v3669
      %3856 = vmatmul.mubr.bf16.gmra.mrb[0].mxu0 %v3668
      %v3857 = vpop.f32.mrb[0].mxu0
      %v3858 = vadd.f32 %v3670, %v3857
      %v3859 = vpop.f32.mrb[0].mxu0
      %v3860 = vpop.f32.mrb[0].mxu0
      %v3861 = vadd.f32 %v3670, %v3860
      %v3862 = vpop.f32.mrb[0].mxu0
      %3863 = vdwg.mxu0
      %3864 = vst [vmem:[%s361] sm:$0xff] %v3834
      %3865 = vst [vmem:[%s361 + $0x8] sm:$0xff] %v3837
      %3866 = vst [vmem:[%s361 + $0x10] sm:$0xff] %v3842
      %3867 = vst [vmem:[%s361 + $0x18] sm:$0xff] %v3845
      %3868 = vst [vmem:[%s361 + $0x20] sm:$0xff] %v3850
      %3869 = vst [vmem:[%s361 + $0x28] sm:$0xff] %v3853
      %3870 = vst [vmem:[%s361 + $0x30] sm:$0xff] %v3858
      %3871 = vst [vmem:[%s361 + $0x38] sm:$0xff] %v3861
      %s3872 = smul.u32 8, %s21
      %p3873 = scmp.lt.s32.totalorder %s3872, 31
      %s3874 = scalar_select %p3873, %s3872, 31
      %s3875 = smul.addr %s3874, 8
      %s3876 = scalar_lea.vmem %s10, %s3875
      // Predicated region
      $region61: #{dnn_forward.1} parent=59 // pred_check
        %p3877 = pneg %p254
      $region62: #{dnn_forward.1} parent=59 // pred_check_branch
        %3879 = sbr.rel (%p3877) target = $region64
      $region63: #{dnn_forward.1} parent=59 // pred_region
        %s3880 = smul.u32 8, %s21
      $region64: #{dnn_forward.1} parent=59 // pred_fallthru
        _
    $region60: #{dnn_forward.1} parent=5 // pred_fallthru
      _
    %p3881 = scmp.le.s32.totalorder 2, %s16
    // Predicated region
    $region65: #{dnn_forward.1} parent=5 // pred_check
      %p3882 = pneg %p3881
    $region66: #{dnn_forward.1} parent=5 // pred_check_branch
      %3884 = sbr.rel (%p3882) target = $region68
    $region67: #{dnn_forward.1} parent=5 // pred_region
      %s3885 = ssub.s32 %s16, 2
      // Predicated region
      $region69: #{dnn_forward.1} parent=67 // pred_check
        %p3886 = pneg %p260
      $region70: #{dnn_forward.1} parent=67 // pred_check_branch
        %3888 = sbr.rel (%p3886) target = $region72
      $region71: #{dnn_forward.1} parent=67 // pred_region
        %s3889 = smul.u32 8, %s22
        %p3890 = scmp.lt.s32.totalorder %s3889, 31
        %s3891 = scalar_select %p3890, %s3889, 31
        %s3892 = smul.addr %s3891, 8
        %s3893 = scalar_lea.vmem %s10, %s3892
      $region72: #{dnn_forward.1} parent=67 // pred_fallthru
        _
    $region68: #{dnn_forward.1} parent=5 // pred_fallthru
      _
  $region6: #{dnn_forward.1} parent=0 // loop_footer
    %s20 = sadd.s32 1, %s16
  $region7: #{dnn_forward.1} parent=0 // loop_footer_branch
    %15 = sbr.rel target = $region3
  $region8: #{dnn_forward.1} parent=0 // loop_exit
    _

</llo_original>
